<compile_context>
chip_gen: v7x
topology: tpu7x:2x2x1
jax: 0.10.0
libtpu: 0.0.40
codegen_flags: <defaults>
</compile_context>

<pallas_src>
import functools

import jax
import jax.numpy as jnp
from jax.experimental import pallas as pl
from jax.experimental.pallas import tpu as pltpu

BN_EPS = 1e-5


def head_kernel(x_ref, w1t_ref, tail_ref, out_ref, acc_ref):
    """One (batch-tile, K-tile) grid step of the FC head.

    x_ref    : [bt, tk]          f32   flattened-feature tile (cast to bf16 in-kernel)
    w1t_ref  : [H,  tk]          bf16  BN-folded fc1 weight, lane-dense
    tail_ref : [8+H, max(H,O)]   f32   row0=b1', row1=b2, rows 8..8+H-1 = w2
    out_ref  : [bt, O]           f32   log-probabilities
    acc_ref  : [bt, H]           f32   fc1 accumulator (VMEM scratch)
    """
    k = pl.program_id(1)
    nk = pl.num_programs(1)

    @pl.when(k == 0)
    def _init():
        acc_ref[...] = jnp.zeros_like(acc_ref)

    # Cast the activation tile to bf16 here (no separate XLA convert kernel on
    # the host side); weight is already bf16.  Partial fc1 (BN folded in):
    # [bt, tk] x [H, tk]^T -> [bt, H], f32 accumulation on the MXU.
    x_bf16 = x_ref[...].astype(jnp.bfloat16)
    acc_ref[...] += jax.lax.dot_general(
        x_bf16, w1t_ref[...],
        dimension_numbers=(((1,), (1,)), ((), ())),
        preferred_element_type=jnp.float32)

    @pl.when(k == nk - 1)
    def _finalize():
        H = w1t_ref.shape[0]
        O = out_ref.shape[1]
        b1f = tail_ref[0:1, :H]          # [1, H]  folded fc1 bias
        b2 = tail_ref[1:2, :O]           # [1, O]  fc2 bias
        w2 = tail_ref[8:8 + H, :O]       # [H, O]  fc2 weight

        # bias + ReLU (dropout is identity in eval mode)
        h = jnp.maximum(acc_ref[...] + b1f, 0.0)

        # fc2: tiny ([bt,H]@[H,O]); intentionally left untiled.
        logits = jnp.dot(h, w2, preferred_element_type=jnp.float32) + b2

        # log_softmax over dim=1 (stable shifted log-sum-exp)
        m = jnp.max(logits, axis=1, keepdims=True)
        shifted = logits - m
        lse = jnp.log(jnp.sum(jnp.exp(shifted), axis=1, keepdims=True))
        out_ref[...] = (shifted - lse).astype(out_ref.dtype)


def fold_and_pack_params(params):
    """Fold eval-mode BatchNorm1d into fc1 and pack small tail params (host side)."""
    scale = params["gamma"] * jax.lax.rsqrt(params["var"] + BN_EPS)      # [1, H]
    w1f = params["w1"] * scale                                           # [D, H]
    b1f = (params["b1"] - params["mean"]) * scale + params["beta"]       # [1, H]

    w1t = jnp.transpose(w1f).astype(jnp.bfloat16)                        # [H, D] lane-dense
    H = w1t.shape[0]
    O = params["w2"].shape[1]
    wl = max(H, O)

    tail = jnp.zeros((8 + H, wl), jnp.float32)
    tail = tail.at[0, :H].set(b1f[0].astype(jnp.float32))
    tail = tail.at[1, :O].set(params["b2"][0].astype(jnp.float32))
    tail = tail.at[8:8 + H, :O].set(params["w2"].astype(jnp.float32))
    return w1t, tail


def _vmem_budget_bytes():
    """Conservative per-call VMEM budget that is safe on every TPU generation.

    Stays under v5e's 16 MiB scoped default (so no vmem_limit_bytes override is
    needed), and well under v7x's 64 MiB physical VMEM.  If hardware info is
    available, additionally cap at 1/4 of physical VMEM.
    """
    budget = 12 << 20
    try:
        budget = min(budget, pltpu.get_tpu_info().vmem_capacity_bytes // 4)
    except Exception:
        pass
    return budget


def _pick_k_tile(D, H, bt, budget_bytes):
    """Largest K tile (D itself, or a multiple of 128 dividing D) whose
    double-buffered working set fits `budget_bytes`.  Prefers tk == D so the
    default problem size runs as a single grid step."""
    def working_set(tk):
        # double-buffered x (f32) and w1t (bf16) tiles + resident f32 accumulator
        return 2 * (bt * tk * 4 + H * tk * 2) + bt * H * 4

    tk = D
    while tk > 128 and working_set(tk) > budget_bytes:
        nxt = tk // 2
        if D % nxt != 0 or nxt % 128 != 0:
            break   # fall back to current tk (still a legal block shape)
        tk = nxt
    return tk


@functools.partial(jax.jit, static_argnames=("n_classes", "bt"))
def net_head_forward(x, w1t, tail, *, n_classes, bt=256):
    """x: [B, D] flattened f32 features -> [B, n_classes] log-probabilities."""
    B, D = x.shape
    H = w1t.shape[0]
    wl = tail.shape[1]

    bt = min(bt, B)
    # NOTE: if B is not a multiple of bt, the padded rows of the last batch
    # block compute on garbage but their writeback is masked by Pallas; only
    # the first B output rows are valid.
    tk = _pick_k_tile(D, H, bt, _vmem_budget_bytes())
    grid = (pl.cdiv(B, bt), D // tk)

    # Advisory cost estimate so XLA can overlap the (weight-stream-dominated)
    # custom call with surrounding ops.
    cost = pl.CostEstimate(
        flops=2 * B * D * H + 2 * B * H * n_classes,
        transcendentals=B * n_classes,                       # exp in log_softmax
        bytes_accessed=(B * D * 4                            # x (f32)
                        + H * D * 2                          # w1t (bf16)
                        + tail.size * 4                      # packed tail
                        + B * n_classes * 4))                # output

    return pl.pallas_call(
        head_kernel,
        out_shape=jax.ShapeDtypeStruct((B, n_classes), jnp.float32),
        grid_spec=pltpu.PrefetchScalarGridSpec(
            num_scalar_prefetch=0,
            grid=grid,
            in_specs=[
                pl.BlockSpec((bt, tk), lambda b, k: (b, k)),        # x (f32)
                pl.BlockSpec((H, tk), lambda b, k: (0, k)),         # w1t (bf16, lane-dense)
                pl.BlockSpec((8 + H, wl), lambda b, k: (0, 0)),     # packed b1'/b2/w2 (f32)
            ],
            out_specs=pl.BlockSpec((bt, n_classes), lambda b, k: (b, 0)),
            scratch_shapes=[pltpu.VMEM((bt, H), jnp.float32)],
        ),
        compiler_params=pltpu.CompilerParams(
            dimension_semantics=("parallel", "arbitrary")),
        cost_estimate=cost,
    )(x, w1t, tail)


def init_params(key, num_channels):
    D = 32 * 32 * num_channels * 4   # fc1 in_features (as declared in the module)
    H = num_channels * 4             # fc1 out_features
    O = 6                            # fc2 out_features
    k1, k2, k3, k4, k5 = jax.random.split(key, 5)
    params = {
        "w1": jax.random.normal(k1, (D, H), jnp.float32) * (1.0 / jnp.sqrt(D)),
        "b1": jax.random.normal(k2, (1, H), jnp.float32) * 0.01,
        "gamma": jnp.ones((1, H), jnp.float32),
        "beta": jnp.zeros((1, H), jnp.float32),
        "mean": jax.random.normal(k3, (1, H), jnp.float32) * 0.1,
        "var": jnp.abs(jax.random.normal(k4, (1, H), jnp.float32)) * 0.5 + 0.5,
        "w2": jax.random.normal(k5, (H, O), jnp.float32) * (1.0 / jnp.sqrt(H)),
        "b2": jnp.zeros((1, O), jnp.float32),
    }
    return params, D, H, O


def reference_head_quantized(x, w1t, tail, n_classes):
    """Pure-JAX ref using the same folded, bf16-quantized weights (f32 math)."""
    H = w1t.shape[0]
    x32 = x.astype(jnp.bfloat16).astype(jnp.float32)
    w1 = w1t.astype(jnp.float32).T                     # [D, H]
    b1f = tail[0:1, :H]
    b2 = tail[1:2, :n_classes]
    w2 = tail[8:8 + H, :n_classes]
    h = jnp.maximum(x32 @ w1 + b1f, 0.0)
    logits = h @ w2 + b2
    return jax.nn.log_softmax(logits, axis=1)


def reference_head_f32(x, p):
    """Pure-JAX f32 reference of the original (unfolded) module math, eval mode."""
    h = x @ p["w1"] + p["b1"]
    h = (h - p["mean"]) * jax.lax.rsqrt(p["var"] + BN_EPS) * p["gamma"] + p["beta"]
    h = jnp.maximum(h, 0.0)
    logits = h @ p["w2"] + p["b2"]
    return jax.nn.log_softmax(logits, axis=1)


if __name__ == "__main__":
    num_channels = 4          # params.num_channels
    batch = 2

    key = jax.random.PRNGKey(0)
    pkey, xkey = jax.random.split(key)
    params, D, H, O = init_params(pkey, num_channels)

    # Flattened features, as Net.forward's `s.view(-1, 32*32*num_channels*4)` produces.
    x = jax.random.normal(xkey, (batch, D), jnp.float32)

    w1t, tail = fold_and_pack_params(params)
    out = net_head_forward(x, w1t, tail, n_classes=O)
    out = jax.block_until_ready(out)

    assert out.shape == (batch, O)

    # Tight check: identical (BN-folded, bf16-quantized) weights, pure-JAX f32 math.
    ref_q = reference_head_quantized(x, w1t, tail, O)
    assert jnp.allclose(out, ref_q, atol=2e-3, rtol=2e-3), "mismatch vs quantized reference"

    # Loose check: original unfolded f32 math (bf16 cast of x/w1 is the only delta).
    ref_f32 = reference_head_f32(x, params)
    assert jnp.allclose(out, ref_f32, atol=1e-1, rtol=1e-1), "mismatch vs f32 reference"

    # log-softmax rows must exp-sum to 1
    assert jnp.allclose(jnp.sum(jnp.exp(out), axis=1), 1.0, atol=1e-4)

    print("KERNEL_OK")
</pallas_src>

<mosaic_0001>
module attributes {stable_mosaic.version = 11 : i64} {
  func.func @head_kernel(%arg0: i32, %arg1: i32, %arg2: memref<2x16384xf32, #tpu.memory_space<vmem>>, %arg3: memref<16x16384xbf16, #tpu.memory_space<vmem>>, %arg4: memref<24x16xf32, #tpu.memory_space<vmem>>, %arg5: memref<2x6xf32, #tpu.memory_space<vmem>>, %arg6: memref<2x16xf32, #tpu.memory_space<vmem>>) attributes {dimension_semantics = [#tpu.dimension_semantics<parallel>, #tpu.dimension_semantics<arbitrary>], iteration_bounds = array<i64: 1, 1>, scalar_prefetch = 0 : i64, scratch_operands = 1 : i64, tpu.core_type = #tpu.core_type<tc>, window_params = [{transform_indices = @transform_0, window_bounds = array<i64: 2, 16384>}, {transform_indices = @transform_1, window_bounds = array<i64: 16, 16384>}, {pipeline_mode = #tpu.pipeline_mode<synchronous>, transform_indices = @transform_2, window_bounds = array<i64: 24, 16>}, {transform_indices = @transform_3, window_bounds = array<i64: 2, 6>}]} {
    %c0_i32 = arith.constant 0 : i32
    %0 = arith.cmpi eq, %arg1, %c0_i32 : i32
    %1 = arith.extui %0 : i1 to i32
    %c0_i32_0 = arith.constant 0 : i32
    %2 = arith.cmpi ne, %1, %c0_i32_0 : i32
    scf.if %2 {
      %cst_10 = arith.constant 0.000000e+00 : f32
      %13 = vector.broadcast %cst_10 : f32 to vector<2x16xf32>
      %c0_11 = arith.constant 0 : index
      %c0_12 = arith.constant 0 : index
      %14 = vector.load %arg6[%c0_11, %c0_12] : memref<2x16xf32, #tpu.memory_space<vmem>>, vector<2x16xf32>
      tpu.vector_store %arg6[%c0_11, %c0_12], %13 {strides = array<i32>} : memref<2x16xf32, #tpu.memory_space<vmem>>, vector<2x16xf32>,
    } else {
    }
    %c0 = arith.constant 0 : index
    %c0_1 = arith.constant 0 : index
    %3 = vector.load %arg2[%c0, %c0_1] : memref<2x16384xf32, #tpu.memory_space<vmem>>, vector<2x16384xf32>
    %4 = arith.truncf %3 : vector<2x16384xf32> to vector<2x16384xbf16>
    %c0_2 = arith.constant 0 : index
    %c0_3 = arith.constant 0 : index
    %5 = vector.load %arg6[%c0_2, %c0_3] : memref<2x16xf32, #tpu.memory_space<vmem>>, vector<2x16xf32>
    %c0_4 = arith.constant 0 : index
    %c0_5 = arith.constant 0 : index
    %6 = vector.load %arg3[%c0_4, %c0_5] : memref<16x16384xbf16, #tpu.memory_space<vmem>>, vector<16x16384xbf16>
    %cst = arith.constant dense<0.000000e+00> : vector<2x16xf32>
    %7 = tpu.matmul %4, %6, %cst {dimension_numbers = #tpu.dot_dimension_numbers<[1], [1], [0], [0], [0, 0, 1, 0], [], []>} : vector<2x16384xbf16>, vector<16x16384xbf16>, vector<2x16xf32> -> vector<2x16xf32>
    %8 = arith.addf %5, %7 : vector<2x16xf32>
    %c0_6 = arith.constant 0 : index
    %c0_7 = arith.constant 0 : index
    %9 = vector.load %arg6[%c0_6, %c0_7] : memref<2x16xf32, #tpu.memory_space<vmem>>, vector<2x16xf32>
    tpu.vector_store %arg6[%c0_6, %c0_7], %8 {strides = array<i32>} : memref<2x16xf32, #tpu.memory_space<vmem>>, vector<2x16xf32>,
    %c0_i32_8 = arith.constant 0 : i32
    %10 = arith.cmpi eq, %arg1, %c0_i32_8 : i32
    %11 = arith.extui %10 : i1 to i32
    %c0_i32_9 = arith.constant 0 : i32
    %12 = arith.cmpi ne, %11, %c0_i32_9 : i32
    scf.if %12 {
      %c0_10 = arith.constant 0 : index
      %c0_11 = arith.constant 0 : index
      %13 = vector.load %arg4[%c0_10, %c0_11] : memref<24x16xf32, #tpu.memory_space<vmem>>, vector<1x16xf32>
      %c1 = arith.constant 1 : index
      %c0_12 = arith.constant 0 : index
      %14 = vector.load %arg4[%c1, %c0_12] : memref<24x16xf32, #tpu.memory_space<vmem>>, vector<1x6xf32>
      %c8 = arith.constant 8 : index
      %c0_13 = arith.constant 0 : index
      %15 = vector.load %arg4[%c8, %c0_13] : memref<24x16xf32, #tpu.memory_space<vmem>>, vector<16x6xf32>
      %c0_14 = arith.constant 0 : index
      %c0_15 = arith.constant 0 : index
      %16 = vector.load %arg6[%c0_14, %c0_15] : memref<2x16xf32, #tpu.memory_space<vmem>>, vector<2x16xf32>
      %17 = vector.broadcast %13 : vector<1x16xf32> to vector<2x16xf32>
      %18 = arith.addf %16, %17 : vector<2x16xf32>
      %cst_16 = arith.constant 0.000000e+00 : f32
      %19 = vector.broadcast %cst_16 : f32 to vector<2x16xf32>
      %20 = arith.maximumf %18, %19 : vector<2x16xf32>
      %cst_17 = arith.constant dense<0.000000e+00> : vector<2x6xf32>
      %21 = tpu.matmul %20, %15, %cst_17 {dimension_numbers = #tpu.dot_dimension_numbers<[1], [0], [0], [1], [0, 0, 1, 1], [], []>} : vector<2x16xf32>, vector<16x6xf32>, vector<2x6xf32> -> vector<2x6xf32>
      %22 = vector.broadcast %14 : vector<1x6xf32> to vector<2x6xf32>
      %23 = arith.addf %21, %22 : vector<2x6xf32>
      %cst_18 = arith.constant dense<0xFF800000> : vector<2xf32>
      %24 = vector.multi_reduction <maximumf>, %23, %cst_18 [1] : vector<2x6xf32> to vector<2xf32>
      %25 = vector.shape_cast %24 : vector<2xf32> to vector<2x1xf32>
      %26 = vector.broadcast %25 : vector<2x1xf32> to vector<2x6xf32>
      %27 = arith.subf %23, %26 : vector<2x6xf32>
      %28 = math.exp %27 : vector<2x6xf32>
      %cst_19 = arith.constant dense<0.000000e+00> : vector<2xf32>
      %29 = vector.multi_reduction <add>, %28, %cst_19 [1] : vector<2x6xf32> to vector<2xf32>
      %30 = vector.shape_cast %29 : vector<2xf32> to vector<2x1xf32>
      %31 = math.log %30 : vector<2x1xf32>
      %32 = vector.broadcast %31 : vector<2x1xf32> to vector<2x6xf32>
      %33 = arith.subf %27, %32 : vector<2x6xf32>
      %c0_20 = arith.constant 0 : index
      %c0_21 = arith.constant 0 : index
      %34 = vector.load %arg5[%c0_20, %c0_21] : memref<2x6xf32, #tpu.memory_space<vmem>>, vector<2x6xf32>
      tpu.vector_store %arg5[%c0_20, %c0_21], %33 {strides = array<i32>} : memref<2x6xf32, #tpu.memory_space<vmem>>, vector<2x6xf32>,
    } else {
    }
    return
  }
  func.func @transform_0(%arg0: i32, %arg1: i32) -> (i32, i32) {
    %c0_i32 = arith.constant 0 : i32
    return %arg0, %arg1 : i32, i32
  }
  func.func @transform_1(%arg0: i32, %arg1: i32) -> (i32, i32) {
    %c0_i32 = arith.constant 0 : i32
    %c0_i32_0 = arith.constant 0 : i32
    return %c0_i32, %arg1 : i32, i32
  }
  func.func @transform_2(%arg0: i32, %arg1: i32) -> (i32, i32) {
    %c0_i32 = arith.constant 0 : i32
    %c0_i32_0 = arith.constant 0 : i32
    %c0_i32_1 = arith.constant 0 : i32
    return %c0_i32, %c0_i32_0 : i32, i32
  }
  func.func @transform_3(%arg0: i32, %arg1: i32) -> (i32, i32) {
    %c0_i32 = arith.constant 0 : i32
    %c0_i32_0 = arith.constant 0 : i32
    return %arg0, %c0_i32 : i32, i32
  }
}

</mosaic_0001>

<llo_original>
// kernel: net_head_forward.1
$region0: #{net_head_forward.1}
  #allocation0 [shape = 'u32[]', space=smem, size = 0x4, offset = 0x4, fixed_abs, tag = 'smem constant byte address 0x4 - core index']
  #allocation1 [shape = 'u32[144,128]{1,0:T(1,128)}', space=vmem, size = 0x12000, scoped, tag = 'internal scratch']
  #allocation2 [shape = 'f32[2,16]{1,0:T(2,128)}', space=vmem, size = 0x400, scoped, tag = 'scratch operand']
  %s0 = inlined_call_operand.hbm [shape: f32[2,16384], index: 0, kind: input, shape index: {}]
  %s1 = inlined_call_operand.hbm [shape: bf16[16,16384], index: 1, kind: input, shape index: {}]
  %s2 = inlined_call_operand.vmem [shape: f32[24,16], index: 2, kind: input, shape index: {}]
  %s3 = inlined_call_operand.hbm [shape: f32[2,6], index: 3, kind: output, shape index: {}]
  %s4 = sld [smem:[#allocation0]]
  $region38: #{net_head_forward.1} parent=0
    _
  %s6 = ssub.s32 1, %s4
  %s7 = scalar_select 0, %s6, %s4
  $region1: #{net_head_forward.1} parent=0
    #allocation3 [shape = 'u8[131072]{0}', space=vmem, size = 0x20000, scoped, tag = 'input window, operand 0, single buffered']
    #allocation4 [shape = 's32[1]{0}', space=sflag, size = 0x4, scoped, tag = 'scoped memory for net_head_forward.1']
    #allocation5 [shape = 's32[1]{0}', space=sflag, size = 0x4, scoped, tag = 'scoped memory for net_head_forward.1']
    #allocation6 [shape = 'u8[524288]{0}', space=vmem, size = 0x80000, scoped, tag = 'input window, operand 1, single buffered']
    #allocation7 [shape = 's32[1]{0}', space=sflag, size = 0x4, scoped, tag = 'scoped memory for net_head_forward.1']
    #allocation8 [shape = 'u8[1024]{0}', space=vmem, size = 0x400, scoped, tag = 'output window, operand 0, single buffered']
    %8 = vsyncpa [#allocation4], 0
    %9 = vsyncpa [#allocation7], 0
    %10 = vsyncpa [#allocation5], 0
    // Predicated region
    $region2: #{net_head_forward.1} parent=1 // pred_check
      _
    $region3: #{net_head_forward.1} parent=1 // pred_check_branch
      %12 = sbr.rel (0) target = $region5
    $region4: #{net_head_forward.1} parent=1 // pred_region
      %s14 = ssub.s32 4096, 4096
      %15 = vsyncadd [#allocation4], %s14
      %s17 = sshll.u32 [#allocation3], 4
      %s18 = int_to_ptr.vmem [resolvable:$true] %s17
      %20 = dma.hbm_to_vmem [thread:$0]  %s0, 4096, %s18, [#allocation4]
    $region5: #{net_head_forward.1} parent=1 // pred_fallthru
      _
    // Predicated region
    $region6: #{net_head_forward.1} parent=1 // pred_check
      _
    $region7: #{net_head_forward.1} parent=1 // pred_check_branch
      %22 = sbr.rel (0) target = $region9
    $region8: #{net_head_forward.1} parent=1 // pred_region
      %s24 = ssub.s32 16384, 16384
      %25 = vsyncadd [#allocation7], %s24
      %s26 = sshll.u32 [#allocation6], 4
      %s27 = int_to_ptr.vmem [resolvable:$true] %s26
      %32 = dma.hbm_to_vmem [thread:$0]  %s1, 16384, %s27, [#allocation7], 8192, 8192, 512
    $region9: #{net_head_forward.1} parent=1 // pred_fallthru
      _
    // Predicated region
    $region10: #{net_head_forward.1} parent=1 // pred_check
      _
    $region11: #{net_head_forward.1} parent=1 // pred_check_branch
      %34 = sbr.rel (0) target = $region13
    $region12: #{net_head_forward.1} parent=1 // pred_region
      _
    $region13: #{net_head_forward.1} parent=1 // pred_fallthru
      _
    // Predicated region
    $region14: #{net_head_forward.1} parent=1 // pred_check
      _
    $region15: #{net_head_forward.1} parent=1 // pred_check_branch
      %36 = sbr.rel (0) target = $region17
    $region16: #{net_head_forward.1} parent=1 // pred_region
      %37 = dma.done [#allocation4], 4096
    $region17: #{net_head_forward.1} parent=1 // pred_fallthru
      _
    // Predicated region
    $region18: #{net_head_forward.1} parent=1 // pred_check
      _
    $region19: #{net_head_forward.1} parent=1 // pred_check_branch
      %39 = sbr.rel (0) target = $region21
    $region20: #{net_head_forward.1} parent=1 // pred_region
      %40 = dma.done [#allocation7], 16384
    $region21: #{net_head_forward.1} parent=1 // pred_fallthru
      _
    %p42 = scmp.eq.s32.totalorder 0, 0
    // Predicated region
    $region22: #{net_head_forward.1} parent=1 // pred_check
      %p43 = pneg %p42
    $region23: #{net_head_forward.1} parent=1 // pred_check_branch
      %45 = sbr.rel (%p43) target = $region25
    $region24: #{net_head_forward.1} parent=1 // pred_region
      %vm46 = vcmask 123904
      %47 = vst.msk [vmem:[#allocation2] sm:$0x3] %vm46, 0.0
    $region25: #{net_head_forward.1} parent=1 // pred_fallthru
      _
    %v48 = vld [vmem:[#allocation3] sm:$0xff]
    %v49 = vld [vmem:[#allocation3 + $0x8] sm:$0xff]
    %v50 = vld [vmem:[#allocation3 + $0x10] sm:$0xff]
    %v51 = vld [vmem:[#allocation3 + $0x18] sm:$0xff]
    %v52 = vld [vmem:[#allocation3 + $0x20] sm:$0xff]
    %v53 = vld [vmem:[#allocation3 + $0x28] sm:$0xff]
    %v54 = vld [vmem:[#allocation3 + $0x30] sm:$0xff]
    %v55 = vld [vmem:[#allocation3 + $0x38] sm:$0xff]
    %v56 = vld [vmem:[#allocation3 + $0x40] sm:$0xff]
    %v57 = vld [vmem:[#allocation3 + $0x48] sm:$0xff]
    %v58 = vld [vmem:[#allocation3 + $0x50] sm:$0xff]
    %v59 = vld [vmem:[#allocation3 + $0x58] sm:$0xff]
    %v60 = vld [vmem:[#allocation3 + $0x60] sm:$0xff]
    %v61 = vld [vmem:[#allocation3 + $0x68] sm:$0xff]
    %v62 = vld [vmem:[#allocation3 + $0x70] sm:$0xff]
    %v63 = vld [vmem:[#allocation3 + $0x78] sm:$0xff]
    %v64 = vld [vmem:[#allocation3 + $0x80] sm:$0xff]
    %v65 = vld [vmem:[#allocation3 + $0x88] sm:$0xff]
    %v66 = vld [vmem:[#allocation3 + $0x90] sm:$0xff]
    %v67 = vld [vmem:[#allocation3 + $0x98] sm:$0xff]
    %v68 = vld [vmem:[#allocation3 + $0xa0] sm:$0xff]
    %v69 = vld [vmem:[#allocation3 + $0xa8] sm:$0xff]
    %v70 = vld [vmem:[#allocation3 + $0xb0] sm:$0xff]
    %v71 = vld [vmem:[#allocation3 + $0xb8] sm:$0xff]
    %v72 = vld [vmem:[#allocation3 + $0xc0] sm:$0xff]
    %v73 = vld [vmem:[#allocation3 + $0xc8] sm:$0xff]
    %v74 = vld [vmem:[#allocation3 + $0xd0] sm:$0xff]
    %v75 = vld [vmem:[#allocation3 + $0xd8] sm:$0xff]
    %v76 = vld [vmem:[#allocation3 + $0xe0] sm:$0xff]
    %v77 = vld [vmem:[#allocation3 + $0xe8] sm:$0xff]
    %v78 = vld [vmem:[#allocation3 + $0xf0] sm:$0xff]
    %v79 = vld [vmem:[#allocation3 + $0xf8] sm:$0xff]
    %v112 = vcombine.high %v48, %v48
    %v114 = vunpack.c.l.s4 1983009808
    %v115 = vunpack.c.0.s8 %v114
    %v116 = vlaneseq
    %v117 = vshrl.u32 %v116, 7
    %v118 = vsub.s32 %v115, %v117
    %v119 = vrot.slane %v48, %v118
    %v121 = vunpack.c.l.s4 1983009808
    %v122 = vunpack.c.0.s8 %v121
    %v123 = vlaneseq
    %v124 = vshrl.u32 %v123, 7
    %v125 = vsub.s32 %v122, %v124
    %v126 = vrot.slane %v112, %v125
    %v127 = vcombine.high %v119, %v119
    %v128 = vcombine.high %v126, %v126
    %v129 = vcombine.high %v49, %v49
    %v131 = vunpack.c.l.s4 1983009808
    %v132 = vunpack.c.0.s8 %v131
    %v133 = vlaneseq
    %v134 = vshrl.u32 %v133, 7
    %v135 = vsub.s32 %v132, %v134
    %v136 = vrot.slane %v49, %v135
    %v138 = vunpack.c.l.s4 1983009808
    %v139 = vunpack.c.0.s8 %v138
    %v140 = vlaneseq
    %v141 = vshrl.u32 %v140, 7
    %v142 = vsub.s32 %v139, %v141
    %v143 = vrot.slane %v129, %v142
    %v144 = vcombine.high %v136, %v136
    %v145 = vcombine.high %v143, %v143
    %v146 = vcombine.high %v50, %v50
    %v148 = vunpack.c.l.s4 1983009808
    %v149 = vunpack.c.0.s8 %v148
    %v150 = vlaneseq
    %v151 = vshrl.u32 %v150, 7
    %v152 = vsub.s32 %v149, %v151
    %v153 = vrot.slane %v50, %v152
    %v155 = vunpack.c.l.s4 1983009808
    %v156 = vunpack.c.0.s8 %v155
    %v157 = vlaneseq
    %v158 = vshrl.u32 %v157, 7
    %v159 = vsub.s32 %v156, %v158
    %v160 = vrot.slane %v146, %v159
    %v161 = vcombine.high %v153, %v153
    %v162 = vcombine.high %v160, %v160
    %v163 = vcombine.high %v51, %v51
    %v165 = vunpack.c.l.s4 1983009808
    %v166 = vunpack.c.0.s8 %v165
    %v167 = vlaneseq
    %v168 = vshrl.u32 %v167, 7
    %v169 = vsub.s32 %v166, %v168
    %v170 = vrot.slane %v51, %v169
    %v172 = vunpack.c.l.s4 1983009808
    %v173 = vunpack.c.0.s8 %v172
    %v174 = vlaneseq
    %v175 = vshrl.u32 %v174, 7
    %v176 = vsub.s32 %v173, %v175
    %v177 = vrot.slane %v163, %v176
    %v178 = vcombine.high %v170, %v170
    %v179 = vcombine.high %v177, %v177
    %v180 = vcombine.high %v52, %v52
    %v182 = vunpack.c.l.s4 1983009808
    %v183 = vunpack.c.0.s8 %v182
    %v184 = vlaneseq
    %v185 = vshrl.u32 %v184, 7
    %v186 = vsub.s32 %v183, %v185
    %v187 = vrot.slane %v52, %v186
    %v189 = vunpack.c.l.s4 1983009808
    %v190 = vunpack.c.0.s8 %v189
    %v191 = vlaneseq
    %v192 = vshrl.u32 %v191, 7
    %v193 = vsub.s32 %v190, %v192
    %v194 = vrot.slane %v180, %v193
    %v195 = vcombine.high %v187, %v187
    %v196 = vcombine.high %v194, %v194
    %v197 = vcombine.high %v53, %v53
    %v199 = vunpack.c.l.s4 1983009808
    %v200 = vunpack.c.0.s8 %v199
    %v201 = vlaneseq
    %v202 = vshrl.u32 %v201, 7
    %v203 = vsub.s32 %v200, %v202
    %v204 = vrot.slane %v53, %v203
    %v206 = vunpack.c.l.s4 1983009808
    %v207 = vunpack.c.0.s8 %v206
    %v208 = vlaneseq
    %v209 = vshrl.u32 %v208, 7
    %v210 = vsub.s32 %v207, %v209
    %v211 = vrot.slane %v197, %v210
    %v212 = vcombine.high %v204, %v204
    %v213 = vcombine.high %v211, %v211
    %v214 = vcombine.high %v54, %v54
    %v216 = vunpack.c.l.s4 1983009808
    %v217 = vunpack.c.0.s8 %v216
    %v218 = vlaneseq
    %v219 = vshrl.u32 %v218, 7
    %v220 = vsub.s32 %v217, %v219
    %v221 = vrot.slane %v54, %v220
    %v223 = vunpack.c.l.s4 1983009808
    %v224 = vunpack.c.0.s8 %v223
    %v225 = vlaneseq
    %v226 = vshrl.u32 %v225, 7
    %v227 = vsub.s32 %v224, %v226
    %v228 = vrot.slane %v214, %v227
    %v229 = vcombine.high %v221, %v221
    %v230 = vcombine.high %v228, %v228
    %v231 = vcombine.high %v55, %v55
    %v233 = vunpack.c.l.s4 1983009808
    %v234 = vunpack.c.0.s8 %v233
    %v235 = vlaneseq
    %v236 = vshrl.u32 %v235, 7
    %v237 = vsub.s32 %v234, %v236
    %v238 = vrot.slane %v55, %v237
    %v240 = vunpack.c.l.s4 1983009808
    %v241 = vunpack.c.0.s8 %v240
    %v242 = vlaneseq
    %v243 = vshrl.u32 %v242, 7
    %v244 = vsub.s32 %v241, %v243
    %v245 = vrot.slane %v231, %v244
    %v246 = vcombine.high %v238, %v238
    %v247 = vcombine.high %v245, %v245
    %v248 = vcombine.high %v56, %v56
    %v250 = vunpack.c.l.s4 1983009808
    %v251 = vunpack.c.0.s8 %v250
    %v252 = vlaneseq
    %v253 = vshrl.u32 %v252, 7
    %v254 = vsub.s32 %v251, %v253
    %v255 = vrot.slane %v56, %v254
    %v257 = vunpack.c.l.s4 1983009808
    %v258 = vunpack.c.0.s8 %v257
    %v259 = vlaneseq
    %v260 = vshrl.u32 %v259, 7
    %v261 = vsub.s32 %v258, %v260
    %v262 = vrot.slane %v248, %v261
    %v263 = vcombine.high %v255, %v255
    %v264 = vcombine.high %v262, %v262
    %v265 = vcombine.high %v57, %v57
    %v267 = vunpack.c.l.s4 1983009808
    %v268 = vunpack.c.0.s8 %v267
    %v269 = vlaneseq
    %v270 = vshrl.u32 %v269, 7
    %v271 = vsub.s32 %v268, %v270
    %v272 = vrot.slane %v57, %v271
    %v274 = vunpack.c.l.s4 1983009808
    %v275 = vunpack.c.0.s8 %v274
    %v276 = vlaneseq
    %v277 = vshrl.u32 %v276, 7
    %v278 = vsub.s32 %v275, %v277
    %v279 = vrot.slane %v265, %v278
    %v280 = vcombine.high %v272, %v272
    %v281 = vcombine.high %v279, %v279
    %v282 = vcombine.high %v58, %v58
    %v284 = vunpack.c.l.s4 1983009808
    %v285 = vunpack.c.0.s8 %v284
    %v286 = vlaneseq
    %v287 = vshrl.u32 %v286, 7
    %v288 = vsub.s32 %v285, %v287
    %v289 = vrot.slane %v58, %v288
    %v291 = vunpack.c.l.s4 1983009808
    %v292 = vunpack.c.0.s8 %v291
    %v293 = vlaneseq
    %v294 = vshrl.u32 %v293, 7
    %v295 = vsub.s32 %v292, %v294
    %v296 = vrot.slane %v282, %v295
    %v297 = vcombine.high %v289, %v289
    %v298 = vcombine.high %v296, %v296
    %v299 = vcombine.high %v59, %v59
    %v301 = vunpack.c.l.s4 1983009808
    %v302 = vunpack.c.0.s8 %v301
    %v303 = vlaneseq
    %v304 = vshrl.u32 %v303, 7
    %v305 = vsub.s32 %v302, %v304
    %v306 = vrot.slane %v59, %v305
    %v308 = vunpack.c.l.s4 1983009808
    %v309 = vunpack.c.0.s8 %v308
    %v310 = vlaneseq
    %v311 = vshrl.u32 %v310, 7
    %v312 = vsub.s32 %v309, %v311
    %v313 = vrot.slane %v299, %v312
    %v314 = vcombine.high %v306, %v306
    %v315 = vcombine.high %v313, %v313
    %v316 = vcombine.high %v60, %v60
    %v318 = vunpack.c.l.s4 1983009808
    %v319 = vunpack.c.0.s8 %v318
    %v320 = vlaneseq
    %v321 = vshrl.u32 %v320, 7
    %v322 = vsub.s32 %v319, %v321
    %v323 = vrot.slane %v60, %v322
    %v325 = vunpack.c.l.s4 1983009808
    %v326 = vunpack.c.0.s8 %v325
    %v327 = vlaneseq
    %v328 = vshrl.u32 %v327, 7
    %v329 = vsub.s32 %v326, %v328
    %v330 = vrot.slane %v316, %v329
    %v331 = vcombine.high %v323, %v323
    %v332 = vcombine.high %v330, %v330
    %v333 = vcombine.high %v61, %v61
    %v335 = vunpack.c.l.s4 1983009808
    %v336 = vunpack.c.0.s8 %v335
    %v337 = vlaneseq
    %v338 = vshrl.u32 %v337, 7
    %v339 = vsub.s32 %v336, %v338
    %v340 = vrot.slane %v61, %v339
    %v342 = vunpack.c.l.s4 1983009808
    %v343 = vunpack.c.0.s8 %v342
    %v344 = vlaneseq
    %v345 = vshrl.u32 %v344, 7
    %v346 = vsub.s32 %v343, %v345
    %v347 = vrot.slane %v333, %v346
    %v348 = vcombine.high %v340, %v340
    %v349 = vcombine.high %v347, %v347
    %v350 = vcombine.high %v62, %v62
    %v352 = vunpack.c.l.s4 1983009808
    %v353 = vunpack.c.0.s8 %v352
    %v354 = vlaneseq
    %v355 = vshrl.u32 %v354, 7
    %v356 = vsub.s32 %v353, %v355
    %v357 = vrot.slane %v62, %v356
    %v359 = vunpack.c.l.s4 1983009808
    %v360 = vunpack.c.0.s8 %v359
    %v361 = vlaneseq
    %v362 = vshrl.u32 %v361, 7
    %v363 = vsub.s32 %v360, %v362
    %v364 = vrot.slane %v350, %v363
    %v365 = vcombine.high %v357, %v357
    %v366 = vcombine.high %v364, %v364
    %v367 = vcombine.high %v63, %v63
    %v369 = vunpack.c.l.s4 1983009808
    %v370 = vunpack.c.0.s8 %v369
    %v371 = vlaneseq
    %v372 = vshrl.u32 %v371, 7
    %v373 = vsub.s32 %v370, %v372
    %v374 = vrot.slane %v63, %v373
    %v376 = vunpack.c.l.s4 1983009808
    %v377 = vunpack.c.0.s8 %v376
    %v378 = vlaneseq
    %v379 = vshrl.u32 %v378, 7
    %v380 = vsub.s32 %v377, %v379
    %v381 = vrot.slane %v367, %v380
    %v382 = vcombine.high %v374, %v374
    %v383 = vcombine.high %v381, %v381
    %v384 = vcombine.high %v64, %v64
    %v386 = vunpack.c.l.s4 1983009808
    %v387 = vunpack.c.0.s8 %v386
    %v388 = vlaneseq
    %v389 = vshrl.u32 %v388, 7
    %v390 = vsub.s32 %v387, %v389
    %v391 = vrot.slane %v64, %v390
    %v393 = vunpack.c.l.s4 1983009808
    %v394 = vunpack.c.0.s8 %v393
    %v395 = vlaneseq
    %v396 = vshrl.u32 %v395, 7
    %v397 = vsub.s32 %v394, %v396
    %v398 = vrot.slane %v384, %v397
    %v399 = vcombine.high %v391, %v391
    %v400 = vcombine.high %v398, %v398
    %v401 = vcombine.high %v65, %v65
    %v403 = vunpack.c.l.s4 1983009808
    %v404 = vunpack.c.0.s8 %v403
    %v405 = vlaneseq
    %v406 = vshrl.u32 %v405, 7
    %v407 = vsub.s32 %v404, %v406
    %v408 = vrot.slane %v65, %v407
    %v410 = vunpack.c.l.s4 1983009808
    %v411 = vunpack.c.0.s8 %v410
    %v412 = vlaneseq
    %v413 = vshrl.u32 %v412, 7
    %v414 = vsub.s32 %v411, %v413
    %v415 = vrot.slane %v401, %v414
    %v416 = vcombine.high %v408, %v408
    %v417 = vcombine.high %v415, %v415
    %v418 = vcombine.high %v66, %v66
    %v420 = vunpack.c.l.s4 1983009808
    %v421 = vunpack.c.0.s8 %v420
    %v422 = vlaneseq
    %v423 = vshrl.u32 %v422, 7
    %v424 = vsub.s32 %v421, %v423
    %v425 = vrot.slane %v66, %v424
    %v427 = vunpack.c.l.s4 1983009808
    %v428 = vunpack.c.0.s8 %v427
    %v429 = vlaneseq
    %v430 = vshrl.u32 %v429, 7
    %v431 = vsub.s32 %v428, %v430
    %v432 = vrot.slane %v418, %v431
    %v433 = vcombine.high %v425, %v425
    %v434 = vcombine.high %v432, %v432
    %v435 = vcombine.high %v67, %v67
    %v437 = vunpack.c.l.s4 1983009808
    %v438 = vunpack.c.0.s8 %v437
    %v439 = vlaneseq
    %v440 = vshrl.u32 %v439, 7
    %v441 = vsub.s32 %v438, %v440
    %v442 = vrot.slane %v67, %v441
    %v444 = vunpack.c.l.s4 1983009808
    %v445 = vunpack.c.0.s8 %v444
    %v446 = vlaneseq
    %v447 = vshrl.u32 %v446, 7
    %v448 = vsub.s32 %v445, %v447
    %v449 = vrot.slane %v435, %v448
    %v450 = vcombine.high %v442, %v442
    %v451 = vcombine.high %v449, %v449
    %v452 = vcombine.high %v68, %v68
    %v454 = vunpack.c.l.s4 1983009808
    %v455 = vunpack.c.0.s8 %v454
    %v456 = vlaneseq
    %v457 = vshrl.u32 %v456, 7
    %v458 = vsub.s32 %v455, %v457
    %v459 = vrot.slane %v68, %v458
    %v461 = vunpack.c.l.s4 1983009808
    %v462 = vunpack.c.0.s8 %v461
    %v463 = vlaneseq
    %v464 = vshrl.u32 %v463, 7
    %v465 = vsub.s32 %v462, %v464
    %v466 = vrot.slane %v452, %v465
    %v467 = vcombine.high %v459, %v459
    %v468 = vcombine.high %v466, %v466
    %v469 = vcombine.high %v69, %v69
    %v471 = vunpack.c.l.s4 1983009808
    %v472 = vunpack.c.0.s8 %v471
    %v473 = vlaneseq
    %v474 = vshrl.u32 %v473, 7
    %v475 = vsub.s32 %v472, %v474
    %v476 = vrot.slane %v69, %v475
    %v478 = vunpack.c.l.s4 1983009808
    %v479 = vunpack.c.0.s8 %v478
    %v480 = vlaneseq
    %v481 = vshrl.u32 %v480, 7
    %v482 = vsub.s32 %v479, %v481
    %v483 = vrot.slane %v469, %v482
    %v484 = vcombine.high %v476, %v476
    %v485 = vcombine.high %v483, %v483
    %v486 = vcombine.high %v70, %v70
    %v488 = vunpack.c.l.s4 1983009808
    %v489 = vunpack.c.0.s8 %v488
    %v490 = vlaneseq
    %v491 = vshrl.u32 %v490, 7
    %v492 = vsub.s32 %v489, %v491
    %v493 = vrot.slane %v70, %v492
    %v495 = vunpack.c.l.s4 1983009808
    %v496 = vunpack.c.0.s8 %v495
    %v497 = vlaneseq
    %v498 = vshrl.u32 %v497, 7
    %v499 = vsub.s32 %v496, %v498
    %v500 = vrot.slane %v486, %v499
    %v501 = vcombine.high %v493, %v493
    %v502 = vcombine.high %v500, %v500
    %v503 = vcombine.high %v71, %v71
    %v505 = vunpack.c.l.s4 1983009808
    %v506 = vunpack.c.0.s8 %v505
    %v507 = vlaneseq
    %v508 = vshrl.u32 %v507, 7
    %v509 = vsub.s32 %v506, %v508
    %v510 = vrot.slane %v71, %v509
    %v512 = vunpack.c.l.s4 1983009808
    %v513 = vunpack.c.0.s8 %v512
    %v514 = vlaneseq
    %v515 = vshrl.u32 %v514, 7
    %v516 = vsub.s32 %v513, %v515
    %v517 = vrot.slane %v503, %v516
    %v518 = vcombine.high %v510, %v510
    %v519 = vcombine.high %v517, %v517
    %v520 = vcombine.high %v72, %v72
    %v522 = vunpack.c.l.s4 1983009808
    %v523 = vunpack.c.0.s8 %v522
    %v524 = vlaneseq
    %v525 = vshrl.u32 %v524, 7
    %v526 = vsub.s32 %v523, %v525
    %v527 = vrot.slane %v72, %v526
    %v529 = vunpack.c.l.s4 1983009808
    %v530 = vunpack.c.0.s8 %v529
    %v531 = vlaneseq
    %v532 = vshrl.u32 %v531, 7
    %v533 = vsub.s32 %v530, %v532
    %v534 = vrot.slane %v520, %v533
    %v535 = vcombine.high %v527, %v527
    %v536 = vcombine.high %v534, %v534
    %v537 = vcombine.high %v73, %v73
    %v539 = vunpack.c.l.s4 1983009808
    %v540 = vunpack.c.0.s8 %v539
    %v541 = vlaneseq
    %v542 = vshrl.u32 %v541, 7
    %v543 = vsub.s32 %v540, %v542
    %v544 = vrot.slane %v73, %v543
    %v546 = vunpack.c.l.s4 1983009808
    %v547 = vunpack.c.0.s8 %v546
    %v548 = vlaneseq
    %v549 = vshrl.u32 %v548, 7
    %v550 = vsub.s32 %v547, %v549
    %v551 = vrot.slane %v537, %v550
    %v552 = vcombine.high %v544, %v544
    %v553 = vcombine.high %v551, %v551
    %v554 = vcombine.high %v74, %v74
    %v556 = vunpack.c.l.s4 1983009808
    %v557 = vunpack.c.0.s8 %v556
    %v558 = vlaneseq
    %v559 = vshrl.u32 %v558, 7
    %v560 = vsub.s32 %v557, %v559
    %v561 = vrot.slane %v74, %v560
    %v563 = vunpack.c.l.s4 1983009808
    %v564 = vunpack.c.0.s8 %v563
    %v565 = vlaneseq
    %v566 = vshrl.u32 %v565, 7
    %v567 = vsub.s32 %v564, %v566
    %v568 = vrot.slane %v554, %v567
    %v569 = vcombine.high %v561, %v561
    %v570 = vcombine.high %v568, %v568
    %v571 = vcombine.high %v75, %v75
    %v573 = vunpack.c.l.s4 1983009808
    %v574 = vunpack.c.0.s8 %v573
    %v575 = vlaneseq
    %v576 = vshrl.u32 %v575, 7
    %v577 = vsub.s32 %v574, %v576
    %v578 = vrot.slane %v75, %v577
    %v580 = vunpack.c.l.s4 1983009808
    %v581 = vunpack.c.0.s8 %v580
    %v582 = vlaneseq
    %v583 = vshrl.u32 %v582, 7
    %v584 = vsub.s32 %v581, %v583
    %v585 = vrot.slane %v571, %v584
    %v586 = vcombine.high %v578, %v578
    %v587 = vcombine.high %v585, %v585
    %v588 = vcombine.high %v76, %v76
    %v590 = vunpack.c.l.s4 1983009808
    %v591 = vunpack.c.0.s8 %v590
    %v592 = vlaneseq
    %v593 = vshrl.u32 %v592, 7
    %v594 = vsub.s32 %v591, %v593
    %v595 = vrot.slane %v76, %v594
    %v597 = vunpack.c.l.s4 1983009808
    %v598 = vunpack.c.0.s8 %v597
    %v599 = vlaneseq
    %v600 = vshrl.u32 %v599, 7
    %v601 = vsub.s32 %v598, %v600
    %v602 = vrot.slane %v588, %v601
    %v603 = vcombine.high %v595, %v595
    %v604 = vcombine.high %v602, %v602
    %v605 = vcombine.high %v77, %v77
    %v607 = vunpack.c.l.s4 1983009808
    %v608 = vunpack.c.0.s8 %v607
    %v609 = vlaneseq
    %v610 = vshrl.u32 %v609, 7
    %v611 = vsub.s32 %v608, %v610
    %v612 = vrot.slane %v77, %v611
    %v614 = vunpack.c.l.s4 1983009808
    %v615 = vunpack.c.0.s8 %v614
    %v616 = vlaneseq
    %v617 = vshrl.u32 %v616, 7
    %v618 = vsub.s32 %v615, %v617
    %v619 = vrot.slane %v605, %v618
    %v620 = vcombine.high %v612, %v612
    %v621 = vcombine.high %v619, %v619
    %v622 = vcombine.high %v78, %v78
    %v624 = vunpack.c.l.s4 1983009808
    %v625 = vunpack.c.0.s8 %v624
    %v626 = vlaneseq
    %v627 = vshrl.u32 %v626, 7
    %v628 = vsub.s32 %v625, %v627
    %v629 = vrot.slane %v78, %v628
    %v631 = vunpack.c.l.s4 1983009808
    %v632 = vunpack.c.0.s8 %v631
    %v633 = vlaneseq
    %v634 = vshrl.u32 %v633, 7
    %v635 = vsub.s32 %v632, %v634
    %v636 = vrot.slane %v622, %v635
    %v637 = vcombine.high %v629, %v629
    %v638 = vcombine.high %v636, %v636
    %v639 = vcombine.high %v79, %v79
    %v641 = vunpack.c.l.s4 1983009808
    %v642 = vunpack.c.0.s8 %v641
    %v643 = vlaneseq
    %v644 = vshrl.u32 %v643, 7
    %v645 = vsub.s32 %v642, %v644
    %v646 = vrot.slane %v79, %v645
    %v648 = vunpack.c.l.s4 1983009808
    %v649 = vunpack.c.0.s8 %v648
    %v650 = vlaneseq
    %v651 = vshrl.u32 %v650, 7
    %v652 = vsub.s32 %v649, %v651
    %v653 = vrot.slane %v639, %v652
    %v654 = vcombine.high %v646, %v646
    %v655 = vcombine.high %v653, %v653
    %v784 = vpack.c.bf16 %v119, %v119
    %v785 = vpack.c.bf16 %v127, %v127
    %v786 = vpack.c.bf16 %v126, %v126
    %v787 = vpack.c.bf16 %v128, %v128
    %v788 = vpack.c.bf16 %v136, %v136
    %v789 = vpack.c.bf16 %v144, %v144
    %v790 = vpack.c.bf16 %v143, %v143
    %v791 = vpack.c.bf16 %v145, %v145
    %v792 = vpack.c.bf16 %v153, %v153
    %v793 = vpack.c.bf16 %v161, %v161
    %v794 = vpack.c.bf16 %v160, %v160
    %v795 = vpack.c.bf16 %v162, %v162
    %v796 = vpack.c.bf16 %v170, %v170
    %v797 = vpack.c.bf16 %v178, %v178
    %v798 = vpack.c.bf16 %v177, %v177
    %v799 = vpack.c.bf16 %v179, %v179
    %v800 = vpack.c.bf16 %v187, %v187
    %v801 = vpack.c.bf16 %v195, %v195
    %v802 = vpack.c.bf16 %v194, %v194
    %v803 = vpack.c.bf16 %v196, %v196
    %v804 = vpack.c.bf16 %v204, %v204
    %v805 = vpack.c.bf16 %v212, %v212
    %v806 = vpack.c.bf16 %v211, %v211
    %v807 = vpack.c.bf16 %v213, %v213
    %v808 = vpack.c.bf16 %v221, %v221
    %v809 = vpack.c.bf16 %v229, %v229
    %v810 = vpack.c.bf16 %v228, %v228
    %v811 = vpack.c.bf16 %v230, %v230
    %v812 = vpack.c.bf16 %v238, %v238
    %v813 = vpack.c.bf16 %v246, %v246
    %v814 = vpack.c.bf16 %v245, %v245
    %v815 = vpack.c.bf16 %v247, %v247
    %v816 = vpack.c.bf16 %v255, %v255
    %v817 = vpack.c.bf16 %v263, %v263
    %v818 = vpack.c.bf16 %v262, %v262
    %v819 = vpack.c.bf16 %v264, %v264
    %v820 = vpack.c.bf16 %v272, %v272
    %v821 = vpack.c.bf16 %v280, %v280
    %v822 = vpack.c.bf16 %v279, %v279
    %v823 = vpack.c.bf16 %v281, %v281
    %v824 = vpack.c.bf16 %v289, %v289
    %v825 = vpack.c.bf16 %v297, %v297
    %v826 = vpack.c.bf16 %v296, %v296
    %v827 = vpack.c.bf16 %v298, %v298
    %v828 = vpack.c.bf16 %v306, %v306
    %v829 = vpack.c.bf16 %v314, %v314
    %v830 = vpack.c.bf16 %v313, %v313
    %v831 = vpack.c.bf16 %v315, %v315
    %v832 = vpack.c.bf16 %v323, %v323
    %v833 = vpack.c.bf16 %v331, %v331
    %v834 = vpack.c.bf16 %v330, %v330
    %v835 = vpack.c.bf16 %v332, %v332
    %v836 = vpack.c.bf16 %v340, %v340
    %v837 = vpack.c.bf16 %v348, %v348
    %v838 = vpack.c.bf16 %v347, %v347
    %v839 = vpack.c.bf16 %v349, %v349
    %v840 = vpack.c.bf16 %v357, %v357
    %v841 = vpack.c.bf16 %v365, %v365
    %v842 = vpack.c.bf16 %v364, %v364
    %v843 = vpack.c.bf16 %v366, %v366
    %v844 = vpack.c.bf16 %v374, %v374
    %v845 = vpack.c.bf16 %v382, %v382
    %v846 = vpack.c.bf16 %v381, %v381
    %v847 = vpack.c.bf16 %v383, %v383
    %v848 = vpack.c.bf16 %v391, %v391
    %v849 = vpack.c.bf16 %v399, %v399
    %v850 = vpack.c.bf16 %v398, %v398
    %v851 = vpack.c.bf16 %v400, %v400
    %v852 = vpack.c.bf16 %v408, %v408
    %v853 = vpack.c.bf16 %v416, %v416
    %v854 = vpack.c.bf16 %v415, %v415
    %v855 = vpack.c.bf16 %v417, %v417
    %v856 = vpack.c.bf16 %v425, %v425
    %v857 = vpack.c.bf16 %v433, %v433
    %v858 = vpack.c.bf16 %v432, %v432
    %v859 = vpack.c.bf16 %v434, %v434
    %v860 = vpack.c.bf16 %v442, %v442
    %v861 = vpack.c.bf16 %v450, %v450
    %v862 = vpack.c.bf16 %v449, %v449
    %v863 = vpack.c.bf16 %v451, %v451
    %v864 = vpack.c.bf16 %v459, %v459
    %v865 = vpack.c.bf16 %v467, %v467
    %v866 = vpack.c.bf16 %v466, %v466
    %v867 = vpack.c.bf16 %v468, %v468
    %v868 = vpack.c.bf16 %v476, %v476
    %v869 = vpack.c.bf16 %v484, %v484
    %v870 = vpack.c.bf16 %v483, %v483
    %v871 = vpack.c.bf16 %v485, %v485
    %v872 = vpack.c.bf16 %v493, %v493
    %v873 = vpack.c.bf16 %v501, %v501
    %v874 = vpack.c.bf16 %v500, %v500
    %v875 = vpack.c.bf16 %v502, %v502
    %v876 = vpack.c.bf16 %v510, %v510
    %v877 = vpack.c.bf16 %v518, %v518
    %v878 = vpack.c.bf16 %v517, %v517
    %v879 = vpack.c.bf16 %v519, %v519
    %v880 = vpack.c.bf16 %v527, %v527
    %v881 = vpack.c.bf16 %v535, %v535
    %v882 = vpack.c.bf16 %v534, %v534
    %v883 = vpack.c.bf16 %v536, %v536
    %v884 = vpack.c.bf16 %v544, %v544
    %v885 = vpack.c.bf16 %v552, %v552
    %v886 = vpack.c.bf16 %v551, %v551
    %v887 = vpack.c.bf16 %v553, %v553
    %v888 = vpack.c.bf16 %v561, %v561
    %v889 = vpack.c.bf16 %v569, %v569
    %v890 = vpack.c.bf16 %v568, %v568
    %v891 = vpack.c.bf16 %v570, %v570
    %v892 = vpack.c.bf16 %v578, %v578
    %v893 = vpack.c.bf16 %v586, %v586
    %v894 = vpack.c.bf16 %v585, %v585
    %v895 = vpack.c.bf16 %v587, %v587
    %v896 = vpack.c.bf16 %v595, %v595
    %v897 = vpack.c.bf16 %v603, %v603
    %v898 = vpack.c.bf16 %v602, %v602
    %v899 = vpack.c.bf16 %v604, %v604
    %v900 = vpack.c.bf16 %v612, %v612
    %v901 = vpack.c.bf16 %v620, %v620
    %v902 = vpack.c.bf16 %v619, %v619
    %v903 = vpack.c.bf16 %v621, %v621
    %v904 = vpack.c.bf16 %v629, %v629
    %v905 = vpack.c.bf16 %v637, %v637
    %v906 = vpack.c.bf16 %v636, %v636
    %v907 = vpack.c.bf16 %v638, %v638
    %v908 = vpack.c.bf16 %v646, %v646
    %v909 = vpack.c.bf16 %v654, %v654
    %v910 = vpack.c.bf16 %v653, %v653
    %v911 = vpack.c.bf16 %v655, %v655
    %v912 = vld [vmem:[#allocation2] sm:$0x3]
    %v913 = vld [vmem:[#allocation6] sm:$0xff]
    %v914 = vld [vmem:[#allocation6 + $0x8] sm:$0xff]
    %v915 = vld [vmem:[#allocation6 + $0x10] sm:$0xff]
    %v916 = vld [vmem:[#allocation6 + $0x18] sm:$0xff]
    %v917 = vld [vmem:[#allocation6 + $0x20] sm:$0xff]
    %v918 = vld [vmem:[#allocation6 + $0x28] sm:$0xff]
    %v919 = vld [vmem:[#allocation6 + $0x30] sm:$0xff]
    %v920 = vld [vmem:[#allocation6 + $0x38] sm:$0xff]
    %v921 = vld [vmem:[#allocation6 + $0x40] sm:$0xff]
    %v922 = vld [vmem:[#allocation6 + $0x48] sm:$0xff]
    %v923 = vld [vmem:[#allocation6 + $0x50] sm:$0xff]
    %v924 = vld [vmem:[#allocation6 + $0x58] sm:$0xff]
    %v925 = vld [vmem:[#allocation6 + $0x60] sm:$0xff]
    %v926 = vld [vmem:[#allocation6 + $0x68] sm:$0xff]
    %v927 = vld [vmem:[#allocation6 + $0x70] sm:$0xff]
    %v928 = vld [vmem:[#allocation6 + $0x78] sm:$0xff]
    %v929 = vld [vmem:[#allocation6 + $0x80] sm:$0xff]
    %v930 = vld [vmem:[#allocation6 + $0x88] sm:$0xff]
    %v931 = vld [vmem:[#allocation6 + $0x90] sm:$0xff]
    %v932 = vld [vmem:[#allocation6 + $0x98] sm:$0xff]
    %v933 = vld [vmem:[#allocation6 + $0xa0] sm:$0xff]
    %v934 = vld [vmem:[#allocation6 + $0xa8] sm:$0xff]
    %v935 = vld [vmem:[#allocation6 + $0xb0] sm:$0xff]
    %v936 = vld [vmem:[#allocation6 + $0xb8] sm:$0xff]
    %v937 = vld [vmem:[#allocation6 + $0xc0] sm:$0xff]
    %v938 = vld [vmem:[#allocation6 + $0xc8] sm:$0xff]
    %v939 = vld [vmem:[#allocation6 + $0xd0] sm:$0xff]
    %v940 = vld [vmem:[#allocation6 + $0xd8] sm:$0xff]
    %v941 = vld [vmem:[#allocation6 + $0xe0] sm:$0xff]
    %v942 = vld [vmem:[#allocation6 + $0xe8] sm:$0xff]
    %v943 = vld [vmem:[#allocation6 + $0xf0] sm:$0xff]
    %v944 = vld [vmem:[#allocation6 + $0xf8] sm:$0xff]
    %v945 = vld [vmem:[#allocation6 + $0x100] sm:$0xff]
    %v946 = vld [vmem:[#allocation6 + $0x108] sm:$0xff]
    %v947 = vld [vmem:[#allocation6 + $0x110] sm:$0xff]
    %v948 = vld [vmem:[#allocation6 + $0x118] sm:$0xff]
    %v949 = vld [vmem:[#allocation6 + $0x120] sm:$0xff]
    %v950 = vld [vmem:[#allocation6 + $0x128] sm:$0xff]
    %v951 = vld [vmem:[#allocation6 + $0x130] sm:$0xff]
    %v952 = vld [vmem:[#allocation6 + $0x138] sm:$0xff]
    %v953 = vld [vmem:[#allocation6 + $0x140] sm:$0xff]
    %v954 = vld [vmem:[#allocation6 + $0x148] sm:$0xff]
    %v955 = vld [vmem:[#allocation6 + $0x150] sm:$0xff]
    %v956 = vld [vmem:[#allocation6 + $0x158] sm:$0xff]
    %v957 = vld [vmem:[#allocation6 + $0x160] sm:$0xff]
    %v958 = vld [vmem:[#allocation6 + $0x168] sm:$0xff]
    %v959 = vld [vmem:[#allocation6 + $0x170] sm:$0xff]
    %v960 = vld [vmem:[#allocation6 + $0x178] sm:$0xff]
    %v961 = vld [vmem:[#allocation6 + $0x180] sm:$0xff]
    %v962 = vld [vmem:[#allocation6 + $0x188] sm:$0xff]
    %v963 = vld [vmem:[#allocation6 + $0x190] sm:$0xff]
    %v964 = vld [vmem:[#allocation6 + $0x198] sm:$0xff]
    %v965 = vld [vmem:[#allocation6 + $0x1a0] sm:$0xff]
    %v966 = vld [vmem:[#allocation6 + $0x1a8] sm:$0xff]
    %v967 = vld [vmem:[#allocation6 + $0x1b0] sm:$0xff]
    %v968 = vld [vmem:[#allocation6 + $0x1b8] sm:$0xff]
    %v969 = vld [vmem:[#allocation6 + $0x1c0] sm:$0xff]
    %v970 = vld [vmem:[#allocation6 + $0x1c8] sm:$0xff]
    %v971 = vld [vmem:[#allocation6 + $0x1d0] sm:$0xff]
    %v972 = vld [vmem:[#allocation6 + $0x1d8] sm:$0xff]
    %v973 = vld [vmem:[#allocation6 + $0x1e0] sm:$0xff]
    %v974 = vld [vmem:[#allocation6 + $0x1e8] sm:$0xff]
    %v975 = vld [vmem:[#allocation6 + $0x1f0] sm:$0xff]
    %v976 = vld [vmem:[#allocation6 + $0x1f8] sm:$0xff]
    %v977 = vld [vmem:[#allocation6 + $0x200] sm:$0xff]
    %v978 = vld [vmem:[#allocation6 + $0x208] sm:$0xff]
    %v979 = vld [vmem:[#allocation6 + $0x210] sm:$0xff]
    %v980 = vld [vmem:[#allocation6 + $0x218] sm:$0xff]
    %v981 = vld [vmem:[#allocation6 + $0x220] sm:$0xff]
    %v982 = vld [vmem:[#allocation6 + $0x228] sm:$0xff]
    %v983 = vld [vmem:[#allocation6 + $0x230] sm:$0xff]
    %v984 = vld [vmem:[#allocation6 + $0x238] sm:$0xff]
    %v985 = vld [vmem:[#allocation6 + $0x240] sm:$0xff]
    %v986 = vld [vmem:[#allocation6 + $0x248] sm:$0xff]
    %v987 = vld [vmem:[#allocation6 + $0x250] sm:$0xff]
    %v988 = vld [vmem:[#allocation6 + $0x258] sm:$0xff]
    %v989 = vld [vmem:[#allocation6 + $0x260] sm:$0xff]
    %v990 = vld [vmem:[#allocation6 + $0x268] sm:$0xff]
    %v991 = vld [vmem:[#allocation6 + $0x270] sm:$0xff]
    %v992 = vld [vmem:[#allocation6 + $0x278] sm:$0xff]
    %v993 = vld [vmem:[#allocation6 + $0x280] sm:$0xff]
    %v994 = vld [vmem:[#allocation6 + $0x288] sm:$0xff]
    %v995 = vld [vmem:[#allocation6 + $0x290] sm:$0xff]
    %v996 = vld [vmem:[#allocation6 + $0x298] sm:$0xff]
    %v997 = vld [vmem:[#allocation6 + $0x2a0] sm:$0xff]
    %v998 = vld [vmem:[#allocation6 + $0x2a8] sm:$0xff]
    %v999 = vld [vmem:[#allocation6 + $0x2b0] sm:$0xff]
    %v1000 = vld [vmem:[#allocation6 + $0x2b8] sm:$0xff]
    %v1001 = vld [vmem:[#allocation6 + $0x2c0] sm:$0xff]
    %v1002 = vld [vmem:[#allocation6 + $0x2c8] sm:$0xff]
    %v1003 = vld [vmem:[#allocation6 + $0x2d0] sm:$0xff]
    %v1004 = vld [vmem:[#allocation6 + $0x2d8] sm:$0xff]
    %v1005 = vld [vmem:[#allocation6 + $0x2e0] sm:$0xff]
    %v1006 = vld [vmem:[#allocation6 + $0x2e8] sm:$0xff]
    %v1007 = vld [vmem:[#allocation6 + $0x2f0] sm:$0xff]
    %v1008 = vld [vmem:[#allocation6 + $0x2f8] sm:$0xff]
    %v1009 = vld [vmem:[#allocation6 + $0x300] sm:$0xff]
    %v1010 = vld [vmem:[#allocation6 + $0x308] sm:$0xff]
    %v1011 = vld [vmem:[#allocation6 + $0x310] sm:$0xff]
    %v1012 = vld [vmem:[#allocation6 + $0x318] sm:$0xff]
    %v1013 = vld [vmem:[#allocation6 + $0x320] sm:$0xff]
    %v1014 = vld [vmem:[#allocation6 + $0x328] sm:$0xff]
    %v1015 = vld [vmem:[#allocation6 + $0x330] sm:$0xff]
    %v1016 = vld [vmem:[#allocation6 + $0x338] sm:$0xff]
    %v1017 = vld [vmem:[#allocation6 + $0x340] sm:$0xff]
    %v1018 = vld [vmem:[#allocation6 + $0x348] sm:$0xff]
    %v1019 = vld [vmem:[#allocation6 + $0x350] sm:$0xff]
    %v1020 = vld [vmem:[#allocation6 + $0x358] sm:$0xff]
    %v1021 = vld [vmem:[#allocation6 + $0x360] sm:$0xff]
    %v1022 = vld [vmem:[#allocation6 + $0x368] sm:$0xff]
    %v1023 = vld [vmem:[#allocation6 + $0x370] sm:$0xff]
    %v1024 = vld [vmem:[#allocation6 + $0x378] sm:$0xff]
    %v1025 = vld [vmem:[#allocation6 + $0x380] sm:$0xff]
    %v1026 = vld [vmem:[#allocation6 + $0x388] sm:$0xff]
    %v1027 = vld [vmem:[#allocation6 + $0x390] sm:$0xff]
    %v1028 = vld [vmem:[#allocation6 + $0x398] sm:$0xff]
    %v1029 = vld [vmem:[#allocation6 + $0x3a0] sm:$0xff]
    %v1030 = vld [vmem:[#allocation6 + $0x3a8] sm:$0xff]
    %v1031 = vld [vmem:[#allocation6 + $0x3b0] sm:$0xff]
    %v1032 = vld [vmem:[#allocation6 + $0x3b8] sm:$0xff]
    %v1033 = vld [vmem:[#allocation6 + $0x3c0] sm:$0xff]
    %v1034 = vld [vmem:[#allocation6 + $0x3c8] sm:$0xff]
    %v1035 = vld [vmem:[#allocation6 + $0x3d0] sm:$0xff]
    %v1036 = vld [vmem:[#allocation6 + $0x3d8] sm:$0xff]
    %v1037 = vld [vmem:[#allocation6 + $0x3e0] sm:$0xff]
    %v1038 = vld [vmem:[#allocation6 + $0x3e8] sm:$0xff]
    %v1039 = vld [vmem:[#allocation6 + $0x3f0] sm:$0xff]
    %v1040 = vld [vmem:[#allocation6 + $0x3f8] sm:$0xff]
    %v1169 = vunpack.c.l.b16 %v913
    %v1170 = vunpack.c.h.b16 %v913
    %v1171 = vunpack.c.l.b16 %v914
    %v1172 = vunpack.c.h.b16 %v914
    %v1173 = vunpack.c.l.b16 %v915
    %v1174 = vunpack.c.h.b16 %v915
    %v1175 = vunpack.c.l.b16 %v916
    %v1176 = vunpack.c.h.b16 %v916
    %v1177 = vunpack.c.l.b16 %v917
    %v1178 = vunpack.c.h.b16 %v917
    %v1179 = vunpack.c.l.b16 %v918
    %v1180 = vunpack.c.h.b16 %v918
    %v1181 = vunpack.c.l.b16 %v919
    %v1182 = vunpack.c.h.b16 %v919
    %v1183 = vunpack.c.l.b16 %v920
    %v1184 = vunpack.c.h.b16 %v920
    %v1185 = vunpack.c.l.b16 %v921
    %v1186 = vunpack.c.h.b16 %v921
    %v1187 = vunpack.c.l.b16 %v922
    %v1188 = vunpack.c.h.b16 %v922
    %v1189 = vunpack.c.l.b16 %v923
    %v1190 = vunpack.c.h.b16 %v923
    %v1191 = vunpack.c.l.b16 %v924
    %v1192 = vunpack.c.h.b16 %v924
    %v1193 = vunpack.c.l.b16 %v925
    %v1194 = vunpack.c.h.b16 %v925
    %v1195 = vunpack.c.l.b16 %v926
    %v1196 = vunpack.c.h.b16 %v926
    %v1197 = vunpack.c.l.b16 %v927
    %v1198 = vunpack.c.h.b16 %v927
    %v1199 = vunpack.c.l.b16 %v928
    %v1200 = vunpack.c.h.b16 %v928
    %v1201 = vunpack.c.l.b16 %v929
    %v1202 = vunpack.c.h.b16 %v929
    %v1203 = vunpack.c.l.b16 %v930
    %v1204 = vunpack.c.h.b16 %v930
    %v1205 = vunpack.c.l.b16 %v931
    %v1206 = vunpack.c.h.b16 %v931
    %v1207 = vunpack.c.l.b16 %v932
    %v1208 = vunpack.c.h.b16 %v932
    %v1209 = vunpack.c.l.b16 %v933
    %v1210 = vunpack.c.h.b16 %v933
    %v1211 = vunpack.c.l.b16 %v934
    %v1212 = vunpack.c.h.b16 %v934
    %v1213 = vunpack.c.l.b16 %v935
    %v1214 = vunpack.c.h.b16 %v935
    %v1215 = vunpack.c.l.b16 %v936
    %v1216 = vunpack.c.h.b16 %v936
    %v1217 = vunpack.c.l.b16 %v937
    %v1218 = vunpack.c.h.b16 %v937
    %v1219 = vunpack.c.l.b16 %v938
    %v1220 = vunpack.c.h.b16 %v938
    %v1221 = vunpack.c.l.b16 %v939
    %v1222 = vunpack.c.h.b16 %v939
    %v1223 = vunpack.c.l.b16 %v940
    %v1224 = vunpack.c.h.b16 %v940
    %v1225 = vunpack.c.l.b16 %v941
    %v1226 = vunpack.c.h.b16 %v941
    %v1227 = vunpack.c.l.b16 %v942
    %v1228 = vunpack.c.h.b16 %v942
    %v1229 = vunpack.c.l.b16 %v943
    %v1230 = vunpack.c.h.b16 %v943
    %v1231 = vunpack.c.l.b16 %v944
    %v1232 = vunpack.c.h.b16 %v944
    %v1233 = vunpack.c.l.b16 %v945
    %v1234 = vunpack.c.h.b16 %v945
    %v1235 = vunpack.c.l.b16 %v946
    %v1236 = vunpack.c.h.b16 %v946
    %v1237 = vunpack.c.l.b16 %v947
    %v1238 = vunpack.c.h.b16 %v947
    %v1239 = vunpack.c.l.b16 %v948
    %v1240 = vunpack.c.h.b16 %v948
    %v1241 = vunpack.c.l.b16 %v949
    %v1242 = vunpack.c.h.b16 %v949
    %v1243 = vunpack.c.l.b16 %v950
    %v1244 = vunpack.c.h.b16 %v950
    %v1245 = vunpack.c.l.b16 %v951
    %v1246 = vunpack.c.h.b16 %v951
    %v1247 = vunpack.c.l.b16 %v952
    %v1248 = vunpack.c.h.b16 %v952
    %v1249 = vunpack.c.l.b16 %v953
    %v1250 = vunpack.c.h.b16 %v953
    %v1251 = vunpack.c.l.b16 %v954
    %v1252 = vunpack.c.h.b16 %v954
    %v1253 = vunpack.c.l.b16 %v955
    %v1254 = vunpack.c.h.b16 %v955
    %v1255 = vunpack.c.l.b16 %v956
    %v1256 = vunpack.c.h.b16 %v956
    %v1257 = vunpack.c.l.b16 %v957
    %v1258 = vunpack.c.h.b16 %v957
    %v1259 = vunpack.c.l.b16 %v958
    %v1260 = vunpack.c.h.b16 %v958
    %v1261 = vunpack.c.l.b16 %v959
    %v1262 = vunpack.c.h.b16 %v959
    %v1263 = vunpack.c.l.b16 %v960
    %v1264 = vunpack.c.h.b16 %v960
    %v1265 = vunpack.c.l.b16 %v961
    %v1266 = vunpack.c.h.b16 %v961
    %v1267 = vunpack.c.l.b16 %v962
    %v1268 = vunpack.c.h.b16 %v962
    %v1269 = vunpack.c.l.b16 %v963
    %v1270 = vunpack.c.h.b16 %v963
    %v1271 = vunpack.c.l.b16 %v964
    %v1272 = vunpack.c.h.b16 %v964
    %v1273 = vunpack.c.l.b16 %v965
    %v1274 = vunpack.c.h.b16 %v965
    %v1275 = vunpack.c.l.b16 %v966
    %v1276 = vunpack.c.h.b16 %v966
    %v1277 = vunpack.c.l.b16 %v967
    %v1278 = vunpack.c.h.b16 %v967
    %v1279 = vunpack.c.l.b16 %v968
    %v1280 = vunpack.c.h.b16 %v968
    %v1281 = vunpack.c.l.b16 %v969
    %v1282 = vunpack.c.h.b16 %v969
    %v1283 = vunpack.c.l.b16 %v970
    %v1284 = vunpack.c.h.b16 %v970
    %v1285 = vunpack.c.l.b16 %v971
    %v1286 = vunpack.c.h.b16 %v971
    %v1287 = vunpack.c.l.b16 %v972
    %v1288 = vunpack.c.h.b16 %v972
    %v1289 = vunpack.c.l.b16 %v973
    %v1290 = vunpack.c.h.b16 %v973
    %v1291 = vunpack.c.l.b16 %v974
    %v1292 = vunpack.c.h.b16 %v974
    %v1293 = vunpack.c.l.b16 %v975
    %v1294 = vunpack.c.h.b16 %v975
    %v1295 = vunpack.c.l.b16 %v976
    %v1296 = vunpack.c.h.b16 %v976
    %v1297 = vunpack.c.l.b16 %v977
    %v1298 = vunpack.c.h.b16 %v977
    %v1299 = vunpack.c.l.b16 %v978
    %v1300 = vunpack.c.h.b16 %v978
    %v1301 = vunpack.c.l.b16 %v979
    %v1302 = vunpack.c.h.b16 %v979
    %v1303 = vunpack.c.l.b16 %v980
    %v1304 = vunpack.c.h.b16 %v980
    %v1305 = vunpack.c.l.b16 %v981
    %v1306 = vunpack.c.h.b16 %v981
    %v1307 = vunpack.c.l.b16 %v982
    %v1308 = vunpack.c.h.b16 %v982
    %v1309 = vunpack.c.l.b16 %v983
    %v1310 = vunpack.c.h.b16 %v983
    %v1311 = vunpack.c.l.b16 %v984
    %v1312 = vunpack.c.h.b16 %v984
    %v1313 = vunpack.c.l.b16 %v985
    %v1314 = vunpack.c.h.b16 %v985
    %v1315 = vunpack.c.l.b16 %v986
    %v1316 = vunpack.c.h.b16 %v986
    %v1317 = vunpack.c.l.b16 %v987
    %v1318 = vunpack.c.h.b16 %v987
    %v1319 = vunpack.c.l.b16 %v988
    %v1320 = vunpack.c.h.b16 %v988
    %v1321 = vunpack.c.l.b16 %v989
    %v1322 = vunpack.c.h.b16 %v989
    %v1323 = vunpack.c.l.b16 %v990
    %v1324 = vunpack.c.h.b16 %v990
    %v1325 = vunpack.c.l.b16 %v991
    %v1326 = vunpack.c.h.b16 %v991
    %v1327 = vunpack.c.l.b16 %v992
    %v1328 = vunpack.c.h.b16 %v992
    %v1329 = vunpack.c.l.b16 %v993
    %v1330 = vunpack.c.h.b16 %v993
    %v1331 = vunpack.c.l.b16 %v994
    %v1332 = vunpack.c.h.b16 %v994
    %v1333 = vunpack.c.l.b16 %v995
    %v1334 = vunpack.c.h.b16 %v995
    %v1335 = vunpack.c.l.b16 %v996
    %v1336 = vunpack.c.h.b16 %v996
    %v1337 = vunpack.c.l.b16 %v997
    %v1338 = vunpack.c.h.b16 %v997
    %v1339 = vunpack.c.l.b16 %v998
    %v1340 = vunpack.c.h.b16 %v998
    %v1341 = vunpack.c.l.b16 %v999
    %v1342 = vunpack.c.h.b16 %v999
    %v1343 = vunpack.c.l.b16 %v1000
    %v1344 = vunpack.c.h.b16 %v1000
    %v1345 = vunpack.c.l.b16 %v1001
    %v1346 = vunpack.c.h.b16 %v1001
    %v1347 = vunpack.c.l.b16 %v1002
    %v1348 = vunpack.c.h.b16 %v1002
    %v1349 = vunpack.c.l.b16 %v1003
    %v1350 = vunpack.c.h.b16 %v1003
    %v1351 = vunpack.c.l.b16 %v1004
    %v1352 = vunpack.c.h.b16 %v1004
    %v1353 = vunpack.c.l.b16 %v1005
    %v1354 = vunpack.c.h.b16 %v1005
    %v1355 = vunpack.c.l.b16 %v1006
    %v1356 = vunpack.c.h.b16 %v1006
    %v1357 = vunpack.c.l.b16 %v1007
    %v1358 = vunpack.c.h.b16 %v1007
    %v1359 = vunpack.c.l.b16 %v1008
    %v1360 = vunpack.c.h.b16 %v1008
    %v1361 = vunpack.c.l.b16 %v1009
    %v1362 = vunpack.c.h.b16 %v1009
    %v1363 = vunpack.c.l.b16 %v1010
    %v1364 = vunpack.c.h.b16 %v1010
    %v1365 = vunpack.c.l.b16 %v1011
    %v1366 = vunpack.c.h.b16 %v1011
    %v1367 = vunpack.c.l.b16 %v1012
    %v1368 = vunpack.c.h.b16 %v1012
    %v1369 = vunpack.c.l.b16 %v1013
    %v1370 = vunpack.c.h.b16 %v1013
    %v1371 = vunpack.c.l.b16 %v1014
    %v1372 = vunpack.c.h.b16 %v1014
    %v1373 = vunpack.c.l.b16 %v1015
    %v1374 = vunpack.c.h.b16 %v1015
    %v1375 = vunpack.c.l.b16 %v1016
    %v1376 = vunpack.c.h.b16 %v1016
    %v1377 = vunpack.c.l.b16 %v1017
    %v1378 = vunpack.c.h.b16 %v1017
    %v1379 = vunpack.c.l.b16 %v1018
    %v1380 = vunpack.c.h.b16 %v1018
    %v1381 = vunpack.c.l.b16 %v1019
    %v1382 = vunpack.c.h.b16 %v1019
    %v1383 = vunpack.c.l.b16 %v1020
    %v1384 = vunpack.c.h.b16 %v1020
    %v1385 = vunpack.c.l.b16 %v1021
    %v1386 = vunpack.c.h.b16 %v1021
    %v1387 = vunpack.c.l.b16 %v1022
    %v1388 = vunpack.c.h.b16 %v1022
    %v1389 = vunpack.c.l.b16 %v1023
    %v1390 = vunpack.c.h.b16 %v1023
    %v1391 = vunpack.c.l.b16 %v1024
    %v1392 = vunpack.c.h.b16 %v1024
    %v1393 = vunpack.c.l.b16 %v1025
    %v1394 = vunpack.c.h.b16 %v1025
    %v1395 = vunpack.c.l.b16 %v1026
    %v1396 = vunpack.c.h.b16 %v1026
    %v1397 = vunpack.c.l.b16 %v1027
    %v1398 = vunpack.c.h.b16 %v1027
    %v1399 = vunpack.c.l.b16 %v1028
    %v1400 = vunpack.c.h.b16 %v1028
    %v1401 = vunpack.c.l.b16 %v1029
    %v1402 = vunpack.c.h.b16 %v1029
    %v1403 = vunpack.c.l.b16 %v1030
    %v1404 = vunpack.c.h.b16 %v1030
    %v1405 = vunpack.c.l.b16 %v1031
    %v1406 = vunpack.c.h.b16 %v1031
    %v1407 = vunpack.c.l.b16 %v1032
    %v1408 = vunpack.c.h.b16 %v1032
    %v1409 = vunpack.c.l.b16 %v1033
    %v1410 = vunpack.c.h.b16 %v1033
    %v1411 = vunpack.c.l.b16 %v1034
    %v1412 = vunpack.c.h.b16 %v1034
    %v1413 = vunpack.c.l.b16 %v1035
    %v1414 = vunpack.c.h.b16 %v1035
    %v1415 = vunpack.c.l.b16 %v1036
    %v1416 = vunpack.c.h.b16 %v1036
    %v1417 = vunpack.c.l.b16 %v1037
    %v1418 = vunpack.c.h.b16 %v1037
    %v1419 = vunpack.c.l.b16 %v1038
    %v1420 = vunpack.c.h.b16 %v1038
    %v1421 = vunpack.c.l.b16 %v1039
    %v1422 = vunpack.c.h.b16 %v1039
    %v1423 = vunpack.c.l.b16 %v1040
    %v1424 = vunpack.c.h.b16 %v1040
    %v1425 = vpack.c.b16 %v1297, %v1169
    %v1426 = vpack.c.b16 %v1298, %v1170
    %v1427 = vpack.c.b16 %v1299, %v1171
    %v1428 = vpack.c.b16 %v1300, %v1172
    %v1429 = vpack.c.b16 %v1301, %v1173
    %v1430 = vpack.c.b16 %v1302, %v1174
    %v1431 = vpack.c.b16 %v1303, %v1175
    %v1432 = vpack.c.b16 %v1304, %v1176
    %v1433 = vpack.c.b16 %v1305, %v1177
    %v1434 = vpack.c.b16 %v1306, %v1178
    %v1435 = vpack.c.b16 %v1307, %v1179
    %v1436 = vpack.c.b16 %v1308, %v1180
    %v1437 = vpack.c.b16 %v1309, %v1181
    %v1438 = vpack.c.b16 %v1310, %v1182
    %v1439 = vpack.c.b16 %v1311, %v1183
    %v1440 = vpack.c.b16 %v1312, %v1184
    %v1441 = vpack.c.b16 %v1313, %v1185
    %v1442 = vpack.c.b16 %v1314, %v1186
    %v1443 = vpack.c.b16 %v1315, %v1187
    %v1444 = vpack.c.b16 %v1316, %v1188
    %v1445 = vpack.c.b16 %v1317, %v1189
    %v1446 = vpack.c.b16 %v1318, %v1190
    %v1447 = vpack.c.b16 %v1319, %v1191
    %v1448 = vpack.c.b16 %v1320, %v1192
    %v1449 = vpack.c.b16 %v1321, %v1193
    %v1450 = vpack.c.b16 %v1322, %v1194
    %v1451 = vpack.c.b16 %v1323, %v1195
    %v1452 = vpack.c.b16 %v1324, %v1196
    %v1453 = vpack.c.b16 %v1325, %v1197
    %v1454 = vpack.c.b16 %v1326, %v1198
    %v1455 = vpack.c.b16 %v1327, %v1199
    %v1456 = vpack.c.b16 %v1328, %v1200
    %v1457 = vpack.c.b16 %v1329, %v1201
    %v1458 = vpack.c.b16 %v1330, %v1202
    %v1459 = vpack.c.b16 %v1331, %v1203
    %v1460 = vpack.c.b16 %v1332, %v1204
    %v1461 = vpack.c.b16 %v1333, %v1205
    %v1462 = vpack.c.b16 %v1334, %v1206
    %v1463 = vpack.c.b16 %v1335, %v1207
    %v1464 = vpack.c.b16 %v1336, %v1208
    %v1465 = vpack.c.b16 %v1337, %v1209
    %v1466 = vpack.c.b16 %v1338, %v1210
    %v1467 = vpack.c.b16 %v1339, %v1211
    %v1468 = vpack.c.b16 %v1340, %v1212
    %v1469 = vpack.c.b16 %v1341, %v1213
    %v1470 = vpack.c.b16 %v1342, %v1214
    %v1471 = vpack.c.b16 %v1343, %v1215
    %v1472 = vpack.c.b16 %v1344, %v1216
    %v1473 = vpack.c.b16 %v1345, %v1217
    %v1474 = vpack.c.b16 %v1346, %v1218
    %v1475 = vpack.c.b16 %v1347, %v1219
    %v1476 = vpack.c.b16 %v1348, %v1220
    %v1477 = vpack.c.b16 %v1349, %v1221
    %v1478 = vpack.c.b16 %v1350, %v1222
    %v1479 = vpack.c.b16 %v1351, %v1223
    %v1480 = vpack.c.b16 %v1352, %v1224
    %v1481 = vpack.c.b16 %v1353, %v1225
    %v1482 = vpack.c.b16 %v1354, %v1226
    %v1483 = vpack.c.b16 %v1355, %v1227
    %v1484 = vpack.c.b16 %v1356, %v1228
    %v1485 = vpack.c.b16 %v1357, %v1229
    %v1486 = vpack.c.b16 %v1358, %v1230
    %v1487 = vpack.c.b16 %v1359, %v1231
    %v1488 = vpack.c.b16 %v1360, %v1232
    %v1489 = vpack.c.b16 %v1361, %v1233
    %v1490 = vpack.c.b16 %v1362, %v1234
    %v1491 = vpack.c.b16 %v1363, %v1235
    %v1492 = vpack.c.b16 %v1364, %v1236
    %v1493 = vpack.c.b16 %v1365, %v1237
    %v1494 = vpack.c.b16 %v1366, %v1238
    %v1495 = vpack.c.b16 %v1367, %v1239
    %v1496 = vpack.c.b16 %v1368, %v1240
    %v1497 = vpack.c.b16 %v1369, %v1241
    %v1498 = vpack.c.b16 %v1370, %v1242
    %v1499 = vpack.c.b16 %v1371, %v1243
    %v1500 = vpack.c.b16 %v1372, %v1244
    %v1501 = vpack.c.b16 %v1373, %v1245
    %v1502 = vpack.c.b16 %v1374, %v1246
    %v1503 = vpack.c.b16 %v1375, %v1247
    %v1504 = vpack.c.b16 %v1376, %v1248
    %v1505 = vpack.c.b16 %v1377, %v1249
    %v1506 = vpack.c.b16 %v1378, %v1250
    %v1507 = vpack.c.b16 %v1379, %v1251
    %v1508 = vpack.c.b16 %v1380, %v1252
    %v1509 = vpack.c.b16 %v1381, %v1253
    %v1510 = vpack.c.b16 %v1382, %v1254
    %v1511 = vpack.c.b16 %v1383, %v1255
    %v1512 = vpack.c.b16 %v1384, %v1256
    %v1513 = vpack.c.b16 %v1385, %v1257
    %v1514 = vpack.c.b16 %v1386, %v1258
    %v1515 = vpack.c.b16 %v1387, %v1259
    %v1516 = vpack.c.b16 %v1388, %v1260
    %v1517 = vpack.c.b16 %v1389, %v1261
    %v1518 = vpack.c.b16 %v1390, %v1262
    %v1519 = vpack.c.b16 %v1391, %v1263
    %v1520 = vpack.c.b16 %v1392, %v1264
    %v1521 = vpack.c.b16 %v1393, %v1265
    %v1522 = vpack.c.b16 %v1394, %v1266
    %v1523 = vpack.c.b16 %v1395, %v1267
    %v1524 = vpack.c.b16 %v1396, %v1268
    %v1525 = vpack.c.b16 %v1397, %v1269
    %v1526 = vpack.c.b16 %v1398, %v1270
    %v1527 = vpack.c.b16 %v1399, %v1271
    %v1528 = vpack.c.b16 %v1400, %v1272
    %v1529 = vpack.c.b16 %v1401, %v1273
    %v1530 = vpack.c.b16 %v1402, %v1274
    %v1531 = vpack.c.b16 %v1403, %v1275
    %v1532 = vpack.c.b16 %v1404, %v1276
    %v1533 = vpack.c.b16 %v1405, %v1277
    %v1534 = vpack.c.b16 %v1406, %v1278
    %v1535 = vpack.c.b16 %v1407, %v1279
    %v1536 = vpack.c.b16 %v1408, %v1280
    %v1537 = vpack.c.b16 %v1409, %v1281
    %v1538 = vpack.c.b16 %v1410, %v1282
    %v1539 = vpack.c.b16 %v1411, %v1283
    %v1540 = vpack.c.b16 %v1412, %v1284
    %v1541 = vpack.c.b16 %v1413, %v1285
    %v1542 = vpack.c.b16 %v1414, %v1286
    %v1543 = vpack.c.b16 %v1415, %v1287
    %v1544 = vpack.c.b16 %v1416, %v1288
    %v1545 = vpack.c.b16 %v1417, %v1289
    %v1546 = vpack.c.b16 %v1418, %v1290
    %v1547 = vpack.c.b16 %v1419, %v1291
    %v1548 = vpack.c.b16 %v1420, %v1292
    %v1549 = vpack.c.b16 %v1421, %v1293
    %v1550 = vpack.c.b16 %v1422, %v1294
    %v1551 = vpack.c.b16 %v1423, %v1295
    %v1552 = vpack.c.b16 %v1424, %v1296
    %1681 = vmatprep.subr.bf16.mxu0 %v1426
    %1682 = vmatpush1.bf16.xpose.msra.mxu0 %v1425
    %1683 = vmatprep.subr.bf16.mxu0 0
    %1684 = vmatpush1.bf16.xpose.msra.mxu0 0
    %1685 = vmatprep.subr.bf16.mxu0 0
    %1686 = vmatpush1.bf16.xpose.msra.mxu0 0
    %1687 = vmatprep.subr.bf16.mxu0 0
    %1688 = vmatpush1.bf16.xpose.msra.mxu0 0
    %1689 = vmatprep.subr.bf16.mxu0 0
    %1690 = vmatpush1.bf16.xpose.msra.mxu0 0
    %1691 = vmatprep.subr.bf16.mxu0 0
    %1692 = vmatpush1.bf16.xpose.msra.mxu0 0
    %1693 = vmatprep.subr.bf16.mxu0 0
    %1694 = vmatpush1.bf16.xpose.msra.mxu0 0
    %1695 = vmatprep.subr.bf16.mxu0 0
    %1696 = vmatpush1.bf16.xpose.msra.mxu0 0
    %1697 = vmatprep.subr.bf16.mxu0 0
    %1698 = vmatpush1.bf16.xpose.msra.mxu0 0
    %1699 = vmatprep.subr.bf16.mxu0 0
    %1700 = vmatpush1.bf16.xpose.msra.mxu0 0
    %1701 = vmatprep.subr.bf16.mxu0 0
    %1702 = vmatpush1.bf16.xpose.msra.mxu0 0
    %1703 = vmatprep.subr.bf16.mxu0 0
    %1704 = vmatpush1.bf16.xpose.msra.mxu0 0
    %1705 = vmatprep.subr.bf16.mxu0 0
    %1706 = vmatpush1.bf16.xpose.msra.mxu0 0
    %1707 = vmatprep.subr.bf16.mxu0 0
    %1708 = vmatpush1.bf16.xpose.msra.mxu0 0
    %1709 = vmatprep.subr.bf16.mxu0 0
    %1710 = vmatpush1.bf16.xpose.msra.mxu0 0
    %1711 = vmatprep.subr.bf16.mxu0 0
    %1712 = vmatpush1.bf16.xpose.msra.mxu0 0
    %1713 = vmatprep.mubr.bf16.mxu0 %v785
    %1714 = vmatmul.mubr.bf16.gmra.mrb[0].mxu0 %v784
    %v1715 = vpop.f32.mrb[0].mxu0
    %v1716 = vadd.f32 0.0, %v1715
    %v1717 = vpop.f32.mrb[0].mxu0
    %v1718 = vpop.f32.mrb[0].mxu0
    %v1719 = vpop.f32.mrb[0].mxu0
    %1720 = vdwg.mxu0
    %1721 = vmatprep.subr.bf16.mxu0 %v1428
    %1722 = vmatpush1.bf16.xpose.msra.mxu0 %v1427
    %1723 = vmatprep.subr.bf16.mxu0 0
    %1724 = vmatpush1.bf16.xpose.msra.mxu0 0
    %1725 = vmatprep.subr.bf16.mxu0 0
    %1726 = vmatpush1.bf16.xpose.msra.mxu0 0
    %1727 = vmatprep.subr.bf16.mxu0 0
    %1728 = vmatpush1.bf16.xpose.msra.mxu0 0
    %1729 = vmatprep.subr.bf16.mxu0 0
    %1730 = vmatpush1.bf16.xpose.msra.mxu0 0
    %1731 = vmatprep.subr.bf16.mxu0 0
    %1732 = vmatpush1.bf16.xpose.msra.mxu0 0
    %1733 = vmatprep.subr.bf16.mxu0 0
    %1734 = vmatpush1.bf16.xpose.msra.mxu0 0
    %1735 = vmatprep.subr.bf16.mxu0 0
    %1736 = vmatpush1.bf16.xpose.msra.mxu0 0
    %1737 = vmatprep.subr.bf16.mxu0 0
    %1738 = vmatpush1.bf16.xpose.msra.mxu0 0
    %1739 = vmatprep.subr.bf16.mxu0 0
    %1740 = vmatpush1.bf16.xpose.msra.mxu0 0
    %1741 = vmatprep.subr.bf16.mxu0 0
    %1742 = vmatpush1.bf16.xpose.msra.mxu0 0
    %1743 = vmatprep.subr.bf16.mxu0 0
    %1744 = vmatpush1.bf16.xpose.msra.mxu0 0
    %1745 = vmatprep.subr.bf16.mxu0 0
    %1746 = vmatpush1.bf16.xpose.msra.mxu0 0
    %1747 = vmatprep.subr.bf16.mxu0 0
    %1748 = vmatpush1.bf16.xpose.msra.mxu0 0
    %1749 = vmatprep.subr.bf16.mxu0 0
    %1750 = vmatpush1.bf16.xpose.msra.mxu0 0
    %1751 = vmatprep.subr.bf16.mxu0 0
    %1752 = vmatpush1.bf16.xpose.msra.mxu0 0
    %1753 = vmatprep.mubr.bf16.mxu0 %v787
    %1754 = vmatmul.mubr.bf16.gmra.mrb[0].mxu0 %v786
    %v1755 = vpop.f32.mrb[0].mxu0
    %v1756 = vadd.f32 %v1716, %v1755
    %v1757 = vpop.f32.mrb[0].mxu0
    %v1758 = vpop.f32.mrb[0].mxu0
    %v1759 = vpop.f32.mrb[0].mxu0
    %1760 = vdwg.mxu0
    %1761 = vmatprep.subr.bf16.mxu0 %v1430
    %1762 = vmatpush1.bf16.xpose.msra.mxu0 %v1429
    %1763 = vmatprep.subr.bf16.mxu0 0
    %1764 = vmatpush1.bf16.xpose.msra.mxu0 0
    %1765 = vmatprep.subr.bf16.mxu0 0
    %1766 = vmatpush1.bf16.xpose.msra.mxu0 0
    %1767 = vmatprep.subr.bf16.mxu0 0
    %1768 = vmatpush1.bf16.xpose.msra.mxu0 0
    %1769 = vmatprep.subr.bf16.mxu0 0
    %1770 = vmatpush1.bf16.xpose.msra.mxu0 0
    %1771 = vmatprep.subr.bf16.mxu0 0
    %1772 = vmatpush1.bf16.xpose.msra.mxu0 0
    %1773 = vmatprep.subr.bf16.mxu0 0
    %1774 = vmatpush1.bf16.xpose.msra.mxu0 0
    %1775 = vmatprep.subr.bf16.mxu0 0
    %1776 = vmatpush1.bf16.xpose.msra.mxu0 0
    %1777 = vmatprep.subr.bf16.mxu0 0
    %1778 = vmatpush1.bf16.xpose.msra.mxu0 0
    %1779 = vmatprep.subr.bf16.mxu0 0
    %1780 = vmatpush1.bf16.xpose.msra.mxu0 0
    %1781 = vmatprep.subr.bf16.mxu0 0
    %1782 = vmatpush1.bf16.xpose.msra.mxu0 0
    %1783 = vmatprep.subr.bf16.mxu0 0
    %1784 = vmatpush1.bf16.xpose.msra.mxu0 0
    %1785 = vmatprep.subr.bf16.mxu0 0
    %1786 = vmatpush1.bf16.xpose.msra.mxu0 0
    %1787 = vmatprep.subr.bf16.mxu0 0
    %1788 = vmatpush1.bf16.xpose.msra.mxu0 0
    %1789 = vmatprep.subr.bf16.mxu0 0
    %1790 = vmatpush1.bf16.xpose.msra.mxu0 0
    %1791 = vmatprep.subr.bf16.mxu0 0
    %1792 = vmatpush1.bf16.xpose.msra.mxu0 0
    %1793 = vmatprep.mubr.bf16.mxu0 %v789
    %1794 = vmatmul.mubr.bf16.gmra.mrb[0].mxu0 %v788
    %v1795 = vpop.f32.mrb[0].mxu0
    %v1796 = vadd.f32 %v1756, %v1795
    %v1797 = vpop.f32.mrb[0].mxu0
    %v1798 = vpop.f32.mrb[0].mxu0
    %v1799 = vpop.f32.mrb[0].mxu0
    %1800 = vdwg.mxu0
    %1801 = vmatprep.subr.bf16.mxu0 %v1432
    %1802 = vmatpush1.bf16.xpose.msra.mxu0 %v1431
    %1803 = vmatprep.subr.bf16.mxu0 0
    %1804 = vmatpush1.bf16.xpose.msra.mxu0 0
    %1805 = vmatprep.subr.bf16.mxu0 0
    %1806 = vmatpush1.bf16.xpose.msra.mxu0 0
    %1807 = vmatprep.subr.bf16.mxu0 0
    %1808 = vmatpush1.bf16.xpose.msra.mxu0 0
    %1809 = vmatprep.subr.bf16.mxu0 0
    %1810 = vmatpush1.bf16.xpose.msra.mxu0 0
    %1811 = vmatprep.subr.bf16.mxu0 0
    %1812 = vmatpush1.bf16.xpose.msra.mxu0 0
    %1813 = vmatprep.subr.bf16.mxu0 0
    %1814 = vmatpush1.bf16.xpose.msra.mxu0 0
    %1815 = vmatprep.subr.bf16.mxu0 0
    %1816 = vmatpush1.bf16.xpose.msra.mxu0 0
    %1817 = vmatprep.subr.bf16.mxu0 0
    %1818 = vmatpush1.bf16.xpose.msra.mxu0 0
    %1819 = vmatprep.subr.bf16.mxu0 0
    %1820 = vmatpush1.bf16.xpose.msra.mxu0 0
    %1821 = vmatprep.subr.bf16.mxu0 0
    %1822 = vmatpush1.bf16.xpose.msra.mxu0 0
    %1823 = vmatprep.subr.bf16.mxu0 0
    %1824 = vmatpush1.bf16.xpose.msra.mxu0 0
    %1825 = vmatprep.subr.bf16.mxu0 0
    %1826 = vmatpush1.bf16.xpose.msra.mxu0 0
    %1827 = vmatprep.subr.bf16.mxu0 0
    %1828 = vmatpush1.bf16.xpose.msra.mxu0 0
    %1829 = vmatprep.subr.bf16.mxu0 0
    %1830 = vmatpush1.bf16.xpose.msra.mxu0 0
    %1831 = vmatprep.subr.bf16.mxu0 0
    %1832 = vmatpush1.bf16.xpose.msra.mxu0 0
    %1833 = vmatprep.mubr.bf16.mxu0 %v791
    %1834 = vmatmul.mubr.bf16.gmra.mrb[0].mxu0 %v790
    %v1835 = vpop.f32.mrb[0].mxu0
    %v1836 = vadd.f32 %v1796, %v1835
    %v1837 = vpop.f32.mrb[0].mxu0
    %v1838 = vpop.f32.mrb[0].mxu0
    %v1839 = vpop.f32.mrb[0].mxu0
    %1840 = vdwg.mxu0
    %1841 = vmatprep.subr.bf16.mxu0 %v1434
    %1842 = vmatpush1.bf16.xpose.msra.mxu0 %v1433
    %1843 = vmatprep.subr.bf16.mxu0 0
    %1844 = vmatpush1.bf16.xpose.msra.mxu0 0
    %1845 = vmatprep.subr.bf16.mxu0 0
    %1846 = vmatpush1.bf16.xpose.msra.mxu0 0
    %1847 = vmatprep.subr.bf16.mxu0 0
    %1848 = vmatpush1.bf16.xpose.msra.mxu0 0
    %1849 = vmatprep.subr.bf16.mxu0 0
    %1850 = vmatpush1.bf16.xpose.msra.mxu0 0
    %1851 = vmatprep.subr.bf16.mxu0 0
    %1852 = vmatpush1.bf16.xpose.msra.mxu0 0
    %1853 = vmatprep.subr.bf16.mxu0 0
    %1854 = vmatpush1.bf16.xpose.msra.mxu0 0
    %1855 = vmatprep.subr.bf16.mxu0 0
    %1856 = vmatpush1.bf16.xpose.msra.mxu0 0
    %1857 = vmatprep.subr.bf16.mxu0 0
    %1858 = vmatpush1.bf16.xpose.msra.mxu0 0
    %1859 = vmatprep.subr.bf16.mxu0 0
    %1860 = vmatpush1.bf16.xpose.msra.mxu0 0
    %1861 = vmatprep.subr.bf16.mxu0 0
    %1862 = vmatpush1.bf16.xpose.msra.mxu0 0
    %1863 = vmatprep.subr.bf16.mxu0 0
    %1864 = vmatpush1.bf16.xpose.msra.mxu0 0
    %1865 = vmatprep.subr.bf16.mxu0 0
    %1866 = vmatpush1.bf16.xpose.msra.mxu0 0
    %1867 = vmatprep.subr.bf16.mxu0 0
    %1868 = vmatpush1.bf16.xpose.msra.mxu0 0
    %1869 = vmatprep.subr.bf16.mxu0 0
    %1870 = vmatpush1.bf16.xpose.msra.mxu0 0
    %1871 = vmatprep.subr.bf16.mxu0 0
    %1872 = vmatpush1.bf16.xpose.msra.mxu0 0
    %1873 = vmatprep.mubr.bf16.mxu0 %v793
    %1874 = vmatmul.mubr.bf16.gmra.mrb[0].mxu0 %v792
    %v1875 = vpop.f32.mrb[0].mxu0
    %v1876 = vadd.f32 %v1836, %v1875
    %v1877 = vpop.f32.mrb[0].mxu0
    %v1878 = vpop.f32.mrb[0].mxu0
    %v1879 = vpop.f32.mrb[0].mxu0
    %1880 = vdwg.mxu0
    %1881 = vmatprep.subr.bf16.mxu0 %v1436
    %1882 = vmatpush1.bf16.xpose.msra.mxu0 %v1435
    %1883 = vmatprep.subr.bf16.mxu0 0
    %1884 = vmatpush1.bf16.xpose.msra.mxu0 0
    %1885 = vmatprep.subr.bf16.mxu0 0
    %1886 = vmatpush1.bf16.xpose.msra.mxu0 0
    %1887 = vmatprep.subr.bf16.mxu0 0
    %1888 = vmatpush1.bf16.xpose.msra.mxu0 0
    %1889 = vmatprep.subr.bf16.mxu0 0
    %1890 = vmatpush1.bf16.xpose.msra.mxu0 0
    %1891 = vmatprep.subr.bf16.mxu0 0
    %1892 = vmatpush1.bf16.xpose.msra.mxu0 0
    %1893 = vmatprep.subr.bf16.mxu0 0
    %1894 = vmatpush1.bf16.xpose.msra.mxu0 0
    %1895 = vmatprep.subr.bf16.mxu0 0
    %1896 = vmatpush1.bf16.xpose.msra.mxu0 0
    %1897 = vmatprep.subr.bf16.mxu0 0
    %1898 = vmatpush1.bf16.xpose.msra.mxu0 0
    %1899 = vmatprep.subr.bf16.mxu0 0
    %1900 = vmatpush1.bf16.xpose.msra.mxu0 0
    %1901 = vmatprep.subr.bf16.mxu0 0
    %1902 = vmatpush1.bf16.xpose.msra.mxu0 0
    %1903 = vmatprep.subr.bf16.mxu0 0
    %1904 = vmatpush1.bf16.xpose.msra.mxu0 0
    %1905 = vmatprep.subr.bf16.mxu0 0
    %1906 = vmatpush1.bf16.xpose.msra.mxu0 0
    %1907 = vmatprep.subr.bf16.mxu0 0
    %1908 = vmatpush1.bf16.xpose.msra.mxu0 0
    %1909 = vmatprep.subr.bf16.mxu0 0
    %1910 = vmatpush1.bf16.xpose.msra.mxu0 0
    %1911 = vmatprep.subr.bf16.mxu0 0
    %1912 = vmatpush1.bf16.xpose.msra.mxu0 0
    %1913 = vmatprep.mubr.bf16.mxu0 %v795
    %1914 = vmatmul.mubr.bf16.gmra.mrb[0].mxu0 %v794
    %v1915 = vpop.f32.mrb[0].mxu0
    %v1916 = vadd.f32 %v1876, %v1915
    %v1917 = vpop.f32.mrb[0].mxu0
    %v1918 = vpop.f32.mrb[0].mxu0
    %v1919 = vpop.f32.mrb[0].mxu0
    %1920 = vdwg.mxu0
    %1921 = vmatprep.subr.bf16.mxu0 %v1438
    %1922 = vmatpush1.bf16.xpose.msra.mxu0 %v1437
    %1923 = vmatprep.subr.bf16.mxu0 0
    %1924 = vmatpush1.bf16.xpose.msra.mxu0 0
    %1925 = vmatprep.subr.bf16.mxu0 0
    %1926 = vmatpush1.bf16.xpose.msra.mxu0 0
    %1927 = vmatprep.subr.bf16.mxu0 0
    %1928 = vmatpush1.bf16.xpose.msra.mxu0 0
    %1929 = vmatprep.subr.bf16.mxu0 0
    %1930 = vmatpush1.bf16.xpose.msra.mxu0 0
    %1931 = vmatprep.subr.bf16.mxu0 0
    %1932 = vmatpush1.bf16.xpose.msra.mxu0 0
    %1933 = vmatprep.subr.bf16.mxu0 0
    %1934 = vmatpush1.bf16.xpose.msra.mxu0 0
    %1935 = vmatprep.subr.bf16.mxu0 0
    %1936 = vmatpush1.bf16.xpose.msra.mxu0 0
    %1937 = vmatprep.subr.bf16.mxu0 0
    %1938 = vmatpush1.bf16.xpose.msra.mxu0 0
    %1939 = vmatprep.subr.bf16.mxu0 0
    %1940 = vmatpush1.bf16.xpose.msra.mxu0 0
    %1941 = vmatprep.subr.bf16.mxu0 0
    %1942 = vmatpush1.bf16.xpose.msra.mxu0 0
    %1943 = vmatprep.subr.bf16.mxu0 0
    %1944 = vmatpush1.bf16.xpose.msra.mxu0 0
    %1945 = vmatprep.subr.bf16.mxu0 0
    %1946 = vmatpush1.bf16.xpose.msra.mxu0 0
    %1947 = vmatprep.subr.bf16.mxu0 0
    %1948 = vmatpush1.bf16.xpose.msra.mxu0 0
    %1949 = vmatprep.subr.bf16.mxu0 0
    %1950 = vmatpush1.bf16.xpose.msra.mxu0 0
    %1951 = vmatprep.subr.bf16.mxu0 0
    %1952 = vmatpush1.bf16.xpose.msra.mxu0 0
    %1953 = vmatprep.mubr.bf16.mxu0 %v797
    %1954 = vmatmul.mubr.bf16.gmra.mrb[0].mxu0 %v796
    %v1955 = vpop.f32.mrb[0].mxu0
    %v1956 = vadd.f32 %v1916, %v1955
    %v1957 = vpop.f32.mrb[0].mxu0
    %v1958 = vpop.f32.mrb[0].mxu0
    %v1959 = vpop.f32.mrb[0].mxu0
    %1960 = vdwg.mxu0
    %1961 = vmatprep.subr.bf16.mxu0 %v1440
    %1962 = vmatpush1.bf16.xpose.msra.mxu0 %v1439
    %1963 = vmatprep.subr.bf16.mxu0 0
    %1964 = vmatpush1.bf16.xpose.msra.mxu0 0
    %1965 = vmatprep.subr.bf16.mxu0 0
    %1966 = vmatpush1.bf16.xpose.msra.mxu0 0
    %1967 = vmatprep.subr.bf16.mxu0 0
    %1968 = vmatpush1.bf16.xpose.msra.mxu0 0
    %1969 = vmatprep.subr.bf16.mxu0 0
    %1970 = vmatpush1.bf16.xpose.msra.mxu0 0
    %1971 = vmatprep.subr.bf16.mxu0 0
    %1972 = vmatpush1.bf16.xpose.msra.mxu0 0
    %1973 = vmatprep.subr.bf16.mxu0 0
    %1974 = vmatpush1.bf16.xpose.msra.mxu0 0
    %1975 = vmatprep.subr.bf16.mxu0 0
    %1976 = vmatpush1.bf16.xpose.msra.mxu0 0
    %1977 = vmatprep.subr.bf16.mxu0 0
    %1978 = vmatpush1.bf16.xpose.msra.mxu0 0
    %1979 = vmatprep.subr.bf16.mxu0 0
    %1980 = vmatpush1.bf16.xpose.msra.mxu0 0
    %1981 = vmatprep.subr.bf16.mxu0 0
    %1982 = vmatpush1.bf16.xpose.msra.mxu0 0
    %1983 = vmatprep.subr.bf16.mxu0 0
    %1984 = vmatpush1.bf16.xpose.msra.mxu0 0
    %1985 = vmatprep.subr.bf16.mxu0 0
    %1986 = vmatpush1.bf16.xpose.msra.mxu0 0
    %1987 = vmatprep.subr.bf16.mxu0 0
    %1988 = vmatpush1.bf16.xpose.msra.mxu0 0
    %1989 = vmatprep.subr.bf16.mxu0 0
    %1990 = vmatpush1.bf16.xpose.msra.mxu0 0
    %1991 = vmatprep.subr.bf16.mxu0 0
    %1992 = vmatpush1.bf16.xpose.msra.mxu0 0
    %1993 = vmatprep.mubr.bf16.mxu0 %v799
    %1994 = vmatmul.mubr.bf16.gmra.mrb[0].mxu0 %v798
    %v1995 = vpop.f32.mrb[0].mxu0
    %v1996 = vadd.f32 %v1956, %v1995
    %v1997 = vpop.f32.mrb[0].mxu0
    %v1998 = vpop.f32.mrb[0].mxu0
    %v1999 = vpop.f32.mrb[0].mxu0
    %2000 = vdwg.mxu0
    %2001 = vmatprep.subr.bf16.mxu0 %v1442
    %2002 = vmatpush1.bf16.xpose.msra.mxu0 %v1441
    %2003 = vmatprep.subr.bf16.mxu0 0
    %2004 = vmatpush1.bf16.xpose.msra.mxu0 0
    %2005 = vmatprep.subr.bf16.mxu0 0
    %2006 = vmatpush1.bf16.xpose.msra.mxu0 0
    %2007 = vmatprep.subr.bf16.mxu0 0
    %2008 = vmatpush1.bf16.xpose.msra.mxu0 0
    %2009 = vmatprep.subr.bf16.mxu0 0
    %2010 = vmatpush1.bf16.xpose.msra.mxu0 0
    %2011 = vmatprep.subr.bf16.mxu0 0
    %2012 = vmatpush1.bf16.xpose.msra.mxu0 0
    %2013 = vmatprep.subr.bf16.mxu0 0
    %2014 = vmatpush1.bf16.xpose.msra.mxu0 0
    %2015 = vmatprep.subr.bf16.mxu0 0
    %2016 = vmatpush1.bf16.xpose.msra.mxu0 0
    %2017 = vmatprep.subr.bf16.mxu0 0
    %2018 = vmatpush1.bf16.xpose.msra.mxu0 0
    %2019 = vmatprep.subr.bf16.mxu0 0
    %2020 = vmatpush1.bf16.xpose.msra.mxu0 0
    %2021 = vmatprep.subr.bf16.mxu0 0
    %2022 = vmatpush1.bf16.xpose.msra.mxu0 0
    %2023 = vmatprep.subr.bf16.mxu0 0
    %2024 = vmatpush1.bf16.xpose.msra.mxu0 0
    %2025 = vmatprep.subr.bf16.mxu0 0
    %2026 = vmatpush1.bf16.xpose.msra.mxu0 0
    %2027 = vmatprep.subr.bf16.mxu0 0
    %2028 = vmatpush1.bf16.xpose.msra.mxu0 0
    %2029 = vmatprep.subr.bf16.mxu0 0
    %2030 = vmatpush1.bf16.xpose.msra.mxu0 0
    %2031 = vmatprep.subr.bf16.mxu0 0
    %2032 = vmatpush1.bf16.xpose.msra.mxu0 0
    %2033 = vmatprep.mubr.bf16.mxu0 %v801
    %2034 = vmatmul.mubr.bf16.gmra.mrb[0].mxu0 %v800
    %v2035 = vpop.f32.mrb[0].mxu0
    %v2036 = vadd.f32 %v1996, %v2035
    %v2037 = vpop.f32.mrb[0].mxu0
    %v2038 = vpop.f32.mrb[0].mxu0
    %v2039 = vpop.f32.mrb[0].mxu0
    %2040 = vdwg.mxu0
    %2041 = vmatprep.subr.bf16.mxu0 %v1444
    %2042 = vmatpush1.bf16.xpose.msra.mxu0 %v1443
    %2043 = vmatprep.subr.bf16.mxu0 0
    %2044 = vmatpush1.bf16.xpose.msra.mxu0 0
    %2045 = vmatprep.subr.bf16.mxu0 0
    %2046 = vmatpush1.bf16.xpose.msra.mxu0 0
    %2047 = vmatprep.subr.bf16.mxu0 0
    %2048 = vmatpush1.bf16.xpose.msra.mxu0 0
    %2049 = vmatprep.subr.bf16.mxu0 0
    %2050 = vmatpush1.bf16.xpose.msra.mxu0 0
    %2051 = vmatprep.subr.bf16.mxu0 0
    %2052 = vmatpush1.bf16.xpose.msra.mxu0 0
    %2053 = vmatprep.subr.bf16.mxu0 0
    %2054 = vmatpush1.bf16.xpose.msra.mxu0 0
    %2055 = vmatprep.subr.bf16.mxu0 0
    %2056 = vmatpush1.bf16.xpose.msra.mxu0 0
    %2057 = vmatprep.subr.bf16.mxu0 0
    %2058 = vmatpush1.bf16.xpose.msra.mxu0 0
    %2059 = vmatprep.subr.bf16.mxu0 0
    %2060 = vmatpush1.bf16.xpose.msra.mxu0 0
    %2061 = vmatprep.subr.bf16.mxu0 0
    %2062 = vmatpush1.bf16.xpose.msra.mxu0 0
    %2063 = vmatprep.subr.bf16.mxu0 0
    %2064 = vmatpush1.bf16.xpose.msra.mxu0 0
    %2065 = vmatprep.subr.bf16.mxu0 0
    %2066 = vmatpush1.bf16.xpose.msra.mxu0 0
    %2067 = vmatprep.subr.bf16.mxu0 0
    %2068 = vmatpush1.bf16.xpose.msra.mxu0 0
    %2069 = vmatprep.subr.bf16.mxu0 0
    %2070 = vmatpush1.bf16.xpose.msra.mxu0 0
    %2071 = vmatprep.subr.bf16.mxu0 0
    %2072 = vmatpush1.bf16.xpose.msra.mxu0 0
    %2073 = vmatprep.mubr.bf16.mxu0 %v803
    %2074 = vmatmul.mubr.bf16.gmra.mrb[0].mxu0 %v802
    %v2075 = vpop.f32.mrb[0].mxu0
    %v2076 = vadd.f32 %v2036, %v2075
    %v2077 = vpop.f32.mrb[0].mxu0
    %v2078 = vpop.f32.mrb[0].mxu0
    %v2079 = vpop.f32.mrb[0].mxu0
    %2080 = vdwg.mxu0
    %2081 = vmatprep.subr.bf16.mxu0 %v1446
    %2082 = vmatpush1.bf16.xpose.msra.mxu0 %v1445
    %2083 = vmatprep.subr.bf16.mxu0 0
    %2084 = vmatpush1.bf16.xpose.msra.mxu0 0
    %2085 = vmatprep.subr.bf16.mxu0 0
    %2086 = vmatpush1.bf16.xpose.msra.mxu0 0
    %2087 = vmatprep.subr.bf16.mxu0 0
    %2088 = vmatpush1.bf16.xpose.msra.mxu0 0
    %2089 = vmatprep.subr.bf16.mxu0 0
    %2090 = vmatpush1.bf16.xpose.msra.mxu0 0
    %2091 = vmatprep.subr.bf16.mxu0 0
    %2092 = vmatpush1.bf16.xpose.msra.mxu0 0
    %2093 = vmatprep.subr.bf16.mxu0 0
    %2094 = vmatpush1.bf16.xpose.msra.mxu0 0
    %2095 = vmatprep.subr.bf16.mxu0 0
    %2096 = vmatpush1.bf16.xpose.msra.mxu0 0
    %2097 = vmatprep.subr.bf16.mxu0 0
    %2098 = vmatpush1.bf16.xpose.msra.mxu0 0
    %2099 = vmatprep.subr.bf16.mxu0 0
    %2100 = vmatpush1.bf16.xpose.msra.mxu0 0
    %2101 = vmatprep.subr.bf16.mxu0 0
    %2102 = vmatpush1.bf16.xpose.msra.mxu0 0
    %2103 = vmatprep.subr.bf16.mxu0 0
    %2104 = vmatpush1.bf16.xpose.msra.mxu0 0
    %2105 = vmatprep.subr.bf16.mxu0 0
    %2106 = vmatpush1.bf16.xpose.msra.mxu0 0
    %2107 = vmatprep.subr.bf16.mxu0 0
    %2108 = vmatpush1.bf16.xpose.msra.mxu0 0
    %2109 = vmatprep.subr.bf16.mxu0 0
    %2110 = vmatpush1.bf16.xpose.msra.mxu0 0
    %2111 = vmatprep.subr.bf16.mxu0 0
    %2112 = vmatpush1.bf16.xpose.msra.mxu0 0
    %2113 = vmatprep.mubr.bf16.mxu0 %v805
    %2114 = vmatmul.mubr.bf16.gmra.mrb[0].mxu0 %v804
    %v2115 = vpop.f32.mrb[0].mxu0
    %v2116 = vadd.f32 %v2076, %v2115
    %v2117 = vpop.f32.mrb[0].mxu0
    %v2118 = vpop.f32.mrb[0].mxu0
    %v2119 = vpop.f32.mrb[0].mxu0
    %2120 = vdwg.mxu0
    %2121 = vmatprep.subr.bf16.mxu0 %v1448
    %2122 = vmatpush1.bf16.xpose.msra.mxu0 %v1447
    %2123 = vmatprep.subr.bf16.mxu0 0
    %2124 = vmatpush1.bf16.xpose.msra.mxu0 0
    %2125 = vmatprep.subr.bf16.mxu0 0
    %2126 = vmatpush1.bf16.xpose.msra.mxu0 0
    %2127 = vmatprep.subr.bf16.mxu0 0
    %2128 = vmatpush1.bf16.xpose.msra.mxu0 0
    %2129 = vmatprep.subr.bf16.mxu0 0
    %2130 = vmatpush1.bf16.xpose.msra.mxu0 0
    %2131 = vmatprep.subr.bf16.mxu0 0
    %2132 = vmatpush1.bf16.xpose.msra.mxu0 0
    %2133 = vmatprep.subr.bf16.mxu0 0
    %2134 = vmatpush1.bf16.xpose.msra.mxu0 0
    %2135 = vmatprep.subr.bf16.mxu0 0
    %2136 = vmatpush1.bf16.xpose.msra.mxu0 0
    %2137 = vmatprep.subr.bf16.mxu0 0
    %2138 = vmatpush1.bf16.xpose.msra.mxu0 0
    %2139 = vmatprep.subr.bf16.mxu0 0
    %2140 = vmatpush1.bf16.xpose.msra.mxu0 0
    %2141 = vmatprep.subr.bf16.mxu0 0
    %2142 = vmatpush1.bf16.xpose.msra.mxu0 0
    %2143 = vmatprep.subr.bf16.mxu0 0
    %2144 = vmatpush1.bf16.xpose.msra.mxu0 0
    %2145 = vmatprep.subr.bf16.mxu0 0
    %2146 = vmatpush1.bf16.xpose.msra.mxu0 0
    %2147 = vmatprep.subr.bf16.mxu0 0
    %2148 = vmatpush1.bf16.xpose.msra.mxu0 0
    %2149 = vmatprep.subr.bf16.mxu0 0
    %2150 = vmatpush1.bf16.xpose.msra.mxu0 0
    %2151 = vmatprep.subr.bf16.mxu0 0
    %2152 = vmatpush1.bf16.xpose.msra.mxu0 0
    %2153 = vmatprep.mubr.bf16.mxu0 %v807
    %2154 = vmatmul.mubr.bf16.gmra.mrb[0].mxu0 %v806
    %v2155 = vpop.f32.mrb[0].mxu0
    %v2156 = vadd.f32 %v2116, %v2155
    %v2157 = vpop.f32.mrb[0].mxu0
    %v2158 = vpop.f32.mrb[0].mxu0
    %v2159 = vpop.f32.mrb[0].mxu0
    %2160 = vdwg.mxu0
    %2161 = vmatprep.subr.bf16.mxu0 %v1450
    %2162 = vmatpush1.bf16.xpose.msra.mxu0 %v1449
    %2163 = vmatprep.subr.bf16.mxu0 0
    %2164 = vmatpush1.bf16.xpose.msra.mxu0 0
    %2165 = vmatprep.subr.bf16.mxu0 0
    %2166 = vmatpush1.bf16.xpose.msra.mxu0 0
    %2167 = vmatprep.subr.bf16.mxu0 0
    %2168 = vmatpush1.bf16.xpose.msra.mxu0 0
    %2169 = vmatprep.subr.bf16.mxu0 0
    %2170 = vmatpush1.bf16.xpose.msra.mxu0 0
    %2171 = vmatprep.subr.bf16.mxu0 0
    %2172 = vmatpush1.bf16.xpose.msra.mxu0 0
    %2173 = vmatprep.subr.bf16.mxu0 0
    %2174 = vmatpush1.bf16.xpose.msra.mxu0 0
    %2175 = vmatprep.subr.bf16.mxu0 0
    %2176 = vmatpush1.bf16.xpose.msra.mxu0 0
    %2177 = vmatprep.subr.bf16.mxu0 0
    %2178 = vmatpush1.bf16.xpose.msra.mxu0 0
    %2179 = vmatprep.subr.bf16.mxu0 0
    %2180 = vmatpush1.bf16.xpose.msra.mxu0 0
    %2181 = vmatprep.subr.bf16.mxu0 0
    %2182 = vmatpush1.bf16.xpose.msra.mxu0 0
    %2183 = vmatprep.subr.bf16.mxu0 0
    %2184 = vmatpush1.bf16.xpose.msra.mxu0 0
    %2185 = vmatprep.subr.bf16.mxu0 0
    %2186 = vmatpush1.bf16.xpose.msra.mxu0 0
    %2187 = vmatprep.subr.bf16.mxu0 0
    %2188 = vmatpush1.bf16.xpose.msra.mxu0 0
    %2189 = vmatprep.subr.bf16.mxu0 0
    %2190 = vmatpush1.bf16.xpose.msra.mxu0 0
    %2191 = vmatprep.subr.bf16.mxu0 0
    %2192 = vmatpush1.bf16.xpose.msra.mxu0 0
    %2193 = vmatprep.mubr.bf16.mxu0 %v809
    %2194 = vmatmul.mubr.bf16.gmra.mrb[0].mxu0 %v808
    %v2195 = vpop.f32.mrb[0].mxu0
    %v2196 = vadd.f32 %v2156, %v2195
    %v2197 = vpop.f32.mrb[0].mxu0
    %v2198 = vpop.f32.mrb[0].mxu0
    %v2199 = vpop.f32.mrb[0].mxu0
    %2200 = vdwg.mxu0
    %2201 = vmatprep.subr.bf16.mxu0 %v1452
    %2202 = vmatpush1.bf16.xpose.msra.mxu0 %v1451
    %2203 = vmatprep.subr.bf16.mxu0 0
    %2204 = vmatpush1.bf16.xpose.msra.mxu0 0
    %2205 = vmatprep.subr.bf16.mxu0 0
    %2206 = vmatpush1.bf16.xpose.msra.mxu0 0
    %2207 = vmatprep.subr.bf16.mxu0 0
    %2208 = vmatpush1.bf16.xpose.msra.mxu0 0
    %2209 = vmatprep.subr.bf16.mxu0 0
    %2210 = vmatpush1.bf16.xpose.msra.mxu0 0
    %2211 = vmatprep.subr.bf16.mxu0 0
    %2212 = vmatpush1.bf16.xpose.msra.mxu0 0
    %2213 = vmatprep.subr.bf16.mxu0 0
    %2214 = vmatpush1.bf16.xpose.msra.mxu0 0
    %2215 = vmatprep.subr.bf16.mxu0 0
    %2216 = vmatpush1.bf16.xpose.msra.mxu0 0
    %2217 = vmatprep.subr.bf16.mxu0 0
    %2218 = vmatpush1.bf16.xpose.msra.mxu0 0
    %2219 = vmatprep.subr.bf16.mxu0 0
    %2220 = vmatpush1.bf16.xpose.msra.mxu0 0
    %2221 = vmatprep.subr.bf16.mxu0 0
    %2222 = vmatpush1.bf16.xpose.msra.mxu0 0
    %2223 = vmatprep.subr.bf16.mxu0 0
    %2224 = vmatpush1.bf16.xpose.msra.mxu0 0
    %2225 = vmatprep.subr.bf16.mxu0 0
    %2226 = vmatpush1.bf16.xpose.msra.mxu0 0
    %2227 = vmatprep.subr.bf16.mxu0 0
    %2228 = vmatpush1.bf16.xpose.msra.mxu0 0
    %2229 = vmatprep.subr.bf16.mxu0 0
    %2230 = vmatpush1.bf16.xpose.msra.mxu0 0
    %2231 = vmatprep.subr.bf16.mxu0 0
    %2232 = vmatpush1.bf16.xpose.msra.mxu0 0
    %2233 = vmatprep.mubr.bf16.mxu0 %v811
    %2234 = vmatmul.mubr.bf16.gmra.mrb[0].mxu0 %v810
    %v2235 = vpop.f32.mrb[0].mxu0
    %v2236 = vadd.f32 %v2196, %v2235
    %v2237 = vpop.f32.mrb[0].mxu0
    %v2238 = vpop.f32.mrb[0].mxu0
    %v2239 = vpop.f32.mrb[0].mxu0
    %2240 = vdwg.mxu0
    %2241 = vmatprep.subr.bf16.mxu0 %v1454
    %2242 = vmatpush1.bf16.xpose.msra.mxu0 %v1453
    %2243 = vmatprep.subr.bf16.mxu0 0
    %2244 = vmatpush1.bf16.xpose.msra.mxu0 0
    %2245 = vmatprep.subr.bf16.mxu0 0
    %2246 = vmatpush1.bf16.xpose.msra.mxu0 0
    %2247 = vmatprep.subr.bf16.mxu0 0
    %2248 = vmatpush1.bf16.xpose.msra.mxu0 0
    %2249 = vmatprep.subr.bf16.mxu0 0
    %2250 = vmatpush1.bf16.xpose.msra.mxu0 0
    %2251 = vmatprep.subr.bf16.mxu0 0
    %2252 = vmatpush1.bf16.xpose.msra.mxu0 0
    %2253 = vmatprep.subr.bf16.mxu0 0
    %2254 = vmatpush1.bf16.xpose.msra.mxu0 0
    %2255 = vmatprep.subr.bf16.mxu0 0
    %2256 = vmatpush1.bf16.xpose.msra.mxu0 0
    %2257 = vmatprep.subr.bf16.mxu0 0
    %2258 = vmatpush1.bf16.xpose.msra.mxu0 0
    %2259 = vmatprep.subr.bf16.mxu0 0
    %2260 = vmatpush1.bf16.xpose.msra.mxu0 0
    %2261 = vmatprep.subr.bf16.mxu0 0
    %2262 = vmatpush1.bf16.xpose.msra.mxu0 0
    %2263 = vmatprep.subr.bf16.mxu0 0
    %2264 = vmatpush1.bf16.xpose.msra.mxu0 0
    %2265 = vmatprep.subr.bf16.mxu0 0
    %2266 = vmatpush1.bf16.xpose.msra.mxu0 0
    %2267 = vmatprep.subr.bf16.mxu0 0
    %2268 = vmatpush1.bf16.xpose.msra.mxu0 0
    %2269 = vmatprep.subr.bf16.mxu0 0
    %2270 = vmatpush1.bf16.xpose.msra.mxu0 0
    %2271 = vmatprep.subr.bf16.mxu0 0
    %2272 = vmatpush1.bf16.xpose.msra.mxu0 0
    %2273 = vmatprep.mubr.bf16.mxu0 %v813
    %2274 = vmatmul.mubr.bf16.gmra.mrb[0].mxu0 %v812
    %v2275 = vpop.f32.mrb[0].mxu0
    %v2276 = vadd.f32 %v2236, %v2275
    %v2277 = vpop.f32.mrb[0].mxu0
    %v2278 = vpop.f32.mrb[0].mxu0
    %v2279 = vpop.f32.mrb[0].mxu0
    %2280 = vdwg.mxu0
    %2281 = vmatprep.subr.bf16.mxu0 %v1456
    %2282 = vmatpush1.bf16.xpose.msra.mxu0 %v1455
    %2283 = vmatprep.subr.bf16.mxu0 0
    %2284 = vmatpush1.bf16.xpose.msra.mxu0 0
    %2285 = vmatprep.subr.bf16.mxu0 0
    %2286 = vmatpush1.bf16.xpose.msra.mxu0 0
    %2287 = vmatprep.subr.bf16.mxu0 0
    %2288 = vmatpush1.bf16.xpose.msra.mxu0 0
    %2289 = vmatprep.subr.bf16.mxu0 0
    %2290 = vmatpush1.bf16.xpose.msra.mxu0 0
    %2291 = vmatprep.subr.bf16.mxu0 0
    %2292 = vmatpush1.bf16.xpose.msra.mxu0 0
    %2293 = vmatprep.subr.bf16.mxu0 0
    %2294 = vmatpush1.bf16.xpose.msra.mxu0 0
    %2295 = vmatprep.subr.bf16.mxu0 0
    %2296 = vmatpush1.bf16.xpose.msra.mxu0 0
    %2297 = vmatprep.subr.bf16.mxu0 0
    %2298 = vmatpush1.bf16.xpose.msra.mxu0 0
    %2299 = vmatprep.subr.bf16.mxu0 0
    %2300 = vmatpush1.bf16.xpose.msra.mxu0 0
    %2301 = vmatprep.subr.bf16.mxu0 0
    %2302 = vmatpush1.bf16.xpose.msra.mxu0 0
    %2303 = vmatprep.subr.bf16.mxu0 0
    %2304 = vmatpush1.bf16.xpose.msra.mxu0 0
    %2305 = vmatprep.subr.bf16.mxu0 0
    %2306 = vmatpush1.bf16.xpose.msra.mxu0 0
    %2307 = vmatprep.subr.bf16.mxu0 0
    %2308 = vmatpush1.bf16.xpose.msra.mxu0 0
    %2309 = vmatprep.subr.bf16.mxu0 0
    %2310 = vmatpush1.bf16.xpose.msra.mxu0 0
    %2311 = vmatprep.subr.bf16.mxu0 0
    %2312 = vmatpush1.bf16.xpose.msra.mxu0 0
    %2313 = vmatprep.mubr.bf16.mxu0 %v815
    %2314 = vmatmul.mubr.bf16.gmra.mrb[0].mxu0 %v814
    %v2315 = vpop.f32.mrb[0].mxu0
    %v2316 = vadd.f32 %v2276, %v2315
    %v2317 = vpop.f32.mrb[0].mxu0
    %v2318 = vpop.f32.mrb[0].mxu0
    %v2319 = vpop.f32.mrb[0].mxu0
    %2320 = vdwg.mxu0
    %2321 = vmatprep.subr.bf16.mxu0 %v1458
    %2322 = vmatpush1.bf16.xpose.msra.mxu0 %v1457
    %2323 = vmatprep.subr.bf16.mxu0 0
    %2324 = vmatpush1.bf16.xpose.msra.mxu0 0
    %2325 = vmatprep.subr.bf16.mxu0 0
    %2326 = vmatpush1.bf16.xpose.msra.mxu0 0
    %2327 = vmatprep.subr.bf16.mxu0 0
    %2328 = vmatpush1.bf16.xpose.msra.mxu0 0
    %2329 = vmatprep.subr.bf16.mxu0 0
    %2330 = vmatpush1.bf16.xpose.msra.mxu0 0
    %2331 = vmatprep.subr.bf16.mxu0 0
    %2332 = vmatpush1.bf16.xpose.msra.mxu0 0
    %2333 = vmatprep.subr.bf16.mxu0 0
    %2334 = vmatpush1.bf16.xpose.msra.mxu0 0
    %2335 = vmatprep.subr.bf16.mxu0 0
    %2336 = vmatpush1.bf16.xpose.msra.mxu0 0
    %2337 = vmatprep.subr.bf16.mxu0 0
    %2338 = vmatpush1.bf16.xpose.msra.mxu0 0
    %2339 = vmatprep.subr.bf16.mxu0 0
    %2340 = vmatpush1.bf16.xpose.msra.mxu0 0
    %2341 = vmatprep.subr.bf16.mxu0 0
    %2342 = vmatpush1.bf16.xpose.msra.mxu0 0
    %2343 = vmatprep.subr.bf16.mxu0 0
    %2344 = vmatpush1.bf16.xpose.msra.mxu0 0
    %2345 = vmatprep.subr.bf16.mxu0 0
    %2346 = vmatpush1.bf16.xpose.msra.mxu0 0
    %2347 = vmatprep.subr.bf16.mxu0 0
    %2348 = vmatpush1.bf16.xpose.msra.mxu0 0
    %2349 = vmatprep.subr.bf16.mxu0 0
    %2350 = vmatpush1.bf16.xpose.msra.mxu0 0
    %2351 = vmatprep.subr.bf16.mxu0 0
    %2352 = vmatpush1.bf16.xpose.msra.mxu0 0
    %2353 = vmatprep.mubr.bf16.mxu0 %v817
    %2354 = vmatmul.mubr.bf16.gmra.mrb[0].mxu0 %v816
    %v2355 = vpop.f32.mrb[0].mxu0
    %v2356 = vadd.f32 %v2316, %v2355
    %v2357 = vpop.f32.mrb[0].mxu0
    %v2358 = vpop.f32.mrb[0].mxu0
    %v2359 = vpop.f32.mrb[0].mxu0
    %2360 = vdwg.mxu0
    %2361 = vmatprep.subr.bf16.mxu0 %v1460
    %2362 = vmatpush1.bf16.xpose.msra.mxu0 %v1459
    %2363 = vmatprep.subr.bf16.mxu0 0
    %2364 = vmatpush1.bf16.xpose.msra.mxu0 0
    %2365 = vmatprep.subr.bf16.mxu0 0
    %2366 = vmatpush1.bf16.xpose.msra.mxu0 0
    %2367 = vmatprep.subr.bf16.mxu0 0
    %2368 = vmatpush1.bf16.xpose.msra.mxu0 0
    %2369 = vmatprep.subr.bf16.mxu0 0
    %2370 = vmatpush1.bf16.xpose.msra.mxu0 0
    %2371 = vmatprep.subr.bf16.mxu0 0
    %2372 = vmatpush1.bf16.xpose.msra.mxu0 0
    %2373 = vmatprep.subr.bf16.mxu0 0
    %2374 = vmatpush1.bf16.xpose.msra.mxu0 0
    %2375 = vmatprep.subr.bf16.mxu0 0
    %2376 = vmatpush1.bf16.xpose.msra.mxu0 0
    %2377 = vmatprep.subr.bf16.mxu0 0
    %2378 = vmatpush1.bf16.xpose.msra.mxu0 0
    %2379 = vmatprep.subr.bf16.mxu0 0
    %2380 = vmatpush1.bf16.xpose.msra.mxu0 0
    %2381 = vmatprep.subr.bf16.mxu0 0
    %2382 = vmatpush1.bf16.xpose.msra.mxu0 0
    %2383 = vmatprep.subr.bf16.mxu0 0
    %2384 = vmatpush1.bf16.xpose.msra.mxu0 0
    %2385 = vmatprep.subr.bf16.mxu0 0
    %2386 = vmatpush1.bf16.xpose.msra.mxu0 0
    %2387 = vmatprep.subr.bf16.mxu0 0
    %2388 = vmatpush1.bf16.xpose.msra.mxu0 0
    %2389 = vmatprep.subr.bf16.mxu0 0
    %2390 = vmatpush1.bf16.xpose.msra.mxu0 0
    %2391 = vmatprep.subr.bf16.mxu0 0
    %2392 = vmatpush1.bf16.xpose.msra.mxu0 0
    %2393 = vmatprep.mubr.bf16.mxu0 %v819
    %2394 = vmatmul.mubr.bf16.gmra.mrb[0].mxu0 %v818
    %v2395 = vpop.f32.mrb[0].mxu0
    %v2396 = vadd.f32 %v2356, %v2395
    %v2397 = vpop.f32.mrb[0].mxu0
    %v2398 = vpop.f32.mrb[0].mxu0
    %v2399 = vpop.f32.mrb[0].mxu0
    %2400 = vdwg.mxu0
    %2401 = vmatprep.subr.bf16.mxu0 %v1462
    %2402 = vmatpush1.bf16.xpose.msra.mxu0 %v1461
    %2403 = vmatprep.subr.bf16.mxu0 0
    %2404 = vmatpush1.bf16.xpose.msra.mxu0 0
    %2405 = vmatprep.subr.bf16.mxu0 0
    %2406 = vmatpush1.bf16.xpose.msra.mxu0 0
    %2407 = vmatprep.subr.bf16.mxu0 0
    %2408 = vmatpush1.bf16.xpose.msra.mxu0 0
    %2409 = vmatprep.subr.bf16.mxu0 0
    %2410 = vmatpush1.bf16.xpose.msra.mxu0 0
    %2411 = vmatprep.subr.bf16.mxu0 0
    %2412 = vmatpush1.bf16.xpose.msra.mxu0 0
    %2413 = vmatprep.subr.bf16.mxu0 0
    %2414 = vmatpush1.bf16.xpose.msra.mxu0 0
    %2415 = vmatprep.subr.bf16.mxu0 0
    %2416 = vmatpush1.bf16.xpose.msra.mxu0 0
    %2417 = vmatprep.subr.bf16.mxu0 0
    %2418 = vmatpush1.bf16.xpose.msra.mxu0 0
    %2419 = vmatprep.subr.bf16.mxu0 0
    %2420 = vmatpush1.bf16.xpose.msra.mxu0 0
    %2421 = vmatprep.subr.bf16.mxu0 0
    %2422 = vmatpush1.bf16.xpose.msra.mxu0 0
    %2423 = vmatprep.subr.bf16.mxu0 0
    %2424 = vmatpush1.bf16.xpose.msra.mxu0 0
    %2425 = vmatprep.subr.bf16.mxu0 0
    %2426 = vmatpush1.bf16.xpose.msra.mxu0 0
    %2427 = vmatprep.subr.bf16.mxu0 0
    %2428 = vmatpush1.bf16.xpose.msra.mxu0 0
    %2429 = vmatprep.subr.bf16.mxu0 0
    %2430 = vmatpush1.bf16.xpose.msra.mxu0 0
    %2431 = vmatprep.subr.bf16.mxu0 0
    %2432 = vmatpush1.bf16.xpose.msra.mxu0 0
    %2433 = vmatprep.mubr.bf16.mxu0 %v821
    %2434 = vmatmul.mubr.bf16.gmra.mrb[0].mxu0 %v820
    %v2435 = vpop.f32.mrb[0].mxu0
    %v2436 = vadd.f32 %v2396, %v2435
    %v2437 = vpop.f32.mrb[0].mxu0
    %v2438 = vpop.f32.mrb[0].mxu0
    %v2439 = vpop.f32.mrb[0].mxu0
    %2440 = vdwg.mxu0
    %2441 = vmatprep.subr.bf16.mxu0 %v1464
    %2442 = vmatpush1.bf16.xpose.msra.mxu0 %v1463
    %2443 = vmatprep.subr.bf16.mxu0 0
    %2444 = vmatpush1.bf16.xpose.msra.mxu0 0
    %2445 = vmatprep.subr.bf16.mxu0 0
    %2446 = vmatpush1.bf16.xpose.msra.mxu0 0
    %2447 = vmatprep.subr.bf16.mxu0 0
    %2448 = vmatpush1.bf16.xpose.msra.mxu0 0
    %2449 = vmatprep.subr.bf16.mxu0 0
    %2450 = vmatpush1.bf16.xpose.msra.mxu0 0
    %2451 = vmatprep.subr.bf16.mxu0 0
    %2452 = vmatpush1.bf16.xpose.msra.mxu0 0
    %2453 = vmatprep.subr.bf16.mxu0 0
    %2454 = vmatpush1.bf16.xpose.msra.mxu0 0
    %2455 = vmatprep.subr.bf16.mxu0 0
    %2456 = vmatpush1.bf16.xpose.msra.mxu0 0
    %2457 = vmatprep.subr.bf16.mxu0 0
    %2458 = vmatpush1.bf16.xpose.msra.mxu0 0
    %2459 = vmatprep.subr.bf16.mxu0 0
    %2460 = vmatpush1.bf16.xpose.msra.mxu0 0
    %2461 = vmatprep.subr.bf16.mxu0 0
    %2462 = vmatpush1.bf16.xpose.msra.mxu0 0
    %2463 = vmatprep.subr.bf16.mxu0 0
    %2464 = vmatpush1.bf16.xpose.msra.mxu0 0
    %2465 = vmatprep.subr.bf16.mxu0 0
    %2466 = vmatpush1.bf16.xpose.msra.mxu0 0
    %2467 = vmatprep.subr.bf16.mxu0 0
    %2468 = vmatpush1.bf16.xpose.msra.mxu0 0
    %2469 = vmatprep.subr.bf16.mxu0 0
    %2470 = vmatpush1.bf16.xpose.msra.mxu0 0
    %2471 = vmatprep.subr.bf16.mxu0 0
    %2472 = vmatpush1.bf16.xpose.msra.mxu0 0
    %2473 = vmatprep.mubr.bf16.mxu0 %v823
    %2474 = vmatmul.mubr.bf16.gmra.mrb[0].mxu0 %v822
    %v2475 = vpop.f32.mrb[0].mxu0
    %v2476 = vadd.f32 %v2436, %v2475
    %v2477 = vpop.f32.mrb[0].mxu0
    %v2478 = vpop.f32.mrb[0].mxu0
    %v2479 = vpop.f32.mrb[0].mxu0
    %2480 = vdwg.mxu0
    %2481 = vmatprep.subr.bf16.mxu0 %v1466
    %2482 = vmatpush1.bf16.xpose.msra.mxu0 %v1465
    %2483 = vmatprep.subr.bf16.mxu0 0
    %2484 = vmatpush1.bf16.xpose.msra.mxu0 0
    %2485 = vmatprep.subr.bf16.mxu0 0
    %2486 = vmatpush1.bf16.xpose.msra.mxu0 0
    %2487 = vmatprep.subr.bf16.mxu0 0
    %2488 = vmatpush1.bf16.xpose.msra.mxu0 0
    %2489 = vmatprep.subr.bf16.mxu0 0
    %2490 = vmatpush1.bf16.xpose.msra.mxu0 0
    %2491 = vmatprep.subr.bf16.mxu0 0
    %2492 = vmatpush1.bf16.xpose.msra.mxu0 0
    %2493 = vmatprep.subr.bf16.mxu0 0
    %2494 = vmatpush1.bf16.xpose.msra.mxu0 0
    %2495 = vmatprep.subr.bf16.mxu0 0
    %2496 = vmatpush1.bf16.xpose.msra.mxu0 0
    %2497 = vmatprep.subr.bf16.mxu0 0
    %2498 = vmatpush1.bf16.xpose.msra.mxu0 0
    %2499 = vmatprep.subr.bf16.mxu0 0
    %2500 = vmatpush1.bf16.xpose.msra.mxu0 0
    %2501 = vmatprep.subr.bf16.mxu0 0
    %2502 = vmatpush1.bf16.xpose.msra.mxu0 0
    %2503 = vmatprep.subr.bf16.mxu0 0
    %2504 = vmatpush1.bf16.xpose.msra.mxu0 0
    %2505 = vmatprep.subr.bf16.mxu0 0
    %2506 = vmatpush1.bf16.xpose.msra.mxu0 0
    %2507 = vmatprep.subr.bf16.mxu0 0
    %2508 = vmatpush1.bf16.xpose.msra.mxu0 0
    %2509 = vmatprep.subr.bf16.mxu0 0
    %2510 = vmatpush1.bf16.xpose.msra.mxu0 0
    %2511 = vmatprep.subr.bf16.mxu0 0
    %2512 = vmatpush1.bf16.xpose.msra.mxu0 0
    %2513 = vmatprep.mubr.bf16.mxu0 %v825
    %2514 = vmatmul.mubr.bf16.gmra.mrb[0].mxu0 %v824
    %v2515 = vpop.f32.mrb[0].mxu0
    %v2516 = vadd.f32 %v2476, %v2515
    %v2517 = vpop.f32.mrb[0].mxu0
    %v2518 = vpop.f32.mrb[0].mxu0
    %v2519 = vpop.f32.mrb[0].mxu0
    %2520 = vdwg.mxu0
    %2521 = vmatprep.subr.bf16.mxu0 %v1468
    %2522 = vmatpush1.bf16.xpose.msra.mxu0 %v1467
    %2523 = vmatprep.subr.bf16.mxu0 0
    %2524 = vmatpush1.bf16.xpose.msra.mxu0 0
    %2525 = vmatprep.subr.bf16.mxu0 0
    %2526 = vmatpush1.bf16.xpose.msra.mxu0 0
    %2527 = vmatprep.subr.bf16.mxu0 0
    %2528 = vmatpush1.bf16.xpose.msra.mxu0 0
    %2529 = vmatprep.subr.bf16.mxu0 0
    %2530 = vmatpush1.bf16.xpose.msra.mxu0 0
    %2531 = vmatprep.subr.bf16.mxu0 0
    %2532 = vmatpush1.bf16.xpose.msra.mxu0 0
    %2533 = vmatprep.subr.bf16.mxu0 0
    %2534 = vmatpush1.bf16.xpose.msra.mxu0 0
    %2535 = vmatprep.subr.bf16.mxu0 0
    %2536 = vmatpush1.bf16.xpose.msra.mxu0 0
    %2537 = vmatprep.subr.bf16.mxu0 0
    %2538 = vmatpush1.bf16.xpose.msra.mxu0 0
    %2539 = vmatprep.subr.bf16.mxu0 0
    %2540 = vmatpush1.bf16.xpose.msra.mxu0 0
    %2541 = vmatprep.subr.bf16.mxu0 0
    %2542 = vmatpush1.bf16.xpose.msra.mxu0 0
    %2543 = vmatprep.subr.bf16.mxu0 0
    %2544 = vmatpush1.bf16.xpose.msra.mxu0 0
    %2545 = vmatprep.subr.bf16.mxu0 0
    %2546 = vmatpush1.bf16.xpose.msra.mxu0 0
    %2547 = vmatprep.subr.bf16.mxu0 0
    %2548 = vmatpush1.bf16.xpose.msra.mxu0 0
    %2549 = vmatprep.subr.bf16.mxu0 0
    %2550 = vmatpush1.bf16.xpose.msra.mxu0 0
    %2551 = vmatprep.subr.bf16.mxu0 0
    %2552 = vmatpush1.bf16.xpose.msra.mxu0 0
    %2553 = vmatprep.mubr.bf16.mxu0 %v827
    %2554 = vmatmul.mubr.bf16.gmra.mrb[0].mxu0 %v826
    %v2555 = vpop.f32.mrb[0].mxu0
    %v2556 = vadd.f32 %v2516, %v2555
    %v2557 = vpop.f32.mrb[0].mxu0
    %v2558 = vpop.f32.mrb[0].mxu0
    %v2559 = vpop.f32.mrb[0].mxu0
    %2560 = vdwg.mxu0
    %2561 = vmatprep.subr.bf16.mxu0 %v1470
    %2562 = vmatpush1.bf16.xpose.msra.mxu0 %v1469
    %2563 = vmatprep.subr.bf16.mxu0 0
    %2564 = vmatpush1.bf16.xpose.msra.mxu0 0
    %2565 = vmatprep.subr.bf16.mxu0 0
    %2566 = vmatpush1.bf16.xpose.msra.mxu0 0
    %2567 = vmatprep.subr.bf16.mxu0 0
    %2568 = vmatpush1.bf16.xpose.msra.mxu0 0
    %2569 = vmatprep.subr.bf16.mxu0 0
    %2570 = vmatpush1.bf16.xpose.msra.mxu0 0
    %2571 = vmatprep.subr.bf16.mxu0 0
    %2572 = vmatpush1.bf16.xpose.msra.mxu0 0
    %2573 = vmatprep.subr.bf16.mxu0 0
    %2574 = vmatpush1.bf16.xpose.msra.mxu0 0
    %2575 = vmatprep.subr.bf16.mxu0 0
    %2576 = vmatpush1.bf16.xpose.msra.mxu0 0
    %2577 = vmatprep.subr.bf16.mxu0 0
    %2578 = vmatpush1.bf16.xpose.msra.mxu0 0
    %2579 = vmatprep.subr.bf16.mxu0 0
    %2580 = vmatpush1.bf16.xpose.msra.mxu0 0
    %2581 = vmatprep.subr.bf16.mxu0 0
    %2582 = vmatpush1.bf16.xpose.msra.mxu0 0
    %2583 = vmatprep.subr.bf16.mxu0 0
    %2584 = vmatpush1.bf16.xpose.msra.mxu0 0
    %2585 = vmatprep.subr.bf16.mxu0 0
    %2586 = vmatpush1.bf16.xpose.msra.mxu0 0
    %2587 = vmatprep.subr.bf16.mxu0 0
    %2588 = vmatpush1.bf16.xpose.msra.mxu0 0
    %2589 = vmatprep.subr.bf16.mxu0 0
    %2590 = vmatpush1.bf16.xpose.msra.mxu0 0
    %2591 = vmatprep.subr.bf16.mxu0 0
    %2592 = vmatpush1.bf16.xpose.msra.mxu0 0
    %2593 = vmatprep.mubr.bf16.mxu0 %v829
    %2594 = vmatmul.mubr.bf16.gmra.mrb[0].mxu0 %v828
    %v2595 = vpop.f32.mrb[0].mxu0
    %v2596 = vadd.f32 %v2556, %v2595
    %v2597 = vpop.f32.mrb[0].mxu0
    %v2598 = vpop.f32.mrb[0].mxu0
    %v2599 = vpop.f32.mrb[0].mxu0
    %2600 = vdwg.mxu0
    %2601 = vmatprep.subr.bf16.mxu0 %v1472
    %2602 = vmatpush1.bf16.xpose.msra.mxu0 %v1471
    %2603 = vmatprep.subr.bf16.mxu0 0
    %2604 = vmatpush1.bf16.xpose.msra.mxu0 0
    %2605 = vmatprep.subr.bf16.mxu0 0
    %2606 = vmatpush1.bf16.xpose.msra.mxu0 0
    %2607 = vmatprep.subr.bf16.mxu0 0
    %2608 = vmatpush1.bf16.xpose.msra.mxu0 0
    %2609 = vmatprep.subr.bf16.mxu0 0
    %2610 = vmatpush1.bf16.xpose.msra.mxu0 0
    %2611 = vmatprep.subr.bf16.mxu0 0
    %2612 = vmatpush1.bf16.xpose.msra.mxu0 0
    %2613 = vmatprep.subr.bf16.mxu0 0
    %2614 = vmatpush1.bf16.xpose.msra.mxu0 0
    %2615 = vmatprep.subr.bf16.mxu0 0
    %2616 = vmatpush1.bf16.xpose.msra.mxu0 0
    %2617 = vmatprep.subr.bf16.mxu0 0
    %2618 = vmatpush1.bf16.xpose.msra.mxu0 0
    %2619 = vmatprep.subr.bf16.mxu0 0
    %2620 = vmatpush1.bf16.xpose.msra.mxu0 0
    %2621 = vmatprep.subr.bf16.mxu0 0
    %2622 = vmatpush1.bf16.xpose.msra.mxu0 0
    %2623 = vmatprep.subr.bf16.mxu0 0
    %2624 = vmatpush1.bf16.xpose.msra.mxu0 0
    %2625 = vmatprep.subr.bf16.mxu0 0
    %2626 = vmatpush1.bf16.xpose.msra.mxu0 0
    %2627 = vmatprep.subr.bf16.mxu0 0
    %2628 = vmatpush1.bf16.xpose.msra.mxu0 0
    %2629 = vmatprep.subr.bf16.mxu0 0
    %2630 = vmatpush1.bf16.xpose.msra.mxu0 0
    %2631 = vmatprep.subr.bf16.mxu0 0
    %2632 = vmatpush1.bf16.xpose.msra.mxu0 0
    %2633 = vmatprep.mubr.bf16.mxu0 %v831
    %2634 = vmatmul.mubr.bf16.gmra.mrb[0].mxu0 %v830
    %v2635 = vpop.f32.mrb[0].mxu0
    %v2636 = vadd.f32 %v2596, %v2635
    %v2637 = vpop.f32.mrb[0].mxu0
    %v2638 = vpop.f32.mrb[0].mxu0
    %v2639 = vpop.f32.mrb[0].mxu0
    %2640 = vdwg.mxu0
    %2641 = vmatprep.subr.bf16.mxu0 %v1474
    %2642 = vmatpush1.bf16.xpose.msra.mxu0 %v1473
    %2643 = vmatprep.subr.bf16.mxu0 0
    %2644 = vmatpush1.bf16.xpose.msra.mxu0 0
    %2645 = vmatprep.subr.bf16.mxu0 0
    %2646 = vmatpush1.bf16.xpose.msra.mxu0 0
    %2647 = vmatprep.subr.bf16.mxu0 0
    %2648 = vmatpush1.bf16.xpose.msra.mxu0 0
    %2649 = vmatprep.subr.bf16.mxu0 0
    %2650 = vmatpush1.bf16.xpose.msra.mxu0 0
    %2651 = vmatprep.subr.bf16.mxu0 0
    %2652 = vmatpush1.bf16.xpose.msra.mxu0 0
    %2653 = vmatprep.subr.bf16.mxu0 0
    %2654 = vmatpush1.bf16.xpose.msra.mxu0 0
    %2655 = vmatprep.subr.bf16.mxu0 0
    %2656 = vmatpush1.bf16.xpose.msra.mxu0 0
    %2657 = vmatprep.subr.bf16.mxu0 0
    %2658 = vmatpush1.bf16.xpose.msra.mxu0 0
    %2659 = vmatprep.subr.bf16.mxu0 0
    %2660 = vmatpush1.bf16.xpose.msra.mxu0 0
    %2661 = vmatprep.subr.bf16.mxu0 0
    %2662 = vmatpush1.bf16.xpose.msra.mxu0 0
    %2663 = vmatprep.subr.bf16.mxu0 0
    %2664 = vmatpush1.bf16.xpose.msra.mxu0 0
    %2665 = vmatprep.subr.bf16.mxu0 0
    %2666 = vmatpush1.bf16.xpose.msra.mxu0 0
    %2667 = vmatprep.subr.bf16.mxu0 0
    %2668 = vmatpush1.bf16.xpose.msra.mxu0 0
    %2669 = vmatprep.subr.bf16.mxu0 0
    %2670 = vmatpush1.bf16.xpose.msra.mxu0 0
    %2671 = vmatprep.subr.bf16.mxu0 0
    %2672 = vmatpush1.bf16.xpose.msra.mxu0 0
    %2673 = vmatprep.mubr.bf16.mxu0 %v833
    %2674 = vmatmul.mubr.bf16.gmra.mrb[0].mxu0 %v832
    %v2675 = vpop.f32.mrb[0].mxu0
    %v2676 = vadd.f32 %v2636, %v2675
    %v2677 = vpop.f32.mrb[0].mxu0
    %v2678 = vpop.f32.mrb[0].mxu0
    %v2679 = vpop.f32.mrb[0].mxu0
    %2680 = vdwg.mxu0
    %2681 = vmatprep.subr.bf16.mxu0 %v1476
    %2682 = vmatpush1.bf16.xpose.msra.mxu0 %v1475
    %2683 = vmatprep.subr.bf16.mxu0 0
    %2684 = vmatpush1.bf16.xpose.msra.mxu0 0
    %2685 = vmatprep.subr.bf16.mxu0 0
    %2686 = vmatpush1.bf16.xpose.msra.mxu0 0
    %2687 = vmatprep.subr.bf16.mxu0 0
    %2688 = vmatpush1.bf16.xpose.msra.mxu0 0
    %2689 = vmatprep.subr.bf16.mxu0 0
    %2690 = vmatpush1.bf16.xpose.msra.mxu0 0
    %2691 = vmatprep.subr.bf16.mxu0 0
    %2692 = vmatpush1.bf16.xpose.msra.mxu0 0
    %2693 = vmatprep.subr.bf16.mxu0 0
    %2694 = vmatpush1.bf16.xpose.msra.mxu0 0
    %2695 = vmatprep.subr.bf16.mxu0 0
    %2696 = vmatpush1.bf16.xpose.msra.mxu0 0
    %2697 = vmatprep.subr.bf16.mxu0 0
    %2698 = vmatpush1.bf16.xpose.msra.mxu0 0
    %2699 = vmatprep.subr.bf16.mxu0 0
    %2700 = vmatpush1.bf16.xpose.msra.mxu0 0
    %2701 = vmatprep.subr.bf16.mxu0 0
    %2702 = vmatpush1.bf16.xpose.msra.mxu0 0
    %2703 = vmatprep.subr.bf16.mxu0 0
    %2704 = vmatpush1.bf16.xpose.msra.mxu0 0
    %2705 = vmatprep.subr.bf16.mxu0 0
    %2706 = vmatpush1.bf16.xpose.msra.mxu0 0
    %2707 = vmatprep.subr.bf16.mxu0 0
    %2708 = vmatpush1.bf16.xpose.msra.mxu0 0
    %2709 = vmatprep.subr.bf16.mxu0 0
    %2710 = vmatpush1.bf16.xpose.msra.mxu0 0
    %2711 = vmatprep.subr.bf16.mxu0 0
    %2712 = vmatpush1.bf16.xpose.msra.mxu0 0
    %2713 = vmatprep.mubr.bf16.mxu0 %v835
    %2714 = vmatmul.mubr.bf16.gmra.mrb[0].mxu0 %v834
    %v2715 = vpop.f32.mrb[0].mxu0
    %v2716 = vadd.f32 %v2676, %v2715
    %v2717 = vpop.f32.mrb[0].mxu0
    %v2718 = vpop.f32.mrb[0].mxu0
    %v2719 = vpop.f32.mrb[0].mxu0
    %2720 = vdwg.mxu0
    %2721 = vmatprep.subr.bf16.mxu0 %v1478
    %2722 = vmatpush1.bf16.xpose.msra.mxu0 %v1477
    %2723 = vmatprep.subr.bf16.mxu0 0
    %2724 = vmatpush1.bf16.xpose.msra.mxu0 0
    %2725 = vmatprep.subr.bf16.mxu0 0
    %2726 = vmatpush1.bf16.xpose.msra.mxu0 0
    %2727 = vmatprep.subr.bf16.mxu0 0
    %2728 = vmatpush1.bf16.xpose.msra.mxu0 0
    %2729 = vmatprep.subr.bf16.mxu0 0
    %2730 = vmatpush1.bf16.xpose.msra.mxu0 0
    %2731 = vmatprep.subr.bf16.mxu0 0
    %2732 = vmatpush1.bf16.xpose.msra.mxu0 0
    %2733 = vmatprep.subr.bf16.mxu0 0
    %2734 = vmatpush1.bf16.xpose.msra.mxu0 0
    %2735 = vmatprep.subr.bf16.mxu0 0
    %2736 = vmatpush1.bf16.xpose.msra.mxu0 0
    %2737 = vmatprep.subr.bf16.mxu0 0
    %2738 = vmatpush1.bf16.xpose.msra.mxu0 0
    %2739 = vmatprep.subr.bf16.mxu0 0
    %2740 = vmatpush1.bf16.xpose.msra.mxu0 0
    %2741 = vmatprep.subr.bf16.mxu0 0
    %2742 = vmatpush1.bf16.xpose.msra.mxu0 0
    %2743 = vmatprep.subr.bf16.mxu0 0
    %2744 = vmatpush1.bf16.xpose.msra.mxu0 0
    %2745 = vmatprep.subr.bf16.mxu0 0
    %2746 = vmatpush1.bf16.xpose.msra.mxu0 0
    %2747 = vmatprep.subr.bf16.mxu0 0
    %2748 = vmatpush1.bf16.xpose.msra.mxu0 0
    %2749 = vmatprep.subr.bf16.mxu0 0
    %2750 = vmatpush1.bf16.xpose.msra.mxu0 0
    %2751 = vmatprep.subr.bf16.mxu0 0
    %2752 = vmatpush1.bf16.xpose.msra.mxu0 0
    %2753 = vmatprep.mubr.bf16.mxu0 %v837
    %2754 = vmatmul.mubr.bf16.gmra.mrb[0].mxu0 %v836
    %v2755 = vpop.f32.mrb[0].mxu0
    %v2756 = vadd.f32 %v2716, %v2755
    %v2757 = vpop.f32.mrb[0].mxu0
    %v2758 = vpop.f32.mrb[0].mxu0
    %v2759 = vpop.f32.mrb[0].mxu0
    %2760 = vdwg.mxu0
    %2761 = vmatprep.subr.bf16.mxu0 %v1480
    %2762 = vmatpush1.bf16.xpose.msra.mxu0 %v1479
    %2763 = vmatprep.subr.bf16.mxu0 0
    %2764 = vmatpush1.bf16.xpose.msra.mxu0 0
    %2765 = vmatprep.subr.bf16.mxu0 0
    %2766 = vmatpush1.bf16.xpose.msra.mxu0 0
    %2767 = vmatprep.subr.bf16.mxu0 0
    %2768 = vmatpush1.bf16.xpose.msra.mxu0 0
    %2769 = vmatprep.subr.bf16.mxu0 0
    %2770 = vmatpush1.bf16.xpose.msra.mxu0 0
    %2771 = vmatprep.subr.bf16.mxu0 0
    %2772 = vmatpush1.bf16.xpose.msra.mxu0 0
    %2773 = vmatprep.subr.bf16.mxu0 0
    %2774 = vmatpush1.bf16.xpose.msra.mxu0 0
    %2775 = vmatprep.subr.bf16.mxu0 0
    %2776 = vmatpush1.bf16.xpose.msra.mxu0 0
    %2777 = vmatprep.subr.bf16.mxu0 0
    %2778 = vmatpush1.bf16.xpose.msra.mxu0 0
    %2779 = vmatprep.subr.bf16.mxu0 0
    %2780 = vmatpush1.bf16.xpose.msra.mxu0 0
    %2781 = vmatprep.subr.bf16.mxu0 0
    %2782 = vmatpush1.bf16.xpose.msra.mxu0 0
    %2783 = vmatprep.subr.bf16.mxu0 0
    %2784 = vmatpush1.bf16.xpose.msra.mxu0 0
    %2785 = vmatprep.subr.bf16.mxu0 0
    %2786 = vmatpush1.bf16.xpose.msra.mxu0 0
    %2787 = vmatprep.subr.bf16.mxu0 0
    %2788 = vmatpush1.bf16.xpose.msra.mxu0 0
    %2789 = vmatprep.subr.bf16.mxu0 0
    %2790 = vmatpush1.bf16.xpose.msra.mxu0 0
    %2791 = vmatprep.subr.bf16.mxu0 0
    %2792 = vmatpush1.bf16.xpose.msra.mxu0 0
    %2793 = vmatprep.mubr.bf16.mxu0 %v839
    %2794 = vmatmul.mubr.bf16.gmra.mrb[0].mxu0 %v838
    %v2795 = vpop.f32.mrb[0].mxu0
    %v2796 = vadd.f32 %v2756, %v2795
    %v2797 = vpop.f32.mrb[0].mxu0
    %v2798 = vpop.f32.mrb[0].mxu0
    %v2799 = vpop.f32.mrb[0].mxu0
    %2800 = vdwg.mxu0
    %2801 = vmatprep.subr.bf16.mxu0 %v1482
    %2802 = vmatpush1.bf16.xpose.msra.mxu0 %v1481
    %2803 = vmatprep.subr.bf16.mxu0 0
    %2804 = vmatpush1.bf16.xpose.msra.mxu0 0
    %2805 = vmatprep.subr.bf16.mxu0 0
    %2806 = vmatpush1.bf16.xpose.msra.mxu0 0
    %2807 = vmatprep.subr.bf16.mxu0 0
    %2808 = vmatpush1.bf16.xpose.msra.mxu0 0
    %2809 = vmatprep.subr.bf16.mxu0 0
    %2810 = vmatpush1.bf16.xpose.msra.mxu0 0
    %2811 = vmatprep.subr.bf16.mxu0 0
    %2812 = vmatpush1.bf16.xpose.msra.mxu0 0
    %2813 = vmatprep.subr.bf16.mxu0 0
    %2814 = vmatpush1.bf16.xpose.msra.mxu0 0
    %2815 = vmatprep.subr.bf16.mxu0 0
    %2816 = vmatpush1.bf16.xpose.msra.mxu0 0
    %2817 = vmatprep.subr.bf16.mxu0 0
    %2818 = vmatpush1.bf16.xpose.msra.mxu0 0
    %2819 = vmatprep.subr.bf16.mxu0 0
    %2820 = vmatpush1.bf16.xpose.msra.mxu0 0
    %2821 = vmatprep.subr.bf16.mxu0 0
    %2822 = vmatpush1.bf16.xpose.msra.mxu0 0
    %2823 = vmatprep.subr.bf16.mxu0 0
    %2824 = vmatpush1.bf16.xpose.msra.mxu0 0
    %2825 = vmatprep.subr.bf16.mxu0 0
    %2826 = vmatpush1.bf16.xpose.msra.mxu0 0
    %2827 = vmatprep.subr.bf16.mxu0 0
    %2828 = vmatpush1.bf16.xpose.msra.mxu0 0
    %2829 = vmatprep.subr.bf16.mxu0 0
    %2830 = vmatpush1.bf16.xpose.msra.mxu0 0
    %2831 = vmatprep.subr.bf16.mxu0 0
    %2832 = vmatpush1.bf16.xpose.msra.mxu0 0
    %2833 = vmatprep.mubr.bf16.mxu0 %v841
    %2834 = vmatmul.mubr.bf16.gmra.mrb[0].mxu0 %v840
    %v2835 = vpop.f32.mrb[0].mxu0
    %v2836 = vadd.f32 %v2796, %v2835
    %v2837 = vpop.f32.mrb[0].mxu0
    %v2838 = vpop.f32.mrb[0].mxu0
    %v2839 = vpop.f32.mrb[0].mxu0
    %2840 = vdwg.mxu0
    %2841 = vmatprep.subr.bf16.mxu0 %v1484
    %2842 = vmatpush1.bf16.xpose.msra.mxu0 %v1483
    %2843 = vmatprep.subr.bf16.mxu0 0
    %2844 = vmatpush1.bf16.xpose.msra.mxu0 0
    %2845 = vmatprep.subr.bf16.mxu0 0
    %2846 = vmatpush1.bf16.xpose.msra.mxu0 0
    %2847 = vmatprep.subr.bf16.mxu0 0
    %2848 = vmatpush1.bf16.xpose.msra.mxu0 0
    %2849 = vmatprep.subr.bf16.mxu0 0
    %2850 = vmatpush1.bf16.xpose.msra.mxu0 0
    %2851 = vmatprep.subr.bf16.mxu0 0
    %2852 = vmatpush1.bf16.xpose.msra.mxu0 0
    %2853 = vmatprep.subr.bf16.mxu0 0
    %2854 = vmatpush1.bf16.xpose.msra.mxu0 0
    %2855 = vmatprep.subr.bf16.mxu0 0
    %2856 = vmatpush1.bf16.xpose.msra.mxu0 0
    %2857 = vmatprep.subr.bf16.mxu0 0
    %2858 = vmatpush1.bf16.xpose.msra.mxu0 0
    %2859 = vmatprep.subr.bf16.mxu0 0
    %2860 = vmatpush1.bf16.xpose.msra.mxu0 0
    %2861 = vmatprep.subr.bf16.mxu0 0
    %2862 = vmatpush1.bf16.xpose.msra.mxu0 0
    %2863 = vmatprep.subr.bf16.mxu0 0
    %2864 = vmatpush1.bf16.xpose.msra.mxu0 0
    %2865 = vmatprep.subr.bf16.mxu0 0
    %2866 = vmatpush1.bf16.xpose.msra.mxu0 0
    %2867 = vmatprep.subr.bf16.mxu0 0
    %2868 = vmatpush1.bf16.xpose.msra.mxu0 0
    %2869 = vmatprep.subr.bf16.mxu0 0
    %2870 = vmatpush1.bf16.xpose.msra.mxu0 0
    %2871 = vmatprep.subr.bf16.mxu0 0
    %2872 = vmatpush1.bf16.xpose.msra.mxu0 0
    %2873 = vmatprep.mubr.bf16.mxu0 %v843
    %2874 = vmatmul.mubr.bf16.gmra.mrb[0].mxu0 %v842
    %v2875 = vpop.f32.mrb[0].mxu0
    %v2876 = vadd.f32 %v2836, %v2875
    %v2877 = vpop.f32.mrb[0].mxu0
    %v2878 = vpop.f32.mrb[0].mxu0
    %v2879 = vpop.f32.mrb[0].mxu0
    %2880 = vdwg.mxu0
    %2881 = vmatprep.subr.bf16.mxu0 %v1486
    %2882 = vmatpush1.bf16.xpose.msra.mxu0 %v1485
    %2883 = vmatprep.subr.bf16.mxu0 0
    %2884 = vmatpush1.bf16.xpose.msra.mxu0 0
    %2885 = vmatprep.subr.bf16.mxu0 0
    %2886 = vmatpush1.bf16.xpose.msra.mxu0 0
    %2887 = vmatprep.subr.bf16.mxu0 0
    %2888 = vmatpush1.bf16.xpose.msra.mxu0 0
    %2889 = vmatprep.subr.bf16.mxu0 0
    %2890 = vmatpush1.bf16.xpose.msra.mxu0 0
    %2891 = vmatprep.subr.bf16.mxu0 0
    %2892 = vmatpush1.bf16.xpose.msra.mxu0 0
    %2893 = vmatprep.subr.bf16.mxu0 0
    %2894 = vmatpush1.bf16.xpose.msra.mxu0 0
    %2895 = vmatprep.subr.bf16.mxu0 0
    %2896 = vmatpush1.bf16.xpose.msra.mxu0 0
    %2897 = vmatprep.subr.bf16.mxu0 0
    %2898 = vmatpush1.bf16.xpose.msra.mxu0 0
    %2899 = vmatprep.subr.bf16.mxu0 0
    %2900 = vmatpush1.bf16.xpose.msra.mxu0 0
    %2901 = vmatprep.subr.bf16.mxu0 0
    %2902 = vmatpush1.bf16.xpose.msra.mxu0 0
    %2903 = vmatprep.subr.bf16.mxu0 0
    %2904 = vmatpush1.bf16.xpose.msra.mxu0 0
    %2905 = vmatprep.subr.bf16.mxu0 0
    %2906 = vmatpush1.bf16.xpose.msra.mxu0 0
    %2907 = vmatprep.subr.bf16.mxu0 0
    %2908 = vmatpush1.bf16.xpose.msra.mxu0 0
    %2909 = vmatprep.subr.bf16.mxu0 0
    %2910 = vmatpush1.bf16.xpose.msra.mxu0 0
    %2911 = vmatprep.subr.bf16.mxu0 0
    %2912 = vmatpush1.bf16.xpose.msra.mxu0 0
    %2913 = vmatprep.mubr.bf16.mxu0 %v845
    %2914 = vmatmul.mubr.bf16.gmra.mrb[0].mxu0 %v844
    %v2915 = vpop.f32.mrb[0].mxu0
    %v2916 = vadd.f32 %v2876, %v2915
    %v2917 = vpop.f32.mrb[0].mxu0
    %v2918 = vpop.f32.mrb[0].mxu0
    %v2919 = vpop.f32.mrb[0].mxu0
    %2920 = vdwg.mxu0
    %2921 = vmatprep.subr.bf16.mxu0 %v1488
    %2922 = vmatpush1.bf16.xpose.msra.mxu0 %v1487
    %2923 = vmatprep.subr.bf16.mxu0 0
    %2924 = vmatpush1.bf16.xpose.msra.mxu0 0
    %2925 = vmatprep.subr.bf16.mxu0 0
    %2926 = vmatpush1.bf16.xpose.msra.mxu0 0
    %2927 = vmatprep.subr.bf16.mxu0 0
    %2928 = vmatpush1.bf16.xpose.msra.mxu0 0
    %2929 = vmatprep.subr.bf16.mxu0 0
    %2930 = vmatpush1.bf16.xpose.msra.mxu0 0
    %2931 = vmatprep.subr.bf16.mxu0 0
    %2932 = vmatpush1.bf16.xpose.msra.mxu0 0
    %2933 = vmatprep.subr.bf16.mxu0 0
    %2934 = vmatpush1.bf16.xpose.msra.mxu0 0
    %2935 = vmatprep.subr.bf16.mxu0 0
    %2936 = vmatpush1.bf16.xpose.msra.mxu0 0
    %2937 = vmatprep.subr.bf16.mxu0 0
    %2938 = vmatpush1.bf16.xpose.msra.mxu0 0
    %2939 = vmatprep.subr.bf16.mxu0 0
    %2940 = vmatpush1.bf16.xpose.msra.mxu0 0
    %2941 = vmatprep.subr.bf16.mxu0 0
    %2942 = vmatpush1.bf16.xpose.msra.mxu0 0
    %2943 = vmatprep.subr.bf16.mxu0 0
    %2944 = vmatpush1.bf16.xpose.msra.mxu0 0
    %2945 = vmatprep.subr.bf16.mxu0 0
    %2946 = vmatpush1.bf16.xpose.msra.mxu0 0
    %2947 = vmatprep.subr.bf16.mxu0 0
    %2948 = vmatpush1.bf16.xpose.msra.mxu0 0
    %2949 = vmatprep.subr.bf16.mxu0 0
    %2950 = vmatpush1.bf16.xpose.msra.mxu0 0
    %2951 = vmatprep.subr.bf16.mxu0 0
    %2952 = vmatpush1.bf16.xpose.msra.mxu0 0
    %2953 = vmatprep.mubr.bf16.mxu0 %v847
    %2954 = vmatmul.mubr.bf16.gmra.mrb[0].mxu0 %v846
    %v2955 = vpop.f32.mrb[0].mxu0
    %v2956 = vadd.f32 %v2916, %v2955
    %v2957 = vpop.f32.mrb[0].mxu0
    %v2958 = vpop.f32.mrb[0].mxu0
    %v2959 = vpop.f32.mrb[0].mxu0
    %2960 = vdwg.mxu0
    %2961 = vmatprep.subr.bf16.mxu0 %v1490
    %2962 = vmatpush1.bf16.xpose.msra.mxu0 %v1489
    %2963 = vmatprep.subr.bf16.mxu0 0
    %2964 = vmatpush1.bf16.xpose.msra.mxu0 0
    %2965 = vmatprep.subr.bf16.mxu0 0
    %2966 = vmatpush1.bf16.xpose.msra.mxu0 0
    %2967 = vmatprep.subr.bf16.mxu0 0
    %2968 = vmatpush1.bf16.xpose.msra.mxu0 0
    %2969 = vmatprep.subr.bf16.mxu0 0
    %2970 = vmatpush1.bf16.xpose.msra.mxu0 0
    %2971 = vmatprep.subr.bf16.mxu0 0
    %2972 = vmatpush1.bf16.xpose.msra.mxu0 0
    %2973 = vmatprep.subr.bf16.mxu0 0
    %2974 = vmatpush1.bf16.xpose.msra.mxu0 0
    %2975 = vmatprep.subr.bf16.mxu0 0
    %2976 = vmatpush1.bf16.xpose.msra.mxu0 0
    %2977 = vmatprep.subr.bf16.mxu0 0
    %2978 = vmatpush1.bf16.xpose.msra.mxu0 0
    %2979 = vmatprep.subr.bf16.mxu0 0
    %2980 = vmatpush1.bf16.xpose.msra.mxu0 0
    %2981 = vmatprep.subr.bf16.mxu0 0
    %2982 = vmatpush1.bf16.xpose.msra.mxu0 0
    %2983 = vmatprep.subr.bf16.mxu0 0
    %2984 = vmatpush1.bf16.xpose.msra.mxu0 0
    %2985 = vmatprep.subr.bf16.mxu0 0
    %2986 = vmatpush1.bf16.xpose.msra.mxu0 0
    %2987 = vmatprep.subr.bf16.mxu0 0
    %2988 = vmatpush1.bf16.xpose.msra.mxu0 0
    %2989 = vmatprep.subr.bf16.mxu0 0
    %2990 = vmatpush1.bf16.xpose.msra.mxu0 0
    %2991 = vmatprep.subr.bf16.mxu0 0
    %2992 = vmatpush1.bf16.xpose.msra.mxu0 0
    %2993 = vmatprep.mubr.bf16.mxu0 %v849
    %2994 = vmatmul.mubr.bf16.gmra.mrb[0].mxu0 %v848
    %v2995 = vpop.f32.mrb[0].mxu0
    %v2996 = vadd.f32 %v2956, %v2995
    %v2997 = vpop.f32.mrb[0].mxu0
    %v2998 = vpop.f32.mrb[0].mxu0
    %v2999 = vpop.f32.mrb[0].mxu0
    %3000 = vdwg.mxu0
    %3001 = vmatprep.subr.bf16.mxu0 %v1492
    %3002 = vmatpush1.bf16.xpose.msra.mxu0 %v1491
    %3003 = vmatprep.subr.bf16.mxu0 0
    %3004 = vmatpush1.bf16.xpose.msra.mxu0 0
    %3005 = vmatprep.subr.bf16.mxu0 0
    %3006 = vmatpush1.bf16.xpose.msra.mxu0 0
    %3007 = vmatprep.subr.bf16.mxu0 0
    %3008 = vmatpush1.bf16.xpose.msra.mxu0 0
    %3009 = vmatprep.subr.bf16.mxu0 0
    %3010 = vmatpush1.bf16.xpose.msra.mxu0 0
    %3011 = vmatprep.subr.bf16.mxu0 0
    %3012 = vmatpush1.bf16.xpose.msra.mxu0 0
    %3013 = vmatprep.subr.bf16.mxu0 0
    %3014 = vmatpush1.bf16.xpose.msra.mxu0 0
    %3015 = vmatprep.subr.bf16.mxu0 0
    %3016 = vmatpush1.bf16.xpose.msra.mxu0 0
    %3017 = vmatprep.subr.bf16.mxu0 0
    %3018 = vmatpush1.bf16.xpose.msra.mxu0 0
    %3019 = vmatprep.subr.bf16.mxu0 0
    %3020 = vmatpush1.bf16.xpose.msra.mxu0 0
    %3021 = vmatprep.subr.bf16.mxu0 0
    %3022 = vmatpush1.bf16.xpose.msra.mxu0 0
    %3023 = vmatprep.subr.bf16.mxu0 0
    %3024 = vmatpush1.bf16.xpose.msra.mxu0 0
    %3025 = vmatprep.subr.bf16.mxu0 0
    %3026 = vmatpush1.bf16.xpose.msra.mxu0 0
    %3027 = vmatprep.subr.bf16.mxu0 0
    %3028 = vmatpush1.bf16.xpose.msra.mxu0 0
    %3029 = vmatprep.subr.bf16.mxu0 0
    %3030 = vmatpush1.bf16.xpose.msra.mxu0 0
    %3031 = vmatprep.subr.bf16.mxu0 0
    %3032 = vmatpush1.bf16.xpose.msra.mxu0 0
    %3033 = vmatprep.mubr.bf16.mxu0 %v851
    %3034 = vmatmul.mubr.bf16.gmra.mrb[0].mxu0 %v850
    %v3035 = vpop.f32.mrb[0].mxu0
    %v3036 = vadd.f32 %v2996, %v3035
    %v3037 = vpop.f32.mrb[0].mxu0
    %v3038 = vpop.f32.mrb[0].mxu0
    %v3039 = vpop.f32.mrb[0].mxu0
    %3040 = vdwg.mxu0
    %3041 = vmatprep.subr.bf16.mxu0 %v1494
    %3042 = vmatpush1.bf16.xpose.msra.mxu0 %v1493
    %3043 = vmatprep.subr.bf16.mxu0 0
    %3044 = vmatpush1.bf16.xpose.msra.mxu0 0
    %3045 = vmatprep.subr.bf16.mxu0 0
    %3046 = vmatpush1.bf16.xpose.msra.mxu0 0
    %3047 = vmatprep.subr.bf16.mxu0 0
    %3048 = vmatpush1.bf16.xpose.msra.mxu0 0
    %3049 = vmatprep.subr.bf16.mxu0 0
    %3050 = vmatpush1.bf16.xpose.msra.mxu0 0
    %3051 = vmatprep.subr.bf16.mxu0 0
    %3052 = vmatpush1.bf16.xpose.msra.mxu0 0
    %3053 = vmatprep.subr.bf16.mxu0 0
    %3054 = vmatpush1.bf16.xpose.msra.mxu0 0
    %3055 = vmatprep.subr.bf16.mxu0 0
    %3056 = vmatpush1.bf16.xpose.msra.mxu0 0
    %3057 = vmatprep.subr.bf16.mxu0 0
    %3058 = vmatpush1.bf16.xpose.msra.mxu0 0
    %3059 = vmatprep.subr.bf16.mxu0 0
    %3060 = vmatpush1.bf16.xpose.msra.mxu0 0
    %3061 = vmatprep.subr.bf16.mxu0 0
    %3062 = vmatpush1.bf16.xpose.msra.mxu0 0
    %3063 = vmatprep.subr.bf16.mxu0 0
    %3064 = vmatpush1.bf16.xpose.msra.mxu0 0
    %3065 = vmatprep.subr.bf16.mxu0 0
    %3066 = vmatpush1.bf16.xpose.msra.mxu0 0
    %3067 = vmatprep.subr.bf16.mxu0 0
    %3068 = vmatpush1.bf16.xpose.msra.mxu0 0
    %3069 = vmatprep.subr.bf16.mxu0 0
    %3070 = vmatpush1.bf16.xpose.msra.mxu0 0
    %3071 = vmatprep.subr.bf16.mxu0 0
    %3072 = vmatpush1.bf16.xpose.msra.mxu0 0
    %3073 = vmatprep.mubr.bf16.mxu0 %v853
    %3074 = vmatmul.mubr.bf16.gmra.mrb[0].mxu0 %v852
    %v3075 = vpop.f32.mrb[0].mxu0
    %v3076 = vadd.f32 %v3036, %v3075
    %v3077 = vpop.f32.mrb[0].mxu0
    %v3078 = vpop.f32.mrb[0].mxu0
    %v3079 = vpop.f32.mrb[0].mxu0
    %3080 = vdwg.mxu0
    %3081 = vmatprep.subr.bf16.mxu0 %v1496
    %3082 = vmatpush1.bf16.xpose.msra.mxu0 %v1495
    %3083 = vmatprep.subr.bf16.mxu0 0
    %3084 = vmatpush1.bf16.xpose.msra.mxu0 0
    %3085 = vmatprep.subr.bf16.mxu0 0
    %3086 = vmatpush1.bf16.xpose.msra.mxu0 0
    %3087 = vmatprep.subr.bf16.mxu0 0
    %3088 = vmatpush1.bf16.xpose.msra.mxu0 0
    %3089 = vmatprep.subr.bf16.mxu0 0
    %3090 = vmatpush1.bf16.xpose.msra.mxu0 0
    %3091 = vmatprep.subr.bf16.mxu0 0
    %3092 = vmatpush1.bf16.xpose.msra.mxu0 0
    %3093 = vmatprep.subr.bf16.mxu0 0
    %3094 = vmatpush1.bf16.xpose.msra.mxu0 0
    %3095 = vmatprep.subr.bf16.mxu0 0
    %3096 = vmatpush1.bf16.xpose.msra.mxu0 0
    %3097 = vmatprep.subr.bf16.mxu0 0
    %3098 = vmatpush1.bf16.xpose.msra.mxu0 0
    %3099 = vmatprep.subr.bf16.mxu0 0
    %3100 = vmatpush1.bf16.xpose.msra.mxu0 0
    %3101 = vmatprep.subr.bf16.mxu0 0
    %3102 = vmatpush1.bf16.xpose.msra.mxu0 0
    %3103 = vmatprep.subr.bf16.mxu0 0
    %3104 = vmatpush1.bf16.xpose.msra.mxu0 0
    %3105 = vmatprep.subr.bf16.mxu0 0
    %3106 = vmatpush1.bf16.xpose.msra.mxu0 0
    %3107 = vmatprep.subr.bf16.mxu0 0
    %3108 = vmatpush1.bf16.xpose.msra.mxu0 0
    %3109 = vmatprep.subr.bf16.mxu0 0
    %3110 = vmatpush1.bf16.xpose.msra.mxu0 0
    %3111 = vmatprep.subr.bf16.mxu0 0
    %3112 = vmatpush1.bf16.xpose.msra.mxu0 0
    %3113 = vmatprep.mubr.bf16.mxu0 %v855
    %3114 = vmatmul.mubr.bf16.gmra.mrb[0].mxu0 %v854
    %v3115 = vpop.f32.mrb[0].mxu0
    %v3116 = vadd.f32 %v3076, %v3115
    %v3117 = vpop.f32.mrb[0].mxu0
    %v3118 = vpop.f32.mrb[0].mxu0
    %v3119 = vpop.f32.mrb[0].mxu0
    %3120 = vdwg.mxu0
    %3121 = vmatprep.subr.bf16.mxu0 %v1498
    %3122 = vmatpush1.bf16.xpose.msra.mxu0 %v1497
    %3123 = vmatprep.subr.bf16.mxu0 0
    %3124 = vmatpush1.bf16.xpose.msra.mxu0 0
    %3125 = vmatprep.subr.bf16.mxu0 0
    %3126 = vmatpush1.bf16.xpose.msra.mxu0 0
    %3127 = vmatprep.subr.bf16.mxu0 0
    %3128 = vmatpush1.bf16.xpose.msra.mxu0 0
    %3129 = vmatprep.subr.bf16.mxu0 0
    %3130 = vmatpush1.bf16.xpose.msra.mxu0 0
    %3131 = vmatprep.subr.bf16.mxu0 0
    %3132 = vmatpush1.bf16.xpose.msra.mxu0 0
    %3133 = vmatprep.subr.bf16.mxu0 0
    %3134 = vmatpush1.bf16.xpose.msra.mxu0 0
    %3135 = vmatprep.subr.bf16.mxu0 0
    %3136 = vmatpush1.bf16.xpose.msra.mxu0 0
    %3137 = vmatprep.subr.bf16.mxu0 0
    %3138 = vmatpush1.bf16.xpose.msra.mxu0 0
    %3139 = vmatprep.subr.bf16.mxu0 0
    %3140 = vmatpush1.bf16.xpose.msra.mxu0 0
    %3141 = vmatprep.subr.bf16.mxu0 0
    %3142 = vmatpush1.bf16.xpose.msra.mxu0 0
    %3143 = vmatprep.subr.bf16.mxu0 0
    %3144 = vmatpush1.bf16.xpose.msra.mxu0 0
    %3145 = vmatprep.subr.bf16.mxu0 0
    %3146 = vmatpush1.bf16.xpose.msra.mxu0 0
    %3147 = vmatprep.subr.bf16.mxu0 0
    %3148 = vmatpush1.bf16.xpose.msra.mxu0 0
    %3149 = vmatprep.subr.bf16.mxu0 0
    %3150 = vmatpush1.bf16.xpose.msra.mxu0 0
    %3151 = vmatprep.subr.bf16.mxu0 0
    %3152 = vmatpush1.bf16.xpose.msra.mxu0 0
    %3153 = vmatprep.mubr.bf16.mxu0 %v857
    %3154 = vmatmul.mubr.bf16.gmra.mrb[0].mxu0 %v856
    %v3155 = vpop.f32.mrb[0].mxu0
    %v3156 = vadd.f32 %v3116, %v3155
    %v3157 = vpop.f32.mrb[0].mxu0
    %v3158 = vpop.f32.mrb[0].mxu0
    %v3159 = vpop.f32.mrb[0].mxu0
    %3160 = vdwg.mxu0
    %3161 = vmatprep.subr.bf16.mxu0 %v1500
    %3162 = vmatpush1.bf16.xpose.msra.mxu0 %v1499
    %3163 = vmatprep.subr.bf16.mxu0 0
    %3164 = vmatpush1.bf16.xpose.msra.mxu0 0
    %3165 = vmatprep.subr.bf16.mxu0 0
    %3166 = vmatpush1.bf16.xpose.msra.mxu0 0
    %3167 = vmatprep.subr.bf16.mxu0 0
    %3168 = vmatpush1.bf16.xpose.msra.mxu0 0
    %3169 = vmatprep.subr.bf16.mxu0 0
    %3170 = vmatpush1.bf16.xpose.msra.mxu0 0
    %3171 = vmatprep.subr.bf16.mxu0 0
    %3172 = vmatpush1.bf16.xpose.msra.mxu0 0
    %3173 = vmatprep.subr.bf16.mxu0 0
    %3174 = vmatpush1.bf16.xpose.msra.mxu0 0
    %3175 = vmatprep.subr.bf16.mxu0 0
    %3176 = vmatpush1.bf16.xpose.msra.mxu0 0
    %3177 = vmatprep.subr.bf16.mxu0 0
    %3178 = vmatpush1.bf16.xpose.msra.mxu0 0
    %3179 = vmatprep.subr.bf16.mxu0 0
    %3180 = vmatpush1.bf16.xpose.msra.mxu0 0
    %3181 = vmatprep.subr.bf16.mxu0 0
    %3182 = vmatpush1.bf16.xpose.msra.mxu0 0
    %3183 = vmatprep.subr.bf16.mxu0 0
    %3184 = vmatpush1.bf16.xpose.msra.mxu0 0
    %3185 = vmatprep.subr.bf16.mxu0 0
    %3186 = vmatpush1.bf16.xpose.msra.mxu0 0
    %3187 = vmatprep.subr.bf16.mxu0 0
    %3188 = vmatpush1.bf16.xpose.msra.mxu0 0
    %3189 = vmatprep.subr.bf16.mxu0 0
    %3190 = vmatpush1.bf16.xpose.msra.mxu0 0
    %3191 = vmatprep.subr.bf16.mxu0 0
    %3192 = vmatpush1.bf16.xpose.msra.mxu0 0
    %3193 = vmatprep.mubr.bf16.mxu0 %v859
    %3194 = vmatmul.mubr.bf16.gmra.mrb[0].mxu0 %v858
    %v3195 = vpop.f32.mrb[0].mxu0
    %v3196 = vadd.f32 %v3156, %v3195
    %v3197 = vpop.f32.mrb[0].mxu0
    %v3198 = vpop.f32.mrb[0].mxu0
    %v3199 = vpop.f32.mrb[0].mxu0
    %3200 = vdwg.mxu0
    %3201 = vmatprep.subr.bf16.mxu0 %v1502
    %3202 = vmatpush1.bf16.xpose.msra.mxu0 %v1501
    %3203 = vmatprep.subr.bf16.mxu0 0
    %3204 = vmatpush1.bf16.xpose.msra.mxu0 0
    %3205 = vmatprep.subr.bf16.mxu0 0
    %3206 = vmatpush1.bf16.xpose.msra.mxu0 0
    %3207 = vmatprep.subr.bf16.mxu0 0
    %3208 = vmatpush1.bf16.xpose.msra.mxu0 0
    %3209 = vmatprep.subr.bf16.mxu0 0
    %3210 = vmatpush1.bf16.xpose.msra.mxu0 0
    %3211 = vmatprep.subr.bf16.mxu0 0
    %3212 = vmatpush1.bf16.xpose.msra.mxu0 0
    %3213 = vmatprep.subr.bf16.mxu0 0
    %3214 = vmatpush1.bf16.xpose.msra.mxu0 0
    %3215 = vmatprep.subr.bf16.mxu0 0
    %3216 = vmatpush1.bf16.xpose.msra.mxu0 0
    %3217 = vmatprep.subr.bf16.mxu0 0
    %3218 = vmatpush1.bf16.xpose.msra.mxu0 0
    %3219 = vmatprep.subr.bf16.mxu0 0
    %3220 = vmatpush1.bf16.xpose.msra.mxu0 0
    %3221 = vmatprep.subr.bf16.mxu0 0
    %3222 = vmatpush1.bf16.xpose.msra.mxu0 0
    %3223 = vmatprep.subr.bf16.mxu0 0
    %3224 = vmatpush1.bf16.xpose.msra.mxu0 0
    %3225 = vmatprep.subr.bf16.mxu0 0
    %3226 = vmatpush1.bf16.xpose.msra.mxu0 0
    %3227 = vmatprep.subr.bf16.mxu0 0
    %3228 = vmatpush1.bf16.xpose.msra.mxu0 0
    %3229 = vmatprep.subr.bf16.mxu0 0
    %3230 = vmatpush1.bf16.xpose.msra.mxu0 0
    %3231 = vmatprep.subr.bf16.mxu0 0
    %3232 = vmatpush1.bf16.xpose.msra.mxu0 0
    %3233 = vmatprep.mubr.bf16.mxu0 %v861
    %3234 = vmatmul.mubr.bf16.gmra.mrb[0].mxu0 %v860
    %v3235 = vpop.f32.mrb[0].mxu0
    %v3236 = vadd.f32 %v3196, %v3235
    %v3237 = vpop.f32.mrb[0].mxu0
    %v3238 = vpop.f32.mrb[0].mxu0
    %v3239 = vpop.f32.mrb[0].mxu0
    %3240 = vdwg.mxu0
    %3241 = vmatprep.subr.bf16.mxu0 %v1504
    %3242 = vmatpush1.bf16.xpose.msra.mxu0 %v1503
    %3243 = vmatprep.subr.bf16.mxu0 0
    %3244 = vmatpush1.bf16.xpose.msra.mxu0 0
    %3245 = vmatprep.subr.bf16.mxu0 0
    %3246 = vmatpush1.bf16.xpose.msra.mxu0 0
    %3247 = vmatprep.subr.bf16.mxu0 0
    %3248 = vmatpush1.bf16.xpose.msra.mxu0 0
    %3249 = vmatprep.subr.bf16.mxu0 0
    %3250 = vmatpush1.bf16.xpose.msra.mxu0 0
    %3251 = vmatprep.subr.bf16.mxu0 0
    %3252 = vmatpush1.bf16.xpose.msra.mxu0 0
    %3253 = vmatprep.subr.bf16.mxu0 0
    %3254 = vmatpush1.bf16.xpose.msra.mxu0 0
    %3255 = vmatprep.subr.bf16.mxu0 0
    %3256 = vmatpush1.bf16.xpose.msra.mxu0 0
    %3257 = vmatprep.subr.bf16.mxu0 0
    %3258 = vmatpush1.bf16.xpose.msra.mxu0 0
    %3259 = vmatprep.subr.bf16.mxu0 0
    %3260 = vmatpush1.bf16.xpose.msra.mxu0 0
    %3261 = vmatprep.subr.bf16.mxu0 0
    %3262 = vmatpush1.bf16.xpose.msra.mxu0 0
    %3263 = vmatprep.subr.bf16.mxu0 0
    %3264 = vmatpush1.bf16.xpose.msra.mxu0 0
    %3265 = vmatprep.subr.bf16.mxu0 0
    %3266 = vmatpush1.bf16.xpose.msra.mxu0 0
    %3267 = vmatprep.subr.bf16.mxu0 0
    %3268 = vmatpush1.bf16.xpose.msra.mxu0 0
    %3269 = vmatprep.subr.bf16.mxu0 0
    %3270 = vmatpush1.bf16.xpose.msra.mxu0 0
    %3271 = vmatprep.subr.bf16.mxu0 0
    %3272 = vmatpush1.bf16.xpose.msra.mxu0 0
    %3273 = vmatprep.mubr.bf16.mxu0 %v863
    %3274 = vmatmul.mubr.bf16.gmra.mrb[0].mxu0 %v862
    %v3275 = vpop.f32.mrb[0].mxu0
    %v3276 = vadd.f32 %v3236, %v3275
    %v3277 = vpop.f32.mrb[0].mxu0
    %v3278 = vpop.f32.mrb[0].mxu0
    %v3279 = vpop.f32.mrb[0].mxu0
    %3280 = vdwg.mxu0
    %3281 = vmatprep.subr.bf16.mxu0 %v1506
    %3282 = vmatpush1.bf16.xpose.msra.mxu0 %v1505
    %3283 = vmatprep.subr.bf16.mxu0 0
    %3284 = vmatpush1.bf16.xpose.msra.mxu0 0
    %3285 = vmatprep.subr.bf16.mxu0 0
    %3286 = vmatpush1.bf16.xpose.msra.mxu0 0
    %3287 = vmatprep.subr.bf16.mxu0 0
    %3288 = vmatpush1.bf16.xpose.msra.mxu0 0
    %3289 = vmatprep.subr.bf16.mxu0 0
    %3290 = vmatpush1.bf16.xpose.msra.mxu0 0
    %3291 = vmatprep.subr.bf16.mxu0 0
    %3292 = vmatpush1.bf16.xpose.msra.mxu0 0
    %3293 = vmatprep.subr.bf16.mxu0 0
    %3294 = vmatpush1.bf16.xpose.msra.mxu0 0
    %3295 = vmatprep.subr.bf16.mxu0 0
    %3296 = vmatpush1.bf16.xpose.msra.mxu0 0
    %3297 = vmatprep.subr.bf16.mxu0 0
    %3298 = vmatpush1.bf16.xpose.msra.mxu0 0
    %3299 = vmatprep.subr.bf16.mxu0 0
    %3300 = vmatpush1.bf16.xpose.msra.mxu0 0
    %3301 = vmatprep.subr.bf16.mxu0 0
    %3302 = vmatpush1.bf16.xpose.msra.mxu0 0
    %3303 = vmatprep.subr.bf16.mxu0 0
    %3304 = vmatpush1.bf16.xpose.msra.mxu0 0
    %3305 = vmatprep.subr.bf16.mxu0 0
    %3306 = vmatpush1.bf16.xpose.msra.mxu0 0
    %3307 = vmatprep.subr.bf16.mxu0 0
    %3308 = vmatpush1.bf16.xpose.msra.mxu0 0
    %3309 = vmatprep.subr.bf16.mxu0 0
    %3310 = vmatpush1.bf16.xpose.msra.mxu0 0
    %3311 = vmatprep.subr.bf16.mxu0 0
    %3312 = vmatpush1.bf16.xpose.msra.mxu0 0
    %3313 = vmatprep.mubr.bf16.mxu0 %v865
    %3314 = vmatmul.mubr.bf16.gmra.mrb[0].mxu0 %v864
    %v3315 = vpop.f32.mrb[0].mxu0
    %v3316 = vadd.f32 %v3276, %v3315
    %v3317 = vpop.f32.mrb[0].mxu0
    %v3318 = vpop.f32.mrb[0].mxu0
    %v3319 = vpop.f32.mrb[0].mxu0
    %3320 = vdwg.mxu0
    %3321 = vmatprep.subr.bf16.mxu0 %v1508
    %3322 = vmatpush1.bf16.xpose.msra.mxu0 %v1507
    %3323 = vmatprep.subr.bf16.mxu0 0
    %3324 = vmatpush1.bf16.xpose.msra.mxu0 0
    %3325 = vmatprep.subr.bf16.mxu0 0
    %3326 = vmatpush1.bf16.xpose.msra.mxu0 0
    %3327 = vmatprep.subr.bf16.mxu0 0
    %3328 = vmatpush1.bf16.xpose.msra.mxu0 0
    %3329 = vmatprep.subr.bf16.mxu0 0
    %3330 = vmatpush1.bf16.xpose.msra.mxu0 0
    %3331 = vmatprep.subr.bf16.mxu0 0
    %3332 = vmatpush1.bf16.xpose.msra.mxu0 0
    %3333 = vmatprep.subr.bf16.mxu0 0
    %3334 = vmatpush1.bf16.xpose.msra.mxu0 0
    %3335 = vmatprep.subr.bf16.mxu0 0
    %3336 = vmatpush1.bf16.xpose.msra.mxu0 0
    %3337 = vmatprep.subr.bf16.mxu0 0
    %3338 = vmatpush1.bf16.xpose.msra.mxu0 0
    %3339 = vmatprep.subr.bf16.mxu0 0
    %3340 = vmatpush1.bf16.xpose.msra.mxu0 0
    %3341 = vmatprep.subr.bf16.mxu0 0
    %3342 = vmatpush1.bf16.xpose.msra.mxu0 0
    %3343 = vmatprep.subr.bf16.mxu0 0
    %3344 = vmatpush1.bf16.xpose.msra.mxu0 0
    %3345 = vmatprep.subr.bf16.mxu0 0
    %3346 = vmatpush1.bf16.xpose.msra.mxu0 0
    %3347 = vmatprep.subr.bf16.mxu0 0
    %3348 = vmatpush1.bf16.xpose.msra.mxu0 0
    %3349 = vmatprep.subr.bf16.mxu0 0
    %3350 = vmatpush1.bf16.xpose.msra.mxu0 0
    %3351 = vmatprep.subr.bf16.mxu0 0
    %3352 = vmatpush1.bf16.xpose.msra.mxu0 0
    %3353 = vmatprep.mubr.bf16.mxu0 %v867
    %3354 = vmatmul.mubr.bf16.gmra.mrb[0].mxu0 %v866
    %v3355 = vpop.f32.mrb[0].mxu0
    %v3356 = vadd.f32 %v3316, %v3355
    %v3357 = vpop.f32.mrb[0].mxu0
    %v3358 = vpop.f32.mrb[0].mxu0
    %v3359 = vpop.f32.mrb[0].mxu0
    %3360 = vdwg.mxu0
    %3361 = vmatprep.subr.bf16.mxu0 %v1510
    %3362 = vmatpush1.bf16.xpose.msra.mxu0 %v1509
    %3363 = vmatprep.subr.bf16.mxu0 0
    %3364 = vmatpush1.bf16.xpose.msra.mxu0 0
    %3365 = vmatprep.subr.bf16.mxu0 0
    %3366 = vmatpush1.bf16.xpose.msra.mxu0 0
    %3367 = vmatprep.subr.bf16.mxu0 0
    %3368 = vmatpush1.bf16.xpose.msra.mxu0 0
    %3369 = vmatprep.subr.bf16.mxu0 0
    %3370 = vmatpush1.bf16.xpose.msra.mxu0 0
    %3371 = vmatprep.subr.bf16.mxu0 0
    %3372 = vmatpush1.bf16.xpose.msra.mxu0 0
    %3373 = vmatprep.subr.bf16.mxu0 0
    %3374 = vmatpush1.bf16.xpose.msra.mxu0 0
    %3375 = vmatprep.subr.bf16.mxu0 0
    %3376 = vmatpush1.bf16.xpose.msra.mxu0 0
    %3377 = vmatprep.subr.bf16.mxu0 0
    %3378 = vmatpush1.bf16.xpose.msra.mxu0 0
    %3379 = vmatprep.subr.bf16.mxu0 0
    %3380 = vmatpush1.bf16.xpose.msra.mxu0 0
    %3381 = vmatprep.subr.bf16.mxu0 0
    %3382 = vmatpush1.bf16.xpose.msra.mxu0 0
    %3383 = vmatprep.subr.bf16.mxu0 0
    %3384 = vmatpush1.bf16.xpose.msra.mxu0 0
    %3385 = vmatprep.subr.bf16.mxu0 0
    %3386 = vmatpush1.bf16.xpose.msra.mxu0 0
    %3387 = vmatprep.subr.bf16.mxu0 0
    %3388 = vmatpush1.bf16.xpose.msra.mxu0 0
    %3389 = vmatprep.subr.bf16.mxu0 0
    %3390 = vmatpush1.bf16.xpose.msra.mxu0 0
    %3391 = vmatprep.subr.bf16.mxu0 0
    %3392 = vmatpush1.bf16.xpose.msra.mxu0 0
    %3393 = vmatprep.mubr.bf16.mxu0 %v869
    %3394 = vmatmul.mubr.bf16.gmra.mrb[0].mxu0 %v868
    %v3395 = vpop.f32.mrb[0].mxu0
    %v3396 = vadd.f32 %v3356, %v3395
    %v3397 = vpop.f32.mrb[0].mxu0
    %v3398 = vpop.f32.mrb[0].mxu0
    %v3399 = vpop.f32.mrb[0].mxu0
    %3400 = vdwg.mxu0
    %3401 = vmatprep.subr.bf16.mxu0 %v1512
    %3402 = vmatpush1.bf16.xpose.msra.mxu0 %v1511
    %3403 = vmatprep.subr.bf16.mxu0 0
    %3404 = vmatpush1.bf16.xpose.msra.mxu0 0
    %3405 = vmatprep.subr.bf16.mxu0 0
    %3406 = vmatpush1.bf16.xpose.msra.mxu0 0
    %3407 = vmatprep.subr.bf16.mxu0 0
    %3408 = vmatpush1.bf16.xpose.msra.mxu0 0
    %3409 = vmatprep.subr.bf16.mxu0 0
    %3410 = vmatpush1.bf16.xpose.msra.mxu0 0
    %3411 = vmatprep.subr.bf16.mxu0 0
    %3412 = vmatpush1.bf16.xpose.msra.mxu0 0
    %3413 = vmatprep.subr.bf16.mxu0 0
    %3414 = vmatpush1.bf16.xpose.msra.mxu0 0
    %3415 = vmatprep.subr.bf16.mxu0 0
    %3416 = vmatpush1.bf16.xpose.msra.mxu0 0
    %3417 = vmatprep.subr.bf16.mxu0 0
    %3418 = vmatpush1.bf16.xpose.msra.mxu0 0
    %3419 = vmatprep.subr.bf16.mxu0 0
    %3420 = vmatpush1.bf16.xpose.msra.mxu0 0
    %3421 = vmatprep.subr.bf16.mxu0 0
    %3422 = vmatpush1.bf16.xpose.msra.mxu0 0
    %3423 = vmatprep.subr.bf16.mxu0 0
    %3424 = vmatpush1.bf16.xpose.msra.mxu0 0
    %3425 = vmatprep.subr.bf16.mxu0 0
    %3426 = vmatpush1.bf16.xpose.msra.mxu0 0
    %3427 = vmatprep.subr.bf16.mxu0 0
    %3428 = vmatpush1.bf16.xpose.msra.mxu0 0
    %3429 = vmatprep.subr.bf16.mxu0 0
    %3430 = vmatpush1.bf16.xpose.msra.mxu0 0
    %3431 = vmatprep.subr.bf16.mxu0 0
    %3432 = vmatpush1.bf16.xpose.msra.mxu0 0
    %3433 = vmatprep.mubr.bf16.mxu0 %v871
    %3434 = vmatmul.mubr.bf16.gmra.mrb[0].mxu0 %v870
    %v3435 = vpop.f32.mrb[0].mxu0
    %v3436 = vadd.f32 %v3396, %v3435
    %v3437 = vpop.f32.mrb[0].mxu0
    %v3438 = vpop.f32.mrb[0].mxu0
    %v3439 = vpop.f32.mrb[0].mxu0
    %3440 = vdwg.mxu0
    %3441 = vmatprep.subr.bf16.mxu0 %v1514
    %3442 = vmatpush1.bf16.xpose.msra.mxu0 %v1513
    %3443 = vmatprep.subr.bf16.mxu0 0
    %3444 = vmatpush1.bf16.xpose.msra.mxu0 0
    %3445 = vmatprep.subr.bf16.mxu0 0
    %3446 = vmatpush1.bf16.xpose.msra.mxu0 0
    %3447 = vmatprep.subr.bf16.mxu0 0
    %3448 = vmatpush1.bf16.xpose.msra.mxu0 0
    %3449 = vmatprep.subr.bf16.mxu0 0
    %3450 = vmatpush1.bf16.xpose.msra.mxu0 0
    %3451 = vmatprep.subr.bf16.mxu0 0
    %3452 = vmatpush1.bf16.xpose.msra.mxu0 0
    %3453 = vmatprep.subr.bf16.mxu0 0
    %3454 = vmatpush1.bf16.xpose.msra.mxu0 0
    %3455 = vmatprep.subr.bf16.mxu0 0
    %3456 = vmatpush1.bf16.xpose.msra.mxu0 0
    %3457 = vmatprep.subr.bf16.mxu0 0
    %3458 = vmatpush1.bf16.xpose.msra.mxu0 0
    %3459 = vmatprep.subr.bf16.mxu0 0
    %3460 = vmatpush1.bf16.xpose.msra.mxu0 0
    %3461 = vmatprep.subr.bf16.mxu0 0
    %3462 = vmatpush1.bf16.xpose.msra.mxu0 0
    %3463 = vmatprep.subr.bf16.mxu0 0
    %3464 = vmatpush1.bf16.xpose.msra.mxu0 0
    %3465 = vmatprep.subr.bf16.mxu0 0
    %3466 = vmatpush1.bf16.xpose.msra.mxu0 0
    %3467 = vmatprep.subr.bf16.mxu0 0
    %3468 = vmatpush1.bf16.xpose.msra.mxu0 0
    %3469 = vmatprep.subr.bf16.mxu0 0
    %3470 = vmatpush1.bf16.xpose.msra.mxu0 0
    %3471 = vmatprep.subr.bf16.mxu0 0
    %3472 = vmatpush1.bf16.xpose.msra.mxu0 0
    %3473 = vmatprep.mubr.bf16.mxu0 %v873
    %3474 = vmatmul.mubr.bf16.gmra.mrb[0].mxu0 %v872
    %v3475 = vpop.f32.mrb[0].mxu0
    %v3476 = vadd.f32 %v3436, %v3475
    %v3477 = vpop.f32.mrb[0].mxu0
    %v3478 = vpop.f32.mrb[0].mxu0
    %v3479 = vpop.f32.mrb[0].mxu0
    %3480 = vdwg.mxu0
    %3481 = vmatprep.subr.bf16.mxu0 %v1516
    %3482 = vmatpush1.bf16.xpose.msra.mxu0 %v1515
    %3483 = vmatprep.subr.bf16.mxu0 0
    %3484 = vmatpush1.bf16.xpose.msra.mxu0 0
    %3485 = vmatprep.subr.bf16.mxu0 0
    %3486 = vmatpush1.bf16.xpose.msra.mxu0 0
    %3487 = vmatprep.subr.bf16.mxu0 0
    %3488 = vmatpush1.bf16.xpose.msra.mxu0 0
    %3489 = vmatprep.subr.bf16.mxu0 0
    %3490 = vmatpush1.bf16.xpose.msra.mxu0 0
    %3491 = vmatprep.subr.bf16.mxu0 0
    %3492 = vmatpush1.bf16.xpose.msra.mxu0 0
    %3493 = vmatprep.subr.bf16.mxu0 0
    %3494 = vmatpush1.bf16.xpose.msra.mxu0 0
    %3495 = vmatprep.subr.bf16.mxu0 0
    %3496 = vmatpush1.bf16.xpose.msra.mxu0 0
    %3497 = vmatprep.subr.bf16.mxu0 0
    %3498 = vmatpush1.bf16.xpose.msra.mxu0 0
    %3499 = vmatprep.subr.bf16.mxu0 0
    %3500 = vmatpush1.bf16.xpose.msra.mxu0 0
    %3501 = vmatprep.subr.bf16.mxu0 0
    %3502 = vmatpush1.bf16.xpose.msra.mxu0 0
    %3503 = vmatprep.subr.bf16.mxu0 0
    %3504 = vmatpush1.bf16.xpose.msra.mxu0 0
    %3505 = vmatprep.subr.bf16.mxu0 0
    %3506 = vmatpush1.bf16.xpose.msra.mxu0 0
    %3507 = vmatprep.subr.bf16.mxu0 0
    %3508 = vmatpush1.bf16.xpose.msra.mxu0 0
    %3509 = vmatprep.subr.bf16.mxu0 0
    %3510 = vmatpush1.bf16.xpose.msra.mxu0 0
    %3511 = vmatprep.subr.bf16.mxu0 0
    %3512 = vmatpush1.bf16.xpose.msra.mxu0 0
    %3513 = vmatprep.mubr.bf16.mxu0 %v875
    %3514 = vmatmul.mubr.bf16.gmra.mrb[0].mxu0 %v874
    %v3515 = vpop.f32.mrb[0].mxu0
    %v3516 = vadd.f32 %v3476, %v3515
    %v3517 = vpop.f32.mrb[0].mxu0
    %v3518 = vpop.f32.mrb[0].mxu0
    %v3519 = vpop.f32.mrb[0].mxu0
    %3520 = vdwg.mxu0
    %3521 = vmatprep.subr.bf16.mxu0 %v1518
    %3522 = vmatpush1.bf16.xpose.msra.mxu0 %v1517
    %3523 = vmatprep.subr.bf16.mxu0 0
    %3524 = vmatpush1.bf16.xpose.msra.mxu0 0
    %3525 = vmatprep.subr.bf16.mxu0 0
    %3526 = vmatpush1.bf16.xpose.msra.mxu0 0
    %3527 = vmatprep.subr.bf16.mxu0 0
    %3528 = vmatpush1.bf16.xpose.msra.mxu0 0
    %3529 = vmatprep.subr.bf16.mxu0 0
    %3530 = vmatpush1.bf16.xpose.msra.mxu0 0
    %3531 = vmatprep.subr.bf16.mxu0 0
    %3532 = vmatpush1.bf16.xpose.msra.mxu0 0
    %3533 = vmatprep.subr.bf16.mxu0 0
    %3534 = vmatpush1.bf16.xpose.msra.mxu0 0
    %3535 = vmatprep.subr.bf16.mxu0 0
    %3536 = vmatpush1.bf16.xpose.msra.mxu0 0
    %3537 = vmatprep.subr.bf16.mxu0 0
    %3538 = vmatpush1.bf16.xpose.msra.mxu0 0
    %3539 = vmatprep.subr.bf16.mxu0 0
    %3540 = vmatpush1.bf16.xpose.msra.mxu0 0
    %3541 = vmatprep.subr.bf16.mxu0 0
    %3542 = vmatpush1.bf16.xpose.msra.mxu0 0
    %3543 = vmatprep.subr.bf16.mxu0 0
    %3544 = vmatpush1.bf16.xpose.msra.mxu0 0
    %3545 = vmatprep.subr.bf16.mxu0 0
    %3546 = vmatpush1.bf16.xpose.msra.mxu0 0
    %3547 = vmatprep.subr.bf16.mxu0 0
    %3548 = vmatpush1.bf16.xpose.msra.mxu0 0
    %3549 = vmatprep.subr.bf16.mxu0 0
    %3550 = vmatpush1.bf16.xpose.msra.mxu0 0
    %3551 = vmatprep.subr.bf16.mxu0 0
    %3552 = vmatpush1.bf16.xpose.msra.mxu0 0
    %3553 = vmatprep.mubr.bf16.mxu0 %v877
    %3554 = vmatmul.mubr.bf16.gmra.mrb[0].mxu0 %v876
    %v3555 = vpop.f32.mrb[0].mxu0
    %v3556 = vadd.f32 %v3516, %v3555
    %v3557 = vpop.f32.mrb[0].mxu0
    %v3558 = vpop.f32.mrb[0].mxu0
    %v3559 = vpop.f32.mrb[0].mxu0
    %3560 = vdwg.mxu0
    %3561 = vmatprep.subr.bf16.mxu0 %v1520
    %3562 = vmatpush1.bf16.xpose.msra.mxu0 %v1519
    %3563 = vmatprep.subr.bf16.mxu0 0
    %3564 = vmatpush1.bf16.xpose.msra.mxu0 0
    %3565 = vmatprep.subr.bf16.mxu0 0
    %3566 = vmatpush1.bf16.xpose.msra.mxu0 0
    %3567 = vmatprep.subr.bf16.mxu0 0
    %3568 = vmatpush1.bf16.xpose.msra.mxu0 0
    %3569 = vmatprep.subr.bf16.mxu0 0
    %3570 = vmatpush1.bf16.xpose.msra.mxu0 0
    %3571 = vmatprep.subr.bf16.mxu0 0
    %3572 = vmatpush1.bf16.xpose.msra.mxu0 0
    %3573 = vmatprep.subr.bf16.mxu0 0
    %3574 = vmatpush1.bf16.xpose.msra.mxu0 0
    %3575 = vmatprep.subr.bf16.mxu0 0
    %3576 = vmatpush1.bf16.xpose.msra.mxu0 0
    %3577 = vmatprep.subr.bf16.mxu0 0
    %3578 = vmatpush1.bf16.xpose.msra.mxu0 0
    %3579 = vmatprep.subr.bf16.mxu0 0
    %3580 = vmatpush1.bf16.xpose.msra.mxu0 0
    %3581 = vmatprep.subr.bf16.mxu0 0
    %3582 = vmatpush1.bf16.xpose.msra.mxu0 0
    %3583 = vmatprep.subr.bf16.mxu0 0
    %3584 = vmatpush1.bf16.xpose.msra.mxu0 0
    %3585 = vmatprep.subr.bf16.mxu0 0
    %3586 = vmatpush1.bf16.xpose.msra.mxu0 0
    %3587 = vmatprep.subr.bf16.mxu0 0
    %3588 = vmatpush1.bf16.xpose.msra.mxu0 0
    %3589 = vmatprep.subr.bf16.mxu0 0
    %3590 = vmatpush1.bf16.xpose.msra.mxu0 0
    %3591 = vmatprep.subr.bf16.mxu0 0
    %3592 = vmatpush1.bf16.xpose.msra.mxu0 0
    %3593 = vmatprep.mubr.bf16.mxu0 %v879
    %3594 = vmatmul.mubr.bf16.gmra.mrb[0].mxu0 %v878
    %v3595 = vpop.f32.mrb[0].mxu0
    %v3596 = vadd.f32 %v3556, %v3595
    %v3597 = vpop.f32.mrb[0].mxu0
    %v3598 = vpop.f32.mrb[0].mxu0
    %v3599 = vpop.f32.mrb[0].mxu0
    %3600 = vdwg.mxu0
    %3601 = vmatprep.subr.bf16.mxu0 %v1522
    %3602 = vmatpush1.bf16.xpose.msra.mxu0 %v1521
    %3603 = vmatprep.subr.bf16.mxu0 0
    %3604 = vmatpush1.bf16.xpose.msra.mxu0 0
    %3605 = vmatprep.subr.bf16.mxu0 0
    %3606 = vmatpush1.bf16.xpose.msra.mxu0 0
    %3607 = vmatprep.subr.bf16.mxu0 0
    %3608 = vmatpush1.bf16.xpose.msra.mxu0 0
    %3609 = vmatprep.subr.bf16.mxu0 0
    %3610 = vmatpush1.bf16.xpose.msra.mxu0 0
    %3611 = vmatprep.subr.bf16.mxu0 0
    %3612 = vmatpush1.bf16.xpose.msra.mxu0 0
    %3613 = vmatprep.subr.bf16.mxu0 0
    %3614 = vmatpush1.bf16.xpose.msra.mxu0 0
    %3615 = vmatprep.subr.bf16.mxu0 0
    %3616 = vmatpush1.bf16.xpose.msra.mxu0 0
    %3617 = vmatprep.subr.bf16.mxu0 0
    %3618 = vmatpush1.bf16.xpose.msra.mxu0 0
    %3619 = vmatprep.subr.bf16.mxu0 0
    %3620 = vmatpush1.bf16.xpose.msra.mxu0 0
    %3621 = vmatprep.subr.bf16.mxu0 0
    %3622 = vmatpush1.bf16.xpose.msra.mxu0 0
    %3623 = vmatprep.subr.bf16.mxu0 0
    %3624 = vmatpush1.bf16.xpose.msra.mxu0 0
    %3625 = vmatprep.subr.bf16.mxu0 0
    %3626 = vmatpush1.bf16.xpose.msra.mxu0 0
    %3627 = vmatprep.subr.bf16.mxu0 0
    %3628 = vmatpush1.bf16.xpose.msra.mxu0 0
    %3629 = vmatprep.subr.bf16.mxu0 0
    %3630 = vmatpush1.bf16.xpose.msra.mxu0 0
    %3631 = vmatprep.subr.bf16.mxu0 0
    %3632 = vmatpush1.bf16.xpose.msra.mxu0 0
    %3633 = vmatprep.mubr.bf16.mxu0 %v881
    %3634 = vmatmul.mubr.bf16.gmra.mrb[0].mxu0 %v880
    %v3635 = vpop.f32.mrb[0].mxu0
    %v3636 = vadd.f32 %v3596, %v3635
    %v3637 = vpop.f32.mrb[0].mxu0
    %v3638 = vpop.f32.mrb[0].mxu0
    %v3639 = vpop.f32.mrb[0].mxu0
    %3640 = vdwg.mxu0
    %3641 = vmatprep.subr.bf16.mxu0 %v1524
    %3642 = vmatpush1.bf16.xpose.msra.mxu0 %v1523
    %3643 = vmatprep.subr.bf16.mxu0 0
    %3644 = vmatpush1.bf16.xpose.msra.mxu0 0
    %3645 = vmatprep.subr.bf16.mxu0 0
    %3646 = vmatpush1.bf16.xpose.msra.mxu0 0
    %3647 = vmatprep.subr.bf16.mxu0 0
    %3648 = vmatpush1.bf16.xpose.msra.mxu0 0
    %3649 = vmatprep.subr.bf16.mxu0 0
    %3650 = vmatpush1.bf16.xpose.msra.mxu0 0
    %3651 = vmatprep.subr.bf16.mxu0 0
    %3652 = vmatpush1.bf16.xpose.msra.mxu0 0
    %3653 = vmatprep.subr.bf16.mxu0 0
    %3654 = vmatpush1.bf16.xpose.msra.mxu0 0
    %3655 = vmatprep.subr.bf16.mxu0 0
    %3656 = vmatpush1.bf16.xpose.msra.mxu0 0
    %3657 = vmatprep.subr.bf16.mxu0 0
    %3658 = vmatpush1.bf16.xpose.msra.mxu0 0
    %3659 = vmatprep.subr.bf16.mxu0 0
    %3660 = vmatpush1.bf16.xpose.msra.mxu0 0
    %3661 = vmatprep.subr.bf16.mxu0 0
    %3662 = vmatpush1.bf16.xpose.msra.mxu0 0
    %3663 = vmatprep.subr.bf16.mxu0 0
    %3664 = vmatpush1.bf16.xpose.msra.mxu0 0
    %3665 = vmatprep.subr.bf16.mxu0 0
    %3666 = vmatpush1.bf16.xpose.msra.mxu0 0
    %3667 = vmatprep.subr.bf16.mxu0 0
    %3668 = vmatpush1.bf16.xpose.msra.mxu0 0
    %3669 = vmatprep.subr.bf16.mxu0 0
    %3670 = vmatpush1.bf16.xpose.msra.mxu0 0
    %3671 = vmatprep.subr.bf16.mxu0 0
    %3672 = vmatpush1.bf16.xpose.msra.mxu0 0
    %3673 = vmatprep.mubr.bf16.mxu0 %v883
    %3674 = vmatmul.mubr.bf16.gmra.mrb[0].mxu0 %v882
    %v3675 = vpop.f32.mrb[0].mxu0
    %v3676 = vadd.f32 %v3636, %v3675
    %v3677 = vpop.f32.mrb[0].mxu0
    %v3678 = vpop.f32.mrb[0].mxu0
    %v3679 = vpop.f32.mrb[0].mxu0
    %3680 = vdwg.mxu0
    %3681 = vmatprep.subr.bf16.mxu0 %v1526
    %3682 = vmatpush1.bf16.xpose.msra.mxu0 %v1525
    %3683 = vmatprep.subr.bf16.mxu0 0
    %3684 = vmatpush1.bf16.xpose.msra.mxu0 0
    %3685 = vmatprep.subr.bf16.mxu0 0
    %3686 = vmatpush1.bf16.xpose.msra.mxu0 0
    %3687 = vmatprep.subr.bf16.mxu0 0
    %3688 = vmatpush1.bf16.xpose.msra.mxu0 0
    %3689 = vmatprep.subr.bf16.mxu0 0
    %3690 = vmatpush1.bf16.xpose.msra.mxu0 0
    %3691 = vmatprep.subr.bf16.mxu0 0
    %3692 = vmatpush1.bf16.xpose.msra.mxu0 0
    %3693 = vmatprep.subr.bf16.mxu0 0
    %3694 = vmatpush1.bf16.xpose.msra.mxu0 0
    %3695 = vmatprep.subr.bf16.mxu0 0
    %3696 = vmatpush1.bf16.xpose.msra.mxu0 0
    %3697 = vmatprep.subr.bf16.mxu0 0
    %3698 = vmatpush1.bf16.xpose.msra.mxu0 0
    %3699 = vmatprep.subr.bf16.mxu0 0
    %3700 = vmatpush1.bf16.xpose.msra.mxu0 0
    %3701 = vmatprep.subr.bf16.mxu0 0
    %3702 = vmatpush1.bf16.xpose.msra.mxu0 0
    %3703 = vmatprep.subr.bf16.mxu0 0
    %3704 = vmatpush1.bf16.xpose.msra.mxu0 0
    %3705 = vmatprep.subr.bf16.mxu0 0
    %3706 = vmatpush1.bf16.xpose.msra.mxu0 0
    %3707 = vmatprep.subr.bf16.mxu0 0
    %3708 = vmatpush1.bf16.xpose.msra.mxu0 0
    %3709 = vmatprep.subr.bf16.mxu0 0
    %3710 = vmatpush1.bf16.xpose.msra.mxu0 0
    %3711 = vmatprep.subr.bf16.mxu0 0
    %3712 = vmatpush1.bf16.xpose.msra.mxu0 0
    %3713 = vmatprep.mubr.bf16.mxu0 %v885
    %3714 = vmatmul.mubr.bf16.gmra.mrb[0].mxu0 %v884
    %v3715 = vpop.f32.mrb[0].mxu0
    %v3716 = vadd.f32 %v3676, %v3715
    %v3717 = vpop.f32.mrb[0].mxu0
    %v3718 = vpop.f32.mrb[0].mxu0
    %v3719 = vpop.f32.mrb[0].mxu0
    %3720 = vdwg.mxu0
    %3721 = vmatprep.subr.bf16.mxu0 %v1528
    %3722 = vmatpush1.bf16.xpose.msra.mxu0 %v1527
    %3723 = vmatprep.subr.bf16.mxu0 0
    %3724 = vmatpush1.bf16.xpose.msra.mxu0 0
    %3725 = vmatprep.subr.bf16.mxu0 0
    %3726 = vmatpush1.bf16.xpose.msra.mxu0 0
    %3727 = vmatprep.subr.bf16.mxu0 0
    %3728 = vmatpush1.bf16.xpose.msra.mxu0 0
    %3729 = vmatprep.subr.bf16.mxu0 0
    %3730 = vmatpush1.bf16.xpose.msra.mxu0 0
    %3731 = vmatprep.subr.bf16.mxu0 0
    %3732 = vmatpush1.bf16.xpose.msra.mxu0 0
    %3733 = vmatprep.subr.bf16.mxu0 0
    %3734 = vmatpush1.bf16.xpose.msra.mxu0 0
    %3735 = vmatprep.subr.bf16.mxu0 0
    %3736 = vmatpush1.bf16.xpose.msra.mxu0 0
    %3737 = vmatprep.subr.bf16.mxu0 0
    %3738 = vmatpush1.bf16.xpose.msra.mxu0 0
    %3739 = vmatprep.subr.bf16.mxu0 0
    %3740 = vmatpush1.bf16.xpose.msra.mxu0 0
    %3741 = vmatprep.subr.bf16.mxu0 0
    %3742 = vmatpush1.bf16.xpose.msra.mxu0 0
    %3743 = vmatprep.subr.bf16.mxu0 0
    %3744 = vmatpush1.bf16.xpose.msra.mxu0 0
    %3745 = vmatprep.subr.bf16.mxu0 0
    %3746 = vmatpush1.bf16.xpose.msra.mxu0 0
    %3747 = vmatprep.subr.bf16.mxu0 0
    %3748 = vmatpush1.bf16.xpose.msra.mxu0 0
    %3749 = vmatprep.subr.bf16.mxu0 0
    %3750 = vmatpush1.bf16.xpose.msra.mxu0 0
    %3751 = vmatprep.subr.bf16.mxu0 0
    %3752 = vmatpush1.bf16.xpose.msra.mxu0 0
    %3753 = vmatprep.mubr.bf16.mxu0 %v887
    %3754 = vmatmul.mubr.bf16.gmra.mrb[0].mxu0 %v886
    %v3755 = vpop.f32.mrb[0].mxu0
    %v3756 = vadd.f32 %v3716, %v3755
    %v3757 = vpop.f32.mrb[0].mxu0
    %v3758 = vpop.f32.mrb[0].mxu0
    %v3759 = vpop.f32.mrb[0].mxu0
    %3760 = vdwg.mxu0
    %3761 = vmatprep.subr.bf16.mxu0 %v1530
    %3762 = vmatpush1.bf16.xpose.msra.mxu0 %v1529
    %3763 = vmatprep.subr.bf16.mxu0 0
    %3764 = vmatpush1.bf16.xpose.msra.mxu0 0
    %3765 = vmatprep.subr.bf16.mxu0 0
    %3766 = vmatpush1.bf16.xpose.msra.mxu0 0
    %3767 = vmatprep.subr.bf16.mxu0 0
    %3768 = vmatpush1.bf16.xpose.msra.mxu0 0
    %3769 = vmatprep.subr.bf16.mxu0 0
    %3770 = vmatpush1.bf16.xpose.msra.mxu0 0
    %3771 = vmatprep.subr.bf16.mxu0 0
    %3772 = vmatpush1.bf16.xpose.msra.mxu0 0
    %3773 = vmatprep.subr.bf16.mxu0 0
    %3774 = vmatpush1.bf16.xpose.msra.mxu0 0
    %3775 = vmatprep.subr.bf16.mxu0 0
    %3776 = vmatpush1.bf16.xpose.msra.mxu0 0
    %3777 = vmatprep.subr.bf16.mxu0 0
    %3778 = vmatpush1.bf16.xpose.msra.mxu0 0
    %3779 = vmatprep.subr.bf16.mxu0 0
    %3780 = vmatpush1.bf16.xpose.msra.mxu0 0
    %3781 = vmatprep.subr.bf16.mxu0 0
    %3782 = vmatpush1.bf16.xpose.msra.mxu0 0
    %3783 = vmatprep.subr.bf16.mxu0 0
    %3784 = vmatpush1.bf16.xpose.msra.mxu0 0
    %3785 = vmatprep.subr.bf16.mxu0 0
    %3786 = vmatpush1.bf16.xpose.msra.mxu0 0
    %3787 = vmatprep.subr.bf16.mxu0 0
    %3788 = vmatpush1.bf16.xpose.msra.mxu0 0
    %3789 = vmatprep.subr.bf16.mxu0 0
    %3790 = vmatpush1.bf16.xpose.msra.mxu0 0
    %3791 = vmatprep.subr.bf16.mxu0 0
    %3792 = vmatpush1.bf16.xpose.msra.mxu0 0
    %3793 = vmatprep.mubr.bf16.mxu0 %v889
    %3794 = vmatmul.mubr.bf16.gmra.mrb[0].mxu0 %v888
    %v3795 = vpop.f32.mrb[0].mxu0
    %v3796 = vadd.f32 %v3756, %v3795
    %v3797 = vpop.f32.mrb[0].mxu0
    %v3798 = vpop.f32.mrb[0].mxu0
    %v3799 = vpop.f32.mrb[0].mxu0
    %3800 = vdwg.mxu0
    %3801 = vmatprep.subr.bf16.mxu0 %v1532
    %3802 = vmatpush1.bf16.xpose.msra.mxu0 %v1531
    %3803 = vmatprep.subr.bf16.mxu0 0
    %3804 = vmatpush1.bf16.xpose.msra.mxu0 0
    %3805 = vmatprep.subr.bf16.mxu0 0
    %3806 = vmatpush1.bf16.xpose.msra.mxu0 0
    %3807 = vmatprep.subr.bf16.mxu0 0
    %3808 = vmatpush1.bf16.xpose.msra.mxu0 0
    %3809 = vmatprep.subr.bf16.mxu0 0
    %3810 = vmatpush1.bf16.xpose.msra.mxu0 0
    %3811 = vmatprep.subr.bf16.mxu0 0
    %3812 = vmatpush1.bf16.xpose.msra.mxu0 0
    %3813 = vmatprep.subr.bf16.mxu0 0
    %3814 = vmatpush1.bf16.xpose.msra.mxu0 0
    %3815 = vmatprep.subr.bf16.mxu0 0
    %3816 = vmatpush1.bf16.xpose.msra.mxu0 0
    %3817 = vmatprep.subr.bf16.mxu0 0
    %3818 = vmatpush1.bf16.xpose.msra.mxu0 0
    %3819 = vmatprep.subr.bf16.mxu0 0
    %3820 = vmatpush1.bf16.xpose.msra.mxu0 0
    %3821 = vmatprep.subr.bf16.mxu0 0
    %3822 = vmatpush1.bf16.xpose.msra.mxu0 0
    %3823 = vmatprep.subr.bf16.mxu0 0
    %3824 = vmatpush1.bf16.xpose.msra.mxu0 0
    %3825 = vmatprep.subr.bf16.mxu0 0
    %3826 = vmatpush1.bf16.xpose.msra.mxu0 0
    %3827 = vmatprep.subr.bf16.mxu0 0
    %3828 = vmatpush1.bf16.xpose.msra.mxu0 0
    %3829 = vmatprep.subr.bf16.mxu0 0
    %3830 = vmatpush1.bf16.xpose.msra.mxu0 0
    %3831 = vmatprep.subr.bf16.mxu0 0
    %3832 = vmatpush1.bf16.xpose.msra.mxu0 0
    %3833 = vmatprep.mubr.bf16.mxu0 %v891
    %3834 = vmatmul.mubr.bf16.gmra.mrb[0].mxu0 %v890
    %v3835 = vpop.f32.mrb[0].mxu0
    %v3836 = vadd.f32 %v3796, %v3835
    %v3837 = vpop.f32.mrb[0].mxu0
    %v3838 = vpop.f32.mrb[0].mxu0
    %v3839 = vpop.f32.mrb[0].mxu0
    %3840 = vdwg.mxu0
    %3841 = vmatprep.subr.bf16.mxu0 %v1534
    %3842 = vmatpush1.bf16.xpose.msra.mxu0 %v1533
    %3843 = vmatprep.subr.bf16.mxu0 0
    %3844 = vmatpush1.bf16.xpose.msra.mxu0 0
    %3845 = vmatprep.subr.bf16.mxu0 0
    %3846 = vmatpush1.bf16.xpose.msra.mxu0 0
    %3847 = vmatprep.subr.bf16.mxu0 0
    %3848 = vmatpush1.bf16.xpose.msra.mxu0 0
    %3849 = vmatprep.subr.bf16.mxu0 0
    %3850 = vmatpush1.bf16.xpose.msra.mxu0 0
    %3851 = vmatprep.subr.bf16.mxu0 0
    %3852 = vmatpush1.bf16.xpose.msra.mxu0 0
    %3853 = vmatprep.subr.bf16.mxu0 0
    %3854 = vmatpush1.bf16.xpose.msra.mxu0 0
    %3855 = vmatprep.subr.bf16.mxu0 0
    %3856 = vmatpush1.bf16.xpose.msra.mxu0 0
    %3857 = vmatprep.subr.bf16.mxu0 0
    %3858 = vmatpush1.bf16.xpose.msra.mxu0 0
    %3859 = vmatprep.subr.bf16.mxu0 0
    %3860 = vmatpush1.bf16.xpose.msra.mxu0 0
    %3861 = vmatprep.subr.bf16.mxu0 0
    %3862 = vmatpush1.bf16.xpose.msra.mxu0 0
    %3863 = vmatprep.subr.bf16.mxu0 0
    %3864 = vmatpush1.bf16.xpose.msra.mxu0 0
    %3865 = vmatprep.subr.bf16.mxu0 0
    %3866 = vmatpush1.bf16.xpose.msra.mxu0 0
    %3867 = vmatprep.subr.bf16.mxu0 0
    %3868 = vmatpush1.bf16.xpose.msra.mxu0 0
    %3869 = vmatprep.subr.bf16.mxu0 0
    %3870 = vmatpush1.bf16.xpose.msra.mxu0 0
    %3871 = vmatprep.subr.bf16.mxu0 0
    %3872 = vmatpush1.bf16.xpose.msra.mxu0 0
    %3873 = vmatprep.mubr.bf16.mxu0 %v893
    %3874 = vmatmul.mubr.bf16.gmra.mrb[0].mxu0 %v892
    %v3875 = vpop.f32.mrb[0].mxu0
    %v3876 = vadd.f32 %v3836, %v3875
    %v3877 = vpop.f32.mrb[0].mxu0
    %v3878 = vpop.f32.mrb[0].mxu0
    %v3879 = vpop.f32.mrb[0].mxu0
    %3880 = vdwg.mxu0
    %3881 = vmatprep.subr.bf16.mxu0 %v1536
    %3882 = vmatpush1.bf16.xpose.msra.mxu0 %v1535
    %3883 = vmatprep.subr.bf16.mxu0 0
    %3884 = vmatpush1.bf16.xpose.msra.mxu0 0
    %3885 = vmatprep.subr.bf16.mxu0 0
    %3886 = vmatpush1.bf16.xpose.msra.mxu0 0
    %3887 = vmatprep.subr.bf16.mxu0 0
    %3888 = vmatpush1.bf16.xpose.msra.mxu0 0
    %3889 = vmatprep.subr.bf16.mxu0 0
    %3890 = vmatpush1.bf16.xpose.msra.mxu0 0
    %3891 = vmatprep.subr.bf16.mxu0 0
    %3892 = vmatpush1.bf16.xpose.msra.mxu0 0
    %3893 = vmatprep.subr.bf16.mxu0 0
    %3894 = vmatpush1.bf16.xpose.msra.mxu0 0
    %3895 = vmatprep.subr.bf16.mxu0 0
    %3896 = vmatpush1.bf16.xpose.msra.mxu0 0
    %3897 = vmatprep.subr.bf16.mxu0 0
    %3898 = vmatpush1.bf16.xpose.msra.mxu0 0
    %3899 = vmatprep.subr.bf16.mxu0 0
    %3900 = vmatpush1.bf16.xpose.msra.mxu0 0
    %3901 = vmatprep.subr.bf16.mxu0 0
    %3902 = vmatpush1.bf16.xpose.msra.mxu0 0
    %3903 = vmatprep.subr.bf16.mxu0 0
    %3904 = vmatpush1.bf16.xpose.msra.mxu0 0
    %3905 = vmatprep.subr.bf16.mxu0 0
    %3906 = vmatpush1.bf16.xpose.msra.mxu0 0
    %3907 = vmatprep.subr.bf16.mxu0 0
    %3908 = vmatpush1.bf16.xpose.msra.mxu0 0
    %3909 = vmatprep.subr.bf16.mxu0 0
    %3910 = vmatpush1.bf16.xpose.msra.mxu0 0
    %3911 = vmatprep.subr.bf16.mxu0 0
    %3912 = vmatpush1.bf16.xpose.msra.mxu0 0
    %3913 = vmatprep.mubr.bf16.mxu0 %v895
    %3914 = vmatmul.mubr.bf16.gmra.mrb[0].mxu0 %v894
    %v3915 = vpop.f32.mrb[0].mxu0
    %v3916 = vadd.f32 %v3876, %v3915
    %v3917 = vpop.f32.mrb[0].mxu0
    %v3918 = vpop.f32.mrb[0].mxu0
    %v3919 = vpop.f32.mrb[0].mxu0
    %3920 = vdwg.mxu0
    %3921 = vmatprep.subr.bf16.mxu0 %v1538
    %3922 = vmatpush1.bf16.xpose.msra.mxu0 %v1537
    %3923 = vmatprep.subr.bf16.mxu0 0
    %3924 = vmatpush1.bf16.xpose.msra.mxu0 0
    %3925 = vmatprep.subr.bf16.mxu0 0
    %3926 = vmatpush1.bf16.xpose.msra.mxu0 0
    %3927 = vmatprep.subr.bf16.mxu0 0
    %3928 = vmatpush1.bf16.xpose.msra.mxu0 0
    %3929 = vmatprep.subr.bf16.mxu0 0
    %3930 = vmatpush1.bf16.xpose.msra.mxu0 0
    %3931 = vmatprep.subr.bf16.mxu0 0
    %3932 = vmatpush1.bf16.xpose.msra.mxu0 0
    %3933 = vmatprep.subr.bf16.mxu0 0
    %3934 = vmatpush1.bf16.xpose.msra.mxu0 0
    %3935 = vmatprep.subr.bf16.mxu0 0
    %3936 = vmatpush1.bf16.xpose.msra.mxu0 0
    %3937 = vmatprep.subr.bf16.mxu0 0
    %3938 = vmatpush1.bf16.xpose.msra.mxu0 0
    %3939 = vmatprep.subr.bf16.mxu0 0
    %3940 = vmatpush1.bf16.xpose.msra.mxu0 0
    %3941 = vmatprep.subr.bf16.mxu0 0
    %3942 = vmatpush1.bf16.xpose.msra.mxu0 0
    %3943 = vmatprep.subr.bf16.mxu0 0
    %3944 = vmatpush1.bf16.xpose.msra.mxu0 0
    %3945 = vmatprep.subr.bf16.mxu0 0
    %3946 = vmatpush1.bf16.xpose.msra.mxu0 0
    %3947 = vmatprep.subr.bf16.mxu0 0
    %3948 = vmatpush1.bf16.xpose.msra.mxu0 0
    %3949 = vmatprep.subr.bf16.mxu0 0
    %3950 = vmatpush1.bf16.xpose.msra.mxu0 0
    %3951 = vmatprep.subr.bf16.mxu0 0
    %3952 = vmatpush1.bf16.xpose.msra.mxu0 0
    %3953 = vmatprep.mubr.bf16.mxu0 %v897
    %3954 = vmatmul.mubr.bf16.gmra.mrb[0].mxu0 %v896
    %v3955 = vpop.f32.mrb[0].mxu0
    %v3956 = vadd.f32 %v3916, %v3955
    %v3957 = vpop.f32.mrb[0].mxu0
    %v3958 = vpop.f32.mrb[0].mxu0
    %v3959 = vpop.f32.mrb[0].mxu0
    %3960 = vdwg.mxu0
    %3961 = vmatprep.subr.bf16.mxu0 %v1540
    %3962 = vmatpush1.bf16.xpose.msra.mxu0 %v1539
    %3963 = vmatprep.subr.bf16.mxu0 0
    %3964 = vmatpush1.bf16.xpose.msra.mxu0 0
    %3965 = vmatprep.subr.bf16.mxu0 0
    %3966 = vmatpush1.bf16.xpose.msra.mxu0 0
    %3967 = vmatprep.subr.bf16.mxu0 0
    %3968 = vmatpush1.bf16.xpose.msra.mxu0 0
    %3969 = vmatprep.subr.bf16.mxu0 0
    %3970 = vmatpush1.bf16.xpose.msra.mxu0 0
    %3971 = vmatprep.subr.bf16.mxu0 0
    %3972 = vmatpush1.bf16.xpose.msra.mxu0 0
    %3973 = vmatprep.subr.bf16.mxu0 0
    %3974 = vmatpush1.bf16.xpose.msra.mxu0 0
    %3975 = vmatprep.subr.bf16.mxu0 0
    %3976 = vmatpush1.bf16.xpose.msra.mxu0 0
    %3977 = vmatprep.subr.bf16.mxu0 0
    %3978 = vmatpush1.bf16.xpose.msra.mxu0 0
    %3979 = vmatprep.subr.bf16.mxu0 0
    %3980 = vmatpush1.bf16.xpose.msra.mxu0 0
    %3981 = vmatprep.subr.bf16.mxu0 0
    %3982 = vmatpush1.bf16.xpose.msra.mxu0 0
    %3983 = vmatprep.subr.bf16.mxu0 0
    %3984 = vmatpush1.bf16.xpose.msra.mxu0 0
    %3985 = vmatprep.subr.bf16.mxu0 0
    %3986 = vmatpush1.bf16.xpose.msra.mxu0 0
    %3987 = vmatprep.subr.bf16.mxu0 0
    %3988 = vmatpush1.bf16.xpose.msra.mxu0 0
    %3989 = vmatprep.subr.bf16.mxu0 0
    %3990 = vmatpush1.bf16.xpose.msra.mxu0 0
    %3991 = vmatprep.subr.bf16.mxu0 0
    %3992 = vmatpush1.bf16.xpose.msra.mxu0 0
    %3993 = vmatprep.mubr.bf16.mxu0 %v899
    %3994 = vmatmul.mubr.bf16.gmra.mrb[0].mxu0 %v898
    %v3995 = vpop.f32.mrb[0].mxu0
    %v3996 = vadd.f32 %v3956, %v3995
    %v3997 = vpop.f32.mrb[0].mxu0
    %v3998 = vpop.f32.mrb[0].mxu0
    %v3999 = vpop.f32.mrb[0].mxu0
    %4000 = vdwg.mxu0
    %4001 = vmatprep.subr.bf16.mxu0 %v1542
    %4002 = vmatpush1.bf16.xpose.msra.mxu0 %v1541
    %4003 = vmatprep.subr.bf16.mxu0 0
    %4004 = vmatpush1.bf16.xpose.msra.mxu0 0
    %4005 = vmatprep.subr.bf16.mxu0 0
    %4006 = vmatpush1.bf16.xpose.msra.mxu0 0
    %4007 = vmatprep.subr.bf16.mxu0 0
    %4008 = vmatpush1.bf16.xpose.msra.mxu0 0
    %4009 = vmatprep.subr.bf16.mxu0 0
    %4010 = vmatpush1.bf16.xpose.msra.mxu0 0
    %4011 = vmatprep.subr.bf16.mxu0 0
    %4012 = vmatpush1.bf16.xpose.msra.mxu0 0
    %4013 = vmatprep.subr.bf16.mxu0 0
    %4014 = vmatpush1.bf16.xpose.msra.mxu0 0
    %4015 = vmatprep.subr.bf16.mxu0 0
    %4016 = vmatpush1.bf16.xpose.msra.mxu0 0
    %4017 = vmatprep.subr.bf16.mxu0 0
    %4018 = vmatpush1.bf16.xpose.msra.mxu0 0
    %4019 = vmatprep.subr.bf16.mxu0 0
    %4020 = vmatpush1.bf16.xpose.msra.mxu0 0
    %4021 = vmatprep.subr.bf16.mxu0 0
    %4022 = vmatpush1.bf16.xpose.msra.mxu0 0
    %4023 = vmatprep.subr.bf16.mxu0 0
    %4024 = vmatpush1.bf16.xpose.msra.mxu0 0
    %4025 = vmatprep.subr.bf16.mxu0 0
    %4026 = vmatpush1.bf16.xpose.msra.mxu0 0
    %4027 = vmatprep.subr.bf16.mxu0 0
    %4028 = vmatpush1.bf16.xpose.msra.mxu0 0
    %4029 = vmatprep.subr.bf16.mxu0 0
    %4030 = vmatpush1.bf16.xpose.msra.mxu0 0
    %4031 = vmatprep.subr.bf16.mxu0 0
    %4032 = vmatpush1.bf16.xpose.msra.mxu0 0
    %4033 = vmatprep.mubr.bf16.mxu0 %v901
    %4034 = vmatmul.mubr.bf16.gmra.mrb[0].mxu0 %v900
    %v4035 = vpop.f32.mrb[0].mxu0
    %v4036 = vadd.f32 %v3996, %v4035
    %v4037 = vpop.f32.mrb[0].mxu0
    %v4038 = vpop.f32.mrb[0].mxu0
    %v4039 = vpop.f32.mrb[0].mxu0
    %4040 = vdwg.mxu0
    %4041 = vmatprep.subr.bf16.mxu0 %v1544
    %4042 = vmatpush1.bf16.xpose.msra.mxu0 %v1543
    %4043 = vmatprep.subr.bf16.mxu0 0
    %4044 = vmatpush1.bf16.xpose.msra.mxu0 0
    %4045 = vmatprep.subr.bf16.mxu0 0
    %4046 = vmatpush1.bf16.xpose.msra.mxu0 0
    %4047 = vmatprep.subr.bf16.mxu0 0
    %4048 = vmatpush1.bf16.xpose.msra.mxu0 0
    %4049 = vmatprep.subr.bf16.mxu0 0
    %4050 = vmatpush1.bf16.xpose.msra.mxu0 0
    %4051 = vmatprep.subr.bf16.mxu0 0
    %4052 = vmatpush1.bf16.xpose.msra.mxu0 0
    %4053 = vmatprep.subr.bf16.mxu0 0
    %4054 = vmatpush1.bf16.xpose.msra.mxu0 0
    %4055 = vmatprep.subr.bf16.mxu0 0
    %4056 = vmatpush1.bf16.xpose.msra.mxu0 0
    %4057 = vmatprep.subr.bf16.mxu0 0
    %4058 = vmatpush1.bf16.xpose.msra.mxu0 0
    %4059 = vmatprep.subr.bf16.mxu0 0
    %4060 = vmatpush1.bf16.xpose.msra.mxu0 0
    %4061 = vmatprep.subr.bf16.mxu0 0
    %4062 = vmatpush1.bf16.xpose.msra.mxu0 0
    %4063 = vmatprep.subr.bf16.mxu0 0
    %4064 = vmatpush1.bf16.xpose.msra.mxu0 0
    %4065 = vmatprep.subr.bf16.mxu0 0
    %4066 = vmatpush1.bf16.xpose.msra.mxu0 0
    %4067 = vmatprep.subr.bf16.mxu0 0
    %4068 = vmatpush1.bf16.xpose.msra.mxu0 0
    %4069 = vmatprep.subr.bf16.mxu0 0
    %4070 = vmatpush1.bf16.xpose.msra.mxu0 0
    %4071 = vmatprep.subr.bf16.mxu0 0
    %4072 = vmatpush1.bf16.xpose.msra.mxu0 0
    %4073 = vmatprep.mubr.bf16.mxu0 %v903
    %4074 = vmatmul.mubr.bf16.gmra.mrb[0].mxu0 %v902
    %v4075 = vpop.f32.mrb[0].mxu0
    %v4076 = vadd.f32 %v4036, %v4075
    %v4077 = vpop.f32.mrb[0].mxu0
    %v4078 = vpop.f32.mrb[0].mxu0
    %v4079 = vpop.f32.mrb[0].mxu0
    %4080 = vdwg.mxu0
    %4081 = vmatprep.subr.bf16.mxu0 %v1546
    %4082 = vmatpush1.bf16.xpose.msra.mxu0 %v1545
    %4083 = vmatprep.subr.bf16.mxu0 0
    %4084 = vmatpush1.bf16.xpose.msra.mxu0 0
    %4085 = vmatprep.subr.bf16.mxu0 0
    %4086 = vmatpush1.bf16.xpose.msra.mxu0 0
    %4087 = vmatprep.subr.bf16.mxu0 0
    %4088 = vmatpush1.bf16.xpose.msra.mxu0 0
    %4089 = vmatprep.subr.bf16.mxu0 0
    %4090 = vmatpush1.bf16.xpose.msra.mxu0 0
    %4091 = vmatprep.subr.bf16.mxu0 0
    %4092 = vmatpush1.bf16.xpose.msra.mxu0 0
    %4093 = vmatprep.subr.bf16.mxu0 0
    %4094 = vmatpush1.bf16.xpose.msra.mxu0 0
    %4095 = vmatprep.subr.bf16.mxu0 0
    %4096 = vmatpush1.bf16.xpose.msra.mxu0 0
    %4097 = vmatprep.subr.bf16.mxu0 0
    %4098 = vmatpush1.bf16.xpose.msra.mxu0 0
    %4099 = vmatprep.subr.bf16.mxu0 0
    %4100 = vmatpush1.bf16.xpose.msra.mxu0 0
    %4101 = vmatprep.subr.bf16.mxu0 0
    %4102 = vmatpush1.bf16.xpose.msra.mxu0 0
    %4103 = vmatprep.subr.bf16.mxu0 0
    %4104 = vmatpush1.bf16.xpose.msra.mxu0 0
    %4105 = vmatprep.subr.bf16.mxu0 0
    %4106 = vmatpush1.bf16.xpose.msra.mxu0 0
    %4107 = vmatprep.subr.bf16.mxu0 0
    %4108 = vmatpush1.bf16.xpose.msra.mxu0 0
    %4109 = vmatprep.subr.bf16.mxu0 0
    %4110 = vmatpush1.bf16.xpose.msra.mxu0 0
    %4111 = vmatprep.subr.bf16.mxu0 0
    %4112 = vmatpush1.bf16.xpose.msra.mxu0 0
    %4113 = vmatprep.mubr.bf16.mxu0 %v905
    %4114 = vmatmul.mubr.bf16.gmra.mrb[0].mxu0 %v904
    %v4115 = vpop.f32.mrb[0].mxu0
    %v4116 = vadd.f32 %v4076, %v4115
    %v4117 = vpop.f32.mrb[0].mxu0
    %v4118 = vpop.f32.mrb[0].mxu0
    %v4119 = vpop.f32.mrb[0].mxu0
    %4120 = vdwg.mxu0
    %4121 = vmatprep.subr.bf16.mxu0 %v1548
    %4122 = vmatpush1.bf16.xpose.msra.mxu0 %v1547
    %4123 = vmatprep.subr.bf16.mxu0 0
    %4124 = vmatpush1.bf16.xpose.msra.mxu0 0
    %4125 = vmatprep.subr.bf16.mxu0 0
    %4126 = vmatpush1.bf16.xpose.msra.mxu0 0
    %4127 = vmatprep.subr.bf16.mxu0 0
    %4128 = vmatpush1.bf16.xpose.msra.mxu0 0
    %4129 = vmatprep.subr.bf16.mxu0 0
    %4130 = vmatpush1.bf16.xpose.msra.mxu0 0
    %4131 = vmatprep.subr.bf16.mxu0 0
    %4132 = vmatpush1.bf16.xpose.msra.mxu0 0
    %4133 = vmatprep.subr.bf16.mxu0 0
    %4134 = vmatpush1.bf16.xpose.msra.mxu0 0
    %4135 = vmatprep.subr.bf16.mxu0 0
    %4136 = vmatpush1.bf16.xpose.msra.mxu0 0
    %4137 = vmatprep.subr.bf16.mxu0 0
    %4138 = vmatpush1.bf16.xpose.msra.mxu0 0
    %4139 = vmatprep.subr.bf16.mxu0 0
    %4140 = vmatpush1.bf16.xpose.msra.mxu0 0
    %4141 = vmatprep.subr.bf16.mxu0 0
    %4142 = vmatpush1.bf16.xpose.msra.mxu0 0
    %4143 = vmatprep.subr.bf16.mxu0 0
    %4144 = vmatpush1.bf16.xpose.msra.mxu0 0
    %4145 = vmatprep.subr.bf16.mxu0 0
    %4146 = vmatpush1.bf16.xpose.msra.mxu0 0
    %4147 = vmatprep.subr.bf16.mxu0 0
    %4148 = vmatpush1.bf16.xpose.msra.mxu0 0
    %4149 = vmatprep.subr.bf16.mxu0 0
    %4150 = vmatpush1.bf16.xpose.msra.mxu0 0
    %4151 = vmatprep.subr.bf16.mxu0 0
    %4152 = vmatpush1.bf16.xpose.msra.mxu0 0
    %4153 = vmatprep.mubr.bf16.mxu0 %v907
    %4154 = vmatmul.mubr.bf16.gmra.mrb[0].mxu0 %v906
    %v4155 = vpop.f32.mrb[0].mxu0
    %v4156 = vadd.f32 %v4116, %v4155
    %v4157 = vpop.f32.mrb[0].mxu0
    %v4158 = vpop.f32.mrb[0].mxu0
    %v4159 = vpop.f32.mrb[0].mxu0
    %4160 = vdwg.mxu0
    %4161 = vmatprep.subr.bf16.mxu0 %v1550
    %4162 = vmatpush1.bf16.xpose.msra.mxu0 %v1549
    %4163 = vmatprep.subr.bf16.mxu0 0
    %4164 = vmatpush1.bf16.xpose.msra.mxu0 0
    %4165 = vmatprep.subr.bf16.mxu0 0
    %4166 = vmatpush1.bf16.xpose.msra.mxu0 0
    %4167 = vmatprep.subr.bf16.mxu0 0
    %4168 = vmatpush1.bf16.xpose.msra.mxu0 0
    %4169 = vmatprep.subr.bf16.mxu0 0
    %4170 = vmatpush1.bf16.xpose.msra.mxu0 0
    %4171 = vmatprep.subr.bf16.mxu0 0
    %4172 = vmatpush1.bf16.xpose.msra.mxu0 0
    %4173 = vmatprep.subr.bf16.mxu0 0
    %4174 = vmatpush1.bf16.xpose.msra.mxu0 0
    %4175 = vmatprep.subr.bf16.mxu0 0
    %4176 = vmatpush1.bf16.xpose.msra.mxu0 0
    %4177 = vmatprep.subr.bf16.mxu0 0
    %4178 = vmatpush1.bf16.xpose.msra.mxu0 0
    %4179 = vmatprep.subr.bf16.mxu0 0
    %4180 = vmatpush1.bf16.xpose.msra.mxu0 0
    %4181 = vmatprep.subr.bf16.mxu0 0
    %4182 = vmatpush1.bf16.xpose.msra.mxu0 0
    %4183 = vmatprep.subr.bf16.mxu0 0
    %4184 = vmatpush1.bf16.xpose.msra.mxu0 0
    %4185 = vmatprep.subr.bf16.mxu0 0
    %4186 = vmatpush1.bf16.xpose.msra.mxu0 0
    %4187 = vmatprep.subr.bf16.mxu0 0
    %4188 = vmatpush1.bf16.xpose.msra.mxu0 0
    %4189 = vmatprep.subr.bf16.mxu0 0
    %4190 = vmatpush1.bf16.xpose.msra.mxu0 0
    %4191 = vmatprep.subr.bf16.mxu0 0
    %4192 = vmatpush1.bf16.xpose.msra.mxu0 0
    %4193 = vmatprep.mubr.bf16.mxu0 %v909
    %4194 = vmatmul.mubr.bf16.gmra.mrb[0].mxu0 %v908
    %v4195 = vpop.f32.mrb[0].mxu0
    %v4196 = vadd.f32 %v4156, %v4195
    %v4197 = vpop.f32.mrb[0].mxu0
    %v4198 = vpop.f32.mrb[0].mxu0
    %v4199 = vpop.f32.mrb[0].mxu0
    %4200 = vdwg.mxu0
    %4201 = vmatprep.subr.bf16.mxu0 %v1552
    %4202 = vmatpush1.bf16.xpose.msra.mxu0 %v1551
    %4203 = vmatprep.subr.bf16.mxu0 0
    %4204 = vmatpush1.bf16.xpose.msra.mxu0 0
    %4205 = vmatprep.subr.bf16.mxu0 0
    %4206 = vmatpush1.bf16.xpose.msra.mxu0 0
    %4207 = vmatprep.subr.bf16.mxu0 0
    %4208 = vmatpush1.bf16.xpose.msra.mxu0 0
    %4209 = vmatprep.subr.bf16.mxu0 0
    %4210 = vmatpush1.bf16.xpose.msra.mxu0 0
    %4211 = vmatprep.subr.bf16.mxu0 0
    %4212 = vmatpush1.bf16.xpose.msra.mxu0 0
    %4213 = vmatprep.subr.bf16.mxu0 0
    %4214 = vmatpush1.bf16.xpose.msra.mxu0 0
    %4215 = vmatprep.subr.bf16.mxu0 0
    %4216 = vmatpush1.bf16.xpose.msra.mxu0 0
    %4217 = vmatprep.subr.bf16.mxu0 0
    %4218 = vmatpush1.bf16.xpose.msra.mxu0 0
    %4219 = vmatprep.subr.bf16.mxu0 0
    %4220 = vmatpush1.bf16.xpose.msra.mxu0 0
    %4221 = vmatprep.subr.bf16.mxu0 0
    %4222 = vmatpush1.bf16.xpose.msra.mxu0 0
    %4223 = vmatprep.subr.bf16.mxu0 0
    %4224 = vmatpush1.bf16.xpose.msra.mxu0 0
    %4225 = vmatprep.subr.bf16.mxu0 0
    %4226 = vmatpush1.bf16.xpose.msra.mxu0 0
    %4227 = vmatprep.subr.bf16.mxu0 0
    %4228 = vmatpush1.bf16.xpose.msra.mxu0 0
    %4229 = vmatprep.subr.bf16.mxu0 0
    %4230 = vmatpush1.bf16.xpose.msra.mxu0 0
    %4231 = vmatprep.subr.bf16.mxu0 0
    %4232 = vmatpush1.bf16.xpose.msra.mxu0 0
    %4233 = vmatprep.mubr.bf16.mxu0 %v911
    %4234 = vmatmul.mubr.bf16.gmra.mrb[0].mxu0 %v910
    %v4235 = vpop.f32.mrb[0].mxu0
    %v4236 = vadd.f32 %v4196, %v4235
    %v4237 = vpop.f32.mrb[0].mxu0
    %v4238 = vpop.f32.mrb[0].mxu0
    %v4239 = vpop.f32.mrb[0].mxu0
    %4240 = vdwg.mxu0
    %v4241 = vadd.f32 %v912, %v4236
    %vm4242 = vcmask 123904
    %4243 = vst.msk [vmem:[#allocation2] sm:$0x3] %vm4242, %v4241
    // Predicated region
    $region26: #{net_head_forward.1} parent=1 // pred_check
      %p4244 = pneg %p42
    $region27: #{net_head_forward.1} parent=1 // pred_check_branch
      %4246 = sbr.rel (%p4244) target = $region29
    $region28: #{net_head_forward.1} parent=1 // pred_region
      %v4247 = vld [vmem:[%s2] sm:$0x1]
      %v4248 = vld [vmem:[%s2 + $0x1] sm:$0x1]
      %v4249 = vld [vmem:[%s2 + $0x8] sm:$0xff]
      %v4250 = vld [vmem:[%s2 + $0x10] sm:$0xff]
      %v4251 = vld [vmem:[#allocation2] sm:$0x3]
      %v4252 = vlaneseq
      %v4253 = vshrl.u32 %v4252, 7
      %v4254 = vsub.s32 0, %v4253
      %v4255 = vrot.slane %v4247, %v4254
      %v4256 = vadd.f32 %v4251, %v4255
      %v4257 = vmax.f32 %v4256, 0.0
      %v4258 = vlaneseq
      %v4259 = vshrl.u32 %v4258, 7
      %v4260 = vsub.s32 0, %v4259
      %v4261 = vrot.slane %v4248, %v4260
      %vm4262 = vcmask 130048
      %v4264 = vsel %vm4262, %v4257, 0
      %4266 = vmatprep.subr.mxu0 0.0
      %4267 = vmatpush1.msra.mxu0 %v4249
      %4268 = vmatprep.subr.mxu0 0.0
      %4269 = vmatpush1.msra.mxu0 %v4250
      %4270 = vmatprep.subr.mxu0 0.0
      %4271 = vmatpush1.msra.mxu0 0.0
      %4272 = vmatprep.subr.mxu0 0.0
      %4273 = vmatpush1.msra.mxu0 0.0
      %4274 = vmatprep.subr.mxu0 0.0
      %4275 = vmatpush1.msra.mxu0 0.0
      %4276 = vmatprep.subr.mxu0 0.0
      %4277 = vmatpush1.msra.mxu0 0.0
      %4278 = vmatprep.subr.mxu0 0.0
      %4279 = vmatpush1.msra.mxu0 0.0
      %4280 = vmatprep.subr.mxu0 0.0
      %4281 = vmatpush1.msra.mxu0 0.0
      %4282 = vmatprep.subr.mxu0 0.0
      %4283 = vmatpush1.msra.mxu0 0.0
      %4284 = vmatprep.subr.mxu0 0.0
      %4285 = vmatpush1.msra.mxu0 0.0
      %4286 = vmatprep.subr.mxu0 0.0
      %4287 = vmatpush1.msra.mxu0 0.0
      %4288 = vmatprep.subr.mxu0 0.0
      %4289 = vmatpush1.msra.mxu0 0.0
      %4290 = vmatprep.subr.mxu0 0.0
      %4291 = vmatpush1.msra.mxu0 0.0
      %4292 = vmatprep.subr.mxu0 0.0
      %4293 = vmatpush1.msra.mxu0 0.0
      %4294 = vmatprep.subr.mxu0 0.0
      %4295 = vmatpush1.msra.mxu0 0.0
      %4296 = vmatprep.subr.mxu0 0.0
      %4297 = vmatpush1.msra.mxu0 0.0
      %4298 = vmatprep.subr.mxu0 0.0
      %4299 = vmatpush1.msra.mxu0 0.0
      %4300 = vmatprep.subr.mxu0 0.0
      %4301 = vmatpush1.msra.mxu0 0.0
      %4302 = vmatprep.subr.mxu0 0.0
      %4303 = vmatpush1.msra.mxu0 0.0
      %4304 = vmatprep.subr.mxu0 0.0
      %4305 = vmatpush1.msra.mxu0 0.0
      %4306 = vmatprep.subr.mxu0 0.0
      %4307 = vmatpush1.msra.mxu0 0.0
      %4308 = vmatprep.subr.mxu0 0.0
      %4309 = vmatpush1.msra.mxu0 0.0
      %4310 = vmatprep.subr.mxu0 0.0
      %4311 = vmatpush1.msra.mxu0 0.0
      %4312 = vmatprep.subr.mxu0 0.0
      %4313 = vmatpush1.msra.mxu0 0.0
      %4314 = vmatprep.subr.mxu0 0.0
      %4315 = vmatpush1.msra.mxu0 0.0
      %4316 = vmatprep.subr.mxu0 0.0
      %4317 = vmatpush1.msra.mxu0 0.0
      %4318 = vmatprep.subr.mxu0 0.0
      %4319 = vmatpush1.msra.mxu0 0.0
      %4320 = vmatprep.subr.mxu0 0.0
      %4321 = vmatpush1.msra.mxu0 0.0
      %4322 = vmatprep.subr.mxu0 0.0
      %4323 = vmatpush1.msra.mxu0 0.0
      %4324 = vmatprep.subr.mxu0 0.0
      %4325 = vmatpush1.msra.mxu0 0.0
      %4326 = vmatprep.subr.mxu0 0.0
      %4327 = vmatpush1.msra.mxu0 0.0
      %4328 = vmatprep.subr.mxu0 0.0
      %4329 = vmatpush1.msra.mxu0 0.0
      %4330 = vmatprep.mubr.f32.mxu0 0.0
      %4331 = vmatmul.mubr.f32.gmra.mrb[0].mxu0 %v4264
      %v4332 = vpop.f32.mrb[0].mxu0
      %v4333 = vadd.f32 %v4261, %v4332
      %v4334 = vpop.f32.mrb[0].mxu0
      %4335 = vdwg.mxu0
      %vm4336 = vcmask 41984
      %v4337 = vsel %vm4336, %v4333, -inf
      %4338 = vmax.xlane.f32.xlu0 %v4337
      %v4339 = vpop.xlane.xlu0 %4338
      %v4340 = vsub.f32 %v4333, %v4339
      %v4341 = vmul.f32 %v4340, 1.442695
      %v4342 = vpow.pop %v4341
      %v4343 = vsel %vm4336, %v4342, 0.0
      %4344 = vadd.xlane.f32.xlu0 %v4343
      %v4345 = vpop.xlane.xlu0 %4344
      %v4346 = vlog2.pop %v4345
      %v4347 = vmul.f32 %v4346, 0.6931472
      %v4348 = vsub.f32 %v4340, %v4347
      %4349 = vst.msk [vmem:[#allocation8] sm:$0x3] %vm4336, %v4348
    $region29: #{net_head_forward.1} parent=1 // pred_fallthru
      _
    // Predicated region
    $region30: #{net_head_forward.1} parent=1 // pred_check
      _
    $region31: #{net_head_forward.1} parent=1 // pred_check_branch
      %4351 = sbr.rel (0) target = $region33
    $region32: #{net_head_forward.1} parent=1 // pred_region
      %s4353 = ssub.s32 32, 32
      %4354 = vsyncadd [#allocation5], %s4353
      %s4356 = sshll.u32 [#allocation8], 4
      %s4357 = int_to_ptr.vmem [resolvable:$true] %s4356
      %4359 = dma.vmem_to_hbm [thread:$0]  %s4357, 32, %s3, [#allocation5]
    $region33: #{net_head_forward.1} parent=1 // pred_fallthru
      _
    // Predicated region
    $region34: #{net_head_forward.1} parent=1 // pred_check
      _
    $region35: #{net_head_forward.1} parent=1 // pred_check_branch
      %4361 = sbr.rel (0) target = $region37
    $region36: #{net_head_forward.1} parent=1 // pred_region
      %4362 = dma.done [#allocation5], 32
    $region37: #{net_head_forward.1} parent=1 // pred_fallthru
      _
    %4363 = vsyncpa [#allocation4], 1
    %4364 = vsyncpa [#allocation7], 1
    %4365 = vsyncpa [#allocation5], 1

</llo_original>
